<compile_context>
chip_gen: v7x
topology: tpu7x:2x2x1
jax: 0.10.0
libtpu: 0.0.40
codegen_flags: <defaults>
</compile_context>

<pallas_src>
import functools

import jax
import jax.numpy as jnp
from jax.experimental import pallas as pl
from jax.experimental.pallas import tpu as pltpu


# ----------------------------- Pallas kernel ------------------------------ #

def _ae_fused_kernel(x_ref, *refs, acts, z_layer):
    """Fused 10-layer MLP: refs = (w0..w9, b0..b9, recon_ref, z_ref).

    x_ref:   (TB, 896)  f32 batch tile (flattened, zero-padded image rows)
    w_i:     (Kp, Np)   bf16, lane/sublane padded, resident in VMEM
    b_i:     (1,  Np)   f32
    recon:   (TB, 896)  f32   z: (TB, 128) f32
    """
    n = len(acts)
    w_refs = refs[:n]
    b_refs = refs[n:2 * n]
    recon_ref = refs[2 * n]
    z_ref = refs[2 * n + 1]

    h = x_ref[...].astype(jnp.bfloat16)
    y = None
    for li in range(n):
        # MXU matmul in bf16 with f32 accumulation.
        y = jnp.dot(h, w_refs[li][...], preferred_element_type=jnp.float32)
        y = y + b_refs[li][...]
        act = acts[li]
        if act == "relu":
            y = jnp.maximum(y, 0.0)
        elif act == "tanh":
            y = jnp.tanh(y)
        if li == z_layer:
            z_ref[...] = y.astype(z_ref.dtype)  # latent (post-tanh), lane-dense
        h = y.astype(jnp.bfloat16)
    recon_ref[...] = y.astype(recon_ref.dtype)


# ------------------------- Parameter construction ------------------------- #

def _round_up(n, mult):
    return max(mult, ((n + mult - 1) // mult) * mult)


def _init_linear_padded(key, fan_in, fan_out):
    """PyTorch-style U(-1/sqrt(in), 1/sqrt(in)) init, zero-padded to lane
    multiples. Weights stored (in_p, out_p) bf16; bias (1, out_p) f32."""
    kw, kb = jax.random.split(key)
    bound = 1.0 / (float(fan_in) ** 0.5)
    w = jax.random.uniform(kw, (fan_in, fan_out), jnp.float32, -bound, bound)
    b = jax.random.uniform(kb, (fan_out,), jnp.float32, -bound, bound)
    in_p = _round_up(fan_in, 128)
    out_p = _round_up(fan_out, 128)
    wp = jnp.zeros((in_p, out_p), jnp.float32).at[:fan_in, :fan_out].set(w)
    bp = jnp.zeros((1, out_p), jnp.float32).at[0, :fan_out].set(b)
    return wp.astype(jnp.bfloat16), bp


def make_ae_params(latent, seed=0):
    key = jax.random.PRNGKey(seed)
    enc_dims = [(28 * 28, 512), (512, 256), (256, 128), (128, 32), (32, latent)]
    dec_dims = [(latent, 32), (32, 128), (128, 256), (256, 512), (512, 28 * 28)]
    keys = jax.random.split(key, len(enc_dims) + len(dec_dims))
    enc = [_init_linear_padded(keys[i], *enc_dims[i]) for i in range(len(enc_dims))]
    dec = [_init_linear_padded(keys[len(enc_dims) + i], *dec_dims[i])
           for i in range(len(dec_dims))]
    return {"encoder": enc, "decoder": dec}


# ------------------------------ AE forward -------------------------------- #

def ae_forward(params, x, latent):
    """x: (B, 1, 28, 28) f32 NCHW -> (recon (B, 1, 28, 28), z (B, latent))."""
    B = x.shape[0]
    # Flatten (the spec `Flatten` module): view as (B, 784). Pure reshape.
    h = x.reshape(B, -1)
    feat = h.shape[1]

    enc = params["encoder"]
    dec = params["decoder"]
    layers = list(enc) + list(dec)
    acts = ("relu", "relu", "relu", "relu", "tanh",
            "relu", "relu", "relu", "relu", "relu")
    z_layer = 4  # output of the tanh encoder layer is the latent code

    in_dim_p = layers[0][0].shape[0]        # 896
    out_dim_p = layers[-1][0].shape[1]      # 896
    z_dim_p = layers[z_layer][0].shape[1]   # 128

    # Batch tiling: TB rows per grid step.  128 matches the MXU M dimension
    # for big batches; tiny batches only pad up to an 8-row sublane multiple
    # so we don't waste 128 rows of MXU work per call.
    TB = 128 if B >= 128 else _round_up(B, 8)
    n_tiles = (B + TB - 1) // TB
    B_pad = n_tiles * TB
    x_pad = jnp.zeros((B_pad, in_dim_p), jnp.float32)
    x_pad = x_pad.at[:B, :feat].set(h)

    ws = [w for (w, _) in layers]
    bs = [b for (_, b) in layers]

    kernel = functools.partial(_ae_fused_kernel, acts=acts, z_layer=z_layer)

    # Weights/biases: constant index_map -> fetched once, resident in VMEM.
    w_specs = [pl.BlockSpec(w.shape, lambda i: (0, 0)) for w in ws]
    b_specs = [pl.BlockSpec(b.shape, lambda i: (0, 0)) for b in bs]

    flops = 2 * B_pad * sum(w.shape[0] * w.shape[1] for w in ws)
    bytes_accessed = (
        x_pad.size * 4
        + sum(w.size * 2 for w in ws) + sum(b.size * 4 for b in bs)
        + B_pad * (out_dim_p + z_dim_p) * 4
    )

    recon_pad, z_pad = pl.pallas_call(
        kernel,
        out_shape=(
            jax.ShapeDtypeStruct((B_pad, out_dim_p), jnp.float32),
            jax.ShapeDtypeStruct((B_pad, z_dim_p), jnp.float32),
        ),
        grid=(n_tiles,),
        in_specs=[pl.BlockSpec((TB, in_dim_p), lambda i: (i, 0))]
                 + w_specs + b_specs,
        out_specs=(
            pl.BlockSpec((TB, out_dim_p), lambda i: (i, 0)),
            pl.BlockSpec((TB, z_dim_p), lambda i: (i, 0)),
        ),
        compiler_params=pltpu.CompilerParams(
            # Batch tiles are independent -> shard across v7x's two TCs.
            dimension_semantics=("parallel",),
        ),
        cost_estimate=pl.CostEstimate(
            flops=flops, transcendentals=B_pad * z_dim_p,
            bytes_accessed=bytes_accessed),
    )(x_pad, *ws, *bs)

    recon = recon_pad[:B, :feat].reshape(B, 1, 28, 28)
    z = z_pad[:B, :latent]
    return recon, z


# --------------------------------- main ------------------------------------ #

if __name__ == "__main__":
    latent = 8
    batch = 2

    params = make_ae_params(latent, seed=0)

    key = jax.random.PRNGKey(0)
    x = jax.random.normal(key, (batch, 1, 28, 28), dtype=jnp.float32)

    fwd = jax.jit(functools.partial(ae_forward, latent=latent))
    recon, z = fwd(params, x)
    jax.block_until_ready(recon)
    jax.block_until_ready(z)

    assert recon.shape == (batch, 1, 28, 28)
    assert z.shape == (batch, latent)
    assert recon.dtype == jnp.float32 and z.dtype == jnp.float32
    # Sanity: decoder output is post-ReLU (non-negative), z is post-Tanh (|z|<=1).
    assert bool(jnp.all(recon >= 0.0))
    assert bool(jnp.all(jnp.abs(z) <= 1.0 + 1e-6))

    print("KERNEL_OK")
</pallas_src>

<mosaic_0001>
module attributes {stable_mosaic.version = 11 : i64} {
  func.func @_ae_fused_kernel(%arg0: i32, %arg1: memref<8x896xf32, #tpu.memory_space<vmem>>, %arg2: memref<896x512xbf16, #tpu.memory_space<vmem>>, %arg3: memref<512x256xbf16, #tpu.memory_space<vmem>>, %arg4: memref<256x128xbf16, #tpu.memory_space<vmem>>, %arg5: memref<128x128xbf16, #tpu.memory_space<vmem>>, %arg6: memref<128x128xbf16, #tpu.memory_space<vmem>>, %arg7: memref<128x128xbf16, #tpu.memory_space<vmem>>, %arg8: memref<128x128xbf16, #tpu.memory_space<vmem>>, %arg9: memref<128x256xbf16, #tpu.memory_space<vmem>>, %arg10: memref<256x512xbf16, #tpu.memory_space<vmem>>, %arg11: memref<512x896xbf16, #tpu.memory_space<vmem>>, %arg12: memref<1x512xf32, #tpu.memory_space<vmem>>, %arg13: memref<1x256xf32, #tpu.memory_space<vmem>>, %arg14: memref<1x128xf32, #tpu.memory_space<vmem>>, %arg15: memref<1x128xf32, #tpu.memory_space<vmem>>, %arg16: memref<1x128xf32, #tpu.memory_space<vmem>>, %arg17: memref<1x128xf32, #tpu.memory_space<vmem>>, %arg18: memref<1x128xf32, #tpu.memory_space<vmem>>, %arg19: memref<1x256xf32, #tpu.memory_space<vmem>>, %arg20: memref<1x512xf32, #tpu.memory_space<vmem>>, %arg21: memref<1x896xf32, #tpu.memory_space<vmem>>, %arg22: memref<8x896xf32, #tpu.memory_space<vmem>>, %arg23: memref<8x128xf32, #tpu.memory_space<vmem>>) attributes {dimension_semantics = [#tpu.dimension_semantics<parallel>], iteration_bounds = array<i64: 1>, scalar_prefetch = 0 : i64, scratch_operands = 0 : i64, tpu.core_type = #tpu.core_type<tc>, window_params = [{transform_indices = @transform_0, window_bounds = array<i64: 8, 896>}, {pipeline_mode = #tpu.pipeline_mode<synchronous>, transform_indices = @transform_1, window_bounds = array<i64: 896, 512>}, {pipeline_mode = #tpu.pipeline_mode<synchronous>, transform_indices = @transform_2, window_bounds = array<i64: 512, 256>}, {pipeline_mode = #tpu.pipeline_mode<synchronous>, transform_indices = @transform_3, window_bounds = array<i64: 256, 128>}, {pipeline_mode = #tpu.pipeline_mode<synchronous>, transform_indices = @transform_4, window_bounds = array<i64: 128, 128>}, {pipeline_mode = #tpu.pipeline_mode<synchronous>, transform_indices = @transform_5, window_bounds = array<i64: 128, 128>}, {pipeline_mode = #tpu.pipeline_mode<synchronous>, transform_indices = @transform_6, window_bounds = array<i64: 128, 128>}, {pipeline_mode = #tpu.pipeline_mode<synchronous>, transform_indices = @transform_7, window_bounds = array<i64: 128, 128>}, {pipeline_mode = #tpu.pipeline_mode<synchronous>, transform_indices = @transform_8, window_bounds = array<i64: 128, 256>}, {pipeline_mode = #tpu.pipeline_mode<synchronous>, transform_indices = @transform_9, window_bounds = array<i64: 256, 512>}, {pipeline_mode = #tpu.pipeline_mode<synchronous>, transform_indices = @transform_10, window_bounds = array<i64: 512, 896>}, {pipeline_mode = #tpu.pipeline_mode<synchronous>, transform_indices = @transform_11, window_bounds = array<i64: 1, 512>}, {pipeline_mode = #tpu.pipeline_mode<synchronous>, transform_indices = @transform_12, window_bounds = array<i64: 1, 256>}, {pipeline_mode = #tpu.pipeline_mode<synchronous>, transform_indices = @transform_13, window_bounds = array<i64: 1, 128>}, {pipeline_mode = #tpu.pipeline_mode<synchronous>, transform_indices = @transform_14, window_bounds = array<i64: 1, 128>}, {pipeline_mode = #tpu.pipeline_mode<synchronous>, transform_indices = @transform_15, window_bounds = array<i64: 1, 128>}, {pipeline_mode = #tpu.pipeline_mode<synchronous>, transform_indices = @transform_16, window_bounds = array<i64: 1, 128>}, {pipeline_mode = #tpu.pipeline_mode<synchronous>, transform_indices = @transform_17, window_bounds = array<i64: 1, 128>}, {pipeline_mode = #tpu.pipeline_mode<synchronous>, transform_indices = @transform_18, window_bounds = array<i64: 1, 256>}, {pipeline_mode = #tpu.pipeline_mode<synchronous>, transform_indices = @transform_19, window_bounds = array<i64: 1, 512>}, {pipeline_mode = #tpu.pipeline_mode<synchronous>, transform_indices = @transform_20, window_bounds = array<i64: 1, 896>}, {transform_indices = @transform_21, window_bounds = array<i64: 8, 896>}, {transform_indices = @transform_22, window_bounds = array<i64: 8, 128>}]} {
    %c0 = arith.constant 0 : index
    %c0_0 = arith.constant 0 : index
    %0 = vector.load %arg1[%c0, %c0_0] : memref<8x896xf32, #tpu.memory_space<vmem>>, vector<8x896xf32>
    %1 = arith.truncf %0 : vector<8x896xf32> to vector<8x896xbf16>
    %c0_1 = arith.constant 0 : index
    %c0_2 = arith.constant 0 : index
    %2 = vector.load %arg2[%c0_1, %c0_2] : memref<896x512xbf16, #tpu.memory_space<vmem>>, vector<896x512xbf16>
    %cst = arith.constant dense<0.000000e+00> : vector<8x512xf32>
    %3 = tpu.matmul %1, %2, %cst {dimension_numbers = #tpu.dot_dimension_numbers<[1], [0], [0], [1], [0, 0, 1, 1], [], []>} : vector<8x896xbf16>, vector<896x512xbf16>, vector<8x512xf32> -> vector<8x512xf32>
    %c0_3 = arith.constant 0 : index
    %c0_4 = arith.constant 0 : index
    %4 = vector.load %arg12[%c0_3, %c0_4] : memref<1x512xf32, #tpu.memory_space<vmem>>, vector<1x512xf32>
    %5 = vector.broadcast %4 : vector<1x512xf32> to vector<8x512xf32>
    %6 = arith.addf %3, %5 : vector<8x512xf32>
    %cst_5 = arith.constant 0.000000e+00 : f32
    %7 = vector.broadcast %cst_5 : f32 to vector<8x512xf32>
    %8 = arith.maximumf %6, %7 : vector<8x512xf32>
    %9 = arith.truncf %8 : vector<8x512xf32> to vector<8x512xbf16>
    %c0_6 = arith.constant 0 : index
    %c0_7 = arith.constant 0 : index
    %10 = vector.load %arg3[%c0_6, %c0_7] : memref<512x256xbf16, #tpu.memory_space<vmem>>, vector<512x256xbf16>
    %cst_8 = arith.constant dense<0.000000e+00> : vector<8x256xf32>
    %11 = tpu.matmul %9, %10, %cst_8 {dimension_numbers = #tpu.dot_dimension_numbers<[1], [0], [0], [1], [0, 0, 1, 1], [], []>} : vector<8x512xbf16>, vector<512x256xbf16>, vector<8x256xf32> -> vector<8x256xf32>
    %c0_9 = arith.constant 0 : index
    %c0_10 = arith.constant 0 : index
    %12 = vector.load %arg13[%c0_9, %c0_10] : memref<1x256xf32, #tpu.memory_space<vmem>>, vector<1x256xf32>
    %13 = vector.broadcast %12 : vector<1x256xf32> to vector<8x256xf32>
    %14 = arith.addf %11, %13 : vector<8x256xf32>
    %cst_11 = arith.constant 0.000000e+00 : f32
    %15 = vector.broadcast %cst_11 : f32 to vector<8x256xf32>
    %16 = arith.maximumf %14, %15 : vector<8x256xf32>
    %17 = arith.truncf %16 : vector<8x256xf32> to vector<8x256xbf16>
    %c0_12 = arith.constant 0 : index
    %c0_13 = arith.constant 0 : index
    %18 = vector.load %arg4[%c0_12, %c0_13] : memref<256x128xbf16, #tpu.memory_space<vmem>>, vector<256x128xbf16>
    %cst_14 = arith.constant dense<0.000000e+00> : vector<8x128xf32>
    %19 = tpu.matmul %17, %18, %cst_14 {dimension_numbers = #tpu.dot_dimension_numbers<[1], [0], [0], [1], [0, 0, 1, 1], [], []>} : vector<8x256xbf16>, vector<256x128xbf16>, vector<8x128xf32> -> vector<8x128xf32>
    %c0_15 = arith.constant 0 : index
    %c0_16 = arith.constant 0 : index
    %20 = vector.load %arg14[%c0_15, %c0_16] : memref<1x128xf32, #tpu.memory_space<vmem>>, vector<1x128xf32>
    %21 = vector.broadcast %20 : vector<1x128xf32> to vector<8x128xf32>
    %22 = arith.addf %19, %21 : vector<8x128xf32>
    %cst_17 = arith.constant 0.000000e+00 : f32
    %23 = vector.broadcast %cst_17 : f32 to vector<8x128xf32>
    %24 = arith.maximumf %22, %23 : vector<8x128xf32>
    %25 = arith.truncf %24 : vector<8x128xf32> to vector<8x128xbf16>
    %c0_18 = arith.constant 0 : index
    %c0_19 = arith.constant 0 : index
    %26 = vector.load %arg5[%c0_18, %c0_19] : memref<128x128xbf16, #tpu.memory_space<vmem>>, vector<128x128xbf16>
    %cst_20 = arith.constant dense<0.000000e+00> : vector<8x128xf32>
    %27 = tpu.matmul %25, %26, %cst_20 {dimension_numbers = #tpu.dot_dimension_numbers<[1], [0], [0], [1], [0, 0, 1, 1], [], []>} : vector<8x128xbf16>, vector<128x128xbf16>, vector<8x128xf32> -> vector<8x128xf32>
    %c0_21 = arith.constant 0 : index
    %c0_22 = arith.constant 0 : index
    %28 = vector.load %arg15[%c0_21, %c0_22] : memref<1x128xf32, #tpu.memory_space<vmem>>, vector<1x128xf32>
    %29 = vector.broadcast %28 : vector<1x128xf32> to vector<8x128xf32>
    %30 = arith.addf %27, %29 : vector<8x128xf32>
    %cst_23 = arith.constant 0.000000e+00 : f32
    %31 = vector.broadcast %cst_23 : f32 to vector<8x128xf32>
    %32 = arith.maximumf %30, %31 : vector<8x128xf32>
    %33 = arith.truncf %32 : vector<8x128xf32> to vector<8x128xbf16>
    %c0_24 = arith.constant 0 : index
    %c0_25 = arith.constant 0 : index
    %34 = vector.load %arg6[%c0_24, %c0_25] : memref<128x128xbf16, #tpu.memory_space<vmem>>, vector<128x128xbf16>
    %cst_26 = arith.constant dense<0.000000e+00> : vector<8x128xf32>
    %35 = tpu.matmul %33, %34, %cst_26 {dimension_numbers = #tpu.dot_dimension_numbers<[1], [0], [0], [1], [0, 0, 1, 1], [], []>} : vector<8x128xbf16>, vector<128x128xbf16>, vector<8x128xf32> -> vector<8x128xf32>
    %c0_27 = arith.constant 0 : index
    %c0_28 = arith.constant 0 : index
    %36 = vector.load %arg16[%c0_27, %c0_28] : memref<1x128xf32, #tpu.memory_space<vmem>>, vector<1x128xf32>
    %37 = vector.broadcast %36 : vector<1x128xf32> to vector<8x128xf32>
    %38 = arith.addf %35, %37 : vector<8x128xf32>
    %39 = math.tanh %38 : vector<8x128xf32>
    %c0_29 = arith.constant 0 : index
    %c0_30 = arith.constant 0 : index
    %40 = vector.load %arg23[%c0_29, %c0_30] : memref<8x128xf32, #tpu.memory_space<vmem>>, vector<8x128xf32>
    tpu.vector_store %arg23[%c0_29, %c0_30], %39 {strides = array<i32>} : memref<8x128xf32, #tpu.memory_space<vmem>>, vector<8x128xf32>,
    %41 = arith.truncf %39 : vector<8x128xf32> to vector<8x128xbf16>
    %c0_31 = arith.constant 0 : index
    %c0_32 = arith.constant 0 : index
    %42 = vector.load %arg7[%c0_31, %c0_32] : memref<128x128xbf16, #tpu.memory_space<vmem>>, vector<128x128xbf16>
    %cst_33 = arith.constant dense<0.000000e+00> : vector<8x128xf32>
    %43 = tpu.matmul %41, %42, %cst_33 {dimension_numbers = #tpu.dot_dimension_numbers<[1], [0], [0], [1], [0, 0, 1, 1], [], []>} : vector<8x128xbf16>, vector<128x128xbf16>, vector<8x128xf32> -> vector<8x128xf32>
    %c0_34 = arith.constant 0 : index
    %c0_35 = arith.constant 0 : index
    %44 = vector.load %arg17[%c0_34, %c0_35] : memref<1x128xf32, #tpu.memory_space<vmem>>, vector<1x128xf32>
    %45 = vector.broadcast %44 : vector<1x128xf32> to vector<8x128xf32>
    %46 = arith.addf %43, %45 : vector<8x128xf32>
    %cst_36 = arith.constant 0.000000e+00 : f32
    %47 = vector.broadcast %cst_36 : f32 to vector<8x128xf32>
    %48 = arith.maximumf %46, %47 : vector<8x128xf32>
    %49 = arith.truncf %48 : vector<8x128xf32> to vector<8x128xbf16>
    %c0_37 = arith.constant 0 : index
    %c0_38 = arith.constant 0 : index
    %50 = vector.load %arg8[%c0_37, %c0_38] : memref<128x128xbf16, #tpu.memory_space<vmem>>, vector<128x128xbf16>
    %cst_39 = arith.constant dense<0.000000e+00> : vector<8x128xf32>
    %51 = tpu.matmul %49, %50, %cst_39 {dimension_numbers = #tpu.dot_dimension_numbers<[1], [0], [0], [1], [0, 0, 1, 1], [], []>} : vector<8x128xbf16>, vector<128x128xbf16>, vector<8x128xf32> -> vector<8x128xf32>
    %c0_40 = arith.constant 0 : index
    %c0_41 = arith.constant 0 : index
    %52 = vector.load %arg18[%c0_40, %c0_41] : memref<1x128xf32, #tpu.memory_space<vmem>>, vector<1x128xf32>
    %53 = vector.broadcast %52 : vector<1x128xf32> to vector<8x128xf32>
    %54 = arith.addf %51, %53 : vector<8x128xf32>
    %cst_42 = arith.constant 0.000000e+00 : f32
    %55 = vector.broadcast %cst_42 : f32 to vector<8x128xf32>
    %56 = arith.maximumf %54, %55 : vector<8x128xf32>
    %57 = arith.truncf %56 : vector<8x128xf32> to vector<8x128xbf16>
    %c0_43 = arith.constant 0 : index
    %c0_44 = arith.constant 0 : index
    %58 = vector.load %arg9[%c0_43, %c0_44] : memref<128x256xbf16, #tpu.memory_space<vmem>>, vector<128x256xbf16>
    %cst_45 = arith.constant dense<0.000000e+00> : vector<8x256xf32>
    %59 = tpu.matmul %57, %58, %cst_45 {dimension_numbers = #tpu.dot_dimension_numbers<[1], [0], [0], [1], [0, 0, 1, 1], [], []>} : vector<8x128xbf16>, vector<128x256xbf16>, vector<8x256xf32> -> vector<8x256xf32>
    %c0_46 = arith.constant 0 : index
    %c0_47 = arith.constant 0 : index
    %60 = vector.load %arg19[%c0_46, %c0_47] : memref<1x256xf32, #tpu.memory_space<vmem>>, vector<1x256xf32>
    %61 = vector.broadcast %60 : vector<1x256xf32> to vector<8x256xf32>
    %62 = arith.addf %59, %61 : vector<8x256xf32>
    %cst_48 = arith.constant 0.000000e+00 : f32
    %63 = vector.broadcast %cst_48 : f32 to vector<8x256xf32>
    %64 = arith.maximumf %62, %63 : vector<8x256xf32>
    %65 = arith.truncf %64 : vector<8x256xf32> to vector<8x256xbf16>
    %c0_49 = arith.constant 0 : index
    %c0_50 = arith.constant 0 : index
    %66 = vector.load %arg10[%c0_49, %c0_50] : memref<256x512xbf16, #tpu.memory_space<vmem>>, vector<256x512xbf16>
    %cst_51 = arith.constant dense<0.000000e+00> : vector<8x512xf32>
    %67 = tpu.matmul %65, %66, %cst_51 {dimension_numbers = #tpu.dot_dimension_numbers<[1], [0], [0], [1], [0, 0, 1, 1], [], []>} : vector<8x256xbf16>, vector<256x512xbf16>, vector<8x512xf32> -> vector<8x512xf32>
    %c0_52 = arith.constant 0 : index
    %c0_53 = arith.constant 0 : index
    %68 = vector.load %arg20[%c0_52, %c0_53] : memref<1x512xf32, #tpu.memory_space<vmem>>, vector<1x512xf32>
    %69 = vector.broadcast %68 : vector<1x512xf32> to vector<8x512xf32>
    %70 = arith.addf %67, %69 : vector<8x512xf32>
    %cst_54 = arith.constant 0.000000e+00 : f32
    %71 = vector.broadcast %cst_54 : f32 to vector<8x512xf32>
    %72 = arith.maximumf %70, %71 : vector<8x512xf32>
    %73 = arith.truncf %72 : vector<8x512xf32> to vector<8x512xbf16>
    %c0_55 = arith.constant 0 : index
    %c0_56 = arith.constant 0 : index
    %74 = vector.load %arg11[%c0_55, %c0_56] : memref<512x896xbf16, #tpu.memory_space<vmem>>, vector<512x896xbf16>
    %cst_57 = arith.constant dense<0.000000e+00> : vector<8x896xf32>
    %75 = tpu.matmul %73, %74, %cst_57 {dimension_numbers = #tpu.dot_dimension_numbers<[1], [0], [0], [1], [0, 0, 1, 1], [], []>} : vector<8x512xbf16>, vector<512x896xbf16>, vector<8x896xf32> -> vector<8x896xf32>
    %c0_58 = arith.constant 0 : index
    %c0_59 = arith.constant 0 : index
    %76 = vector.load %arg21[%c0_58, %c0_59] : memref<1x896xf32, #tpu.memory_space<vmem>>, vector<1x896xf32>
    %77 = vector.broadcast %76 : vector<1x896xf32> to vector<8x896xf32>
    %78 = arith.addf %75, %77 : vector<8x896xf32>
    %cst_60 = arith.constant 0.000000e+00 : f32
    %79 = vector.broadcast %cst_60 : f32 to vector<8x896xf32>
    %80 = arith.maximumf %78, %79 : vector<8x896xf32>
    %c0_61 = arith.constant 0 : index
    %c0_62 = arith.constant 0 : index
    %81 = vector.load %arg22[%c0_61, %c0_62] : memref<8x896xf32, #tpu.memory_space<vmem>>, vector<8x896xf32>
    tpu.vector_store %arg22[%c0_61, %c0_62], %80 {strides = array<i32>} : memref<8x896xf32, #tpu.memory_space<vmem>>, vector<8x896xf32>,
    return
  }
  func.func @transform_0(%arg0: i32) -> (i32, i32) {
    %c0_i32 = arith.constant 0 : i32
    %c0_i32_0 = arith.constant 0 : i32
    return %arg0, %c0_i32 : i32, i32
  }
  func.func @transform_1(%arg0: i32) -> (i32, i32) {
    %c0_i32 = arith.constant 0 : i32
    %c0_i32_0 = arith.constant 0 : i32
    %c0_i32_1 = arith.constant 0 : i32
    return %c0_i32, %c0_i32_0 : i32, i32
  }
  func.func @transform_2(%arg0: i32) -> (i32, i32) {
    %c0_i32 = arith.constant 0 : i32
    %c0_i32_0 = arith.constant 0 : i32
    %c0_i32_1 = arith.constant 0 : i32
    return %c0_i32, %c0_i32_0 : i32, i32
  }
  func.func @transform_3(%arg0: i32) -> (i32, i32) {
    %c0_i32 = arith.constant 0 : i32
    %c0_i32_0 = arith.constant 0 : i32
    %c0_i32_1 = arith.constant 0 : i32
    return %c0_i32, %c0_i32_0 : i32, i32
  }
  func.func @transform_4(%arg0: i32) -> (i32, i32) {
    %c0_i32 = arith.constant 0 : i32
    %c0_i32_0 = arith.constant 0 : i32
    %c0_i32_1 = arith.constant 0 : i32
    return %c0_i32, %c0_i32_0 : i32, i32
  }
  func.func @transform_5(%arg0: i32) -> (i32, i32) {
    %c0_i32 = arith.constant 0 : i32
    %c0_i32_0 = arith.constant 0 : i32
    %c0_i32_1 = arith.constant 0 : i32
    return %c0_i32, %c0_i32_0 : i32, i32
  }
  func.func @transform_6(%arg0: i32) -> (i32, i32) {
    %c0_i32 = arith.constant 0 : i32
    %c0_i32_0 = arith.constant 0 : i32
    %c0_i32_1 = arith.constant 0 : i32
    return %c0_i32, %c0_i32_0 : i32, i32
  }
  func.func @transform_7(%arg0: i32) -> (i32, i32) {
    %c0_i32 = arith.constant 0 : i32
    %c0_i32_0 = arith.constant 0 : i32
    %c0_i32_1 = arith.constant 0 : i32
    return %c0_i32, %c0_i32_0 : i32, i32
  }
  func.func @transform_8(%arg0: i32) -> (i32, i32) {
    %c0_i32 = arith.constant 0 : i32
    %c0_i32_0 = arith.constant 0 : i32
    %c0_i32_1 = arith.constant 0 : i32
    return %c0_i32, %c0_i32_0 : i32, i32
  }
  func.func @transform_9(%arg0: i32) -> (i32, i32) {
    %c0_i32 = arith.constant 0 : i32
    %c0_i32_0 = arith.constant 0 : i32
    %c0_i32_1 = arith.constant 0 : i32
    return %c0_i32, %c0_i32_0 : i32, i32
  }
  func.func @transform_10(%arg0: i32) -> (i32, i32) {
    %c0_i32 = arith.constant 0 : i32
    %c0_i32_0 = arith.constant 0 : i32
    %c0_i32_1 = arith.constant 0 : i32
    return %c0_i32, %c0_i32_0 : i32, i32
  }
  func.func @transform_11(%arg0: i32) -> (i32, i32) {
    %c0_i32 = arith.constant 0 : i32
    %c0_i32_0 = arith.constant 0 : i32
    %c0_i32_1 = arith.constant 0 : i32
    return %c0_i32, %c0_i32_0 : i32, i32
  }
  func.func @transform_12(%arg0: i32) -> (i32, i32) {
    %c0_i32 = arith.constant 0 : i32
    %c0_i32_0 = arith.constant 0 : i32
    %c0_i32_1 = arith.constant 0 : i32
    return %c0_i32, %c0_i32_0 : i32, i32
  }
  func.func @transform_13(%arg0: i32) -> (i32, i32) {
    %c0_i32 = arith.constant 0 : i32
    %c0_i32_0 = arith.constant 0 : i32
    %c0_i32_1 = arith.constant 0 : i32
    return %c0_i32, %c0_i32_0 : i32, i32
  }
  func.func @transform_14(%arg0: i32) -> (i32, i32) {
    %c0_i32 = arith.constant 0 : i32
    %c0_i32_0 = arith.constant 0 : i32
    %c0_i32_1 = arith.constant 0 : i32
    return %c0_i32, %c0_i32_0 : i32, i32
  }
  func.func @transform_15(%arg0: i32) -> (i32, i32) {
    %c0_i32 = arith.constant 0 : i32
    %c0_i32_0 = arith.constant 0 : i32
    %c0_i32_1 = arith.constant 0 : i32
    return %c0_i32, %c0_i32_0 : i32, i32
  }
  func.func @transform_16(%arg0: i32) -> (i32, i32) {
    %c0_i32 = arith.constant 0 : i32
    %c0_i32_0 = arith.constant 0 : i32
    %c0_i32_1 = arith.constant 0 : i32
    return %c0_i32, %c0_i32_0 : i32, i32
  }
  func.func @transform_17(%arg0: i32) -> (i32, i32) {
    %c0_i32 = arith.constant 0 : i32
    %c0_i32_0 = arith.constant 0 : i32
    %c0_i32_1 = arith.constant 0 : i32
    return %c0_i32, %c0_i32_0 : i32, i32
  }
  func.func @transform_18(%arg0: i32) -> (i32, i32) {
    %c0_i32 = arith.constant 0 : i32
    %c0_i32_0 = arith.constant 0 : i32
    %c0_i32_1 = arith.constant 0 : i32
    return %c0_i32, %c0_i32_0 : i32, i32
  }
  func.func @transform_19(%arg0: i32) -> (i32, i32) {
    %c0_i32 = arith.constant 0 : i32
    %c0_i32_0 = arith.constant 0 : i32
    %c0_i32_1 = arith.constant 0 : i32
    return %c0_i32, %c0_i32_0 : i32, i32
  }
  func.func @transform_20(%arg0: i32) -> (i32, i32) {
    %c0_i32 = arith.constant 0 : i32
    %c0_i32_0 = arith.constant 0 : i32
    %c0_i32_1 = arith.constant 0 : i32
    return %c0_i32, %c0_i32_0 : i32, i32
  }
  func.func @transform_21(%arg0: i32) -> (i32, i32) {
    %c0_i32 = arith.constant 0 : i32
    %c0_i32_0 = arith.constant 0 : i32
    return %arg0, %c0_i32 : i32, i32
  }
  func.func @transform_22(%arg0: i32) -> (i32, i32) {
    %c0_i32 = arith.constant 0 : i32
    %c0_i32_0 = arith.constant 0 : i32
    return %arg0, %c0_i32 : i32, i32
  }
}

</mosaic_0001>

<llo_original>
// kernel: ae_forward.1
$region0: #{ae_forward.1}
  #allocation0 [shape = 'u32[]', space=smem, size = 0x4, offset = 0x4, fixed_abs, tag = 'smem constant byte address 0x4 - core index']
  #allocation1 [shape = 'u32[144,128]{1,0:T(1,128)}', space=vmem, size = 0x12000, scoped, tag = 'internal scratch']
  %s0 = inlined_call_operand.vmem [shape: f32[8,896], index: 0, kind: input, shape index: {}]
  %s1 = inlined_call_operand.hbm [shape: bf16[896,512], index: 1, kind: input, shape index: {}]
  %s2 = inlined_call_operand.hbm [shape: bf16[512,256], index: 2, kind: input, shape index: {}]
  %s3 = inlined_call_operand.vmem [shape: bf16[256,128], index: 3, kind: input, shape index: {}]
  %s4 = inlined_call_operand.vmem [shape: bf16[128,128], index: 4, kind: input, shape index: {}]
  %s5 = inlined_call_operand.hbm [shape: bf16[128,128], index: 5, kind: input, shape index: {}]
  %s6 = inlined_call_operand.hbm [shape: bf16[128,128], index: 6, kind: input, shape index: {}]
  %s7 = inlined_call_operand.hbm [shape: bf16[128,128], index: 7, kind: input, shape index: {}]
  %s8 = inlined_call_operand.vmem [shape: bf16[128,256], index: 8, kind: input, shape index: {}]
  %s9 = inlined_call_operand.hbm [shape: bf16[256,512], index: 9, kind: input, shape index: {}]
  %s10 = inlined_call_operand.hbm [shape: bf16[512,896], index: 10, kind: input, shape index: {}]
  %s11 = inlined_call_operand.hbm [shape: f32[1,512], index: 11, kind: input, shape index: {}]
  %s12 = inlined_call_operand.vmem [shape: f32[1,256], index: 12, kind: input, shape index: {}]
  %s13 = inlined_call_operand.vmem [shape: f32[1,128], index: 13, kind: input, shape index: {}]
  %s14 = inlined_call_operand.vmem [shape: f32[1,128], index: 14, kind: input, shape index: {}]
  %s15 = inlined_call_operand.vmem [shape: f32[1,128], index: 15, kind: input, shape index: {}]
  %s16 = inlined_call_operand.hbm [shape: f32[1,128], index: 16, kind: input, shape index: {}]
  %s17 = inlined_call_operand.hbm [shape: f32[1,128], index: 17, kind: input, shape index: {}]
  %s18 = inlined_call_operand.hbm [shape: f32[1,256], index: 18, kind: input, shape index: {}]
  %s19 = inlined_call_operand.hbm [shape: f32[1,512], index: 19, kind: input, shape index: {}]
  %s20 = inlined_call_operand.hbm [shape: f32[1,896], index: 20, kind: input, shape index: {}]
  %s21 = inlined_call_operand.vmem [shape: f32[8,896], index: 21, kind: output, shape index: {0}]
  %s22 = inlined_call_operand.vmem [shape: f32[8,128], index: 22, kind: output, shape index: {1}]
  %23 = xla_tuple %s21, %s22
  %s24 = sld [smem:[#allocation0]]
  $region154: #{ae_forward.1} parent=0
    _
  %s26 = ssub.s32 1, %s24
  %s27 = scalar_select 0, %s26, %s24
  $region1: #{ae_forward.1} parent=0
    #allocation2 [shape = 'u8[917504]{0}', space=vmem, size = 0xe0000, scoped, tag = 'input window, operand 1, single buffered']
    #allocation3 [shape = 's32[1]{0}', space=sflag, size = 0x4, scoped, tag = 'scoped memory for ae_forward.1']
    #allocation4 [shape = 'u8[262144]{0}', space=vmem, size = 0x40000, scoped, tag = 'input window, operand 2, single buffered']
    #allocation5 [shape = 's32[1]{0}', space=sflag, size = 0x4, scoped, tag = 'scoped memory for ae_forward.1']
    #allocation6 [shape = 'u8[32768]{0}', space=vmem, size = 0x8000, scoped, tag = 'input window, operand 5, single buffered']
    #allocation7 [shape = 'u8[32768]{0}', space=vmem, size = 0x8000, scoped, tag = 'input window, operand 6, single buffered']
    #allocation8 [shape = 's32[1]{0}', space=sflag, size = 0x4, scoped, tag = 'scoped memory for ae_forward.1']
    #allocation9 [shape = 'u8[32768]{0}', space=vmem, size = 0x8000, scoped, tag = 'input window, operand 7, single buffered']
    #allocation10 [shape = 'u8[262144]{0}', space=vmem, size = 0x40000, scoped, tag = 'input window, operand 9, single buffered']
    #allocation11 [shape = 's32[1]{0}', space=sflag, size = 0x4, scoped, tag = 'scoped memory for ae_forward.1']
    #allocation12 [shape = 'u8[917504]{0}', space=vmem, size = 0xe0000, scoped, tag = 'input window, operand 10, single buffered']
    #allocation13 [shape = 'u8[2048]{0}', space=vmem, size = 0x800, scoped, tag = 'input window, operand 11, single buffered']
    #allocation14 [shape = 's32[1]{0}', space=sflag, size = 0x4, scoped, tag = 'scoped memory for ae_forward.1']
    #allocation15 [shape = 'u8[512]{0}', space=vmem, size = 0x400, scoped, tag = 'input window, operand 16, single buffered']
    #allocation16 [shape = 'u8[512]{0}', space=vmem, size = 0x400, scoped, tag = 'input window, operand 17, single buffered']
    #allocation17 [shape = 's32[1]{0}', space=sflag, size = 0x4, scoped, tag = 'scoped memory for ae_forward.1']
    #allocation18 [shape = 'u8[1024]{0}', space=vmem, size = 0x400, scoped, tag = 'input window, operand 18, single buffered']
    #allocation19 [shape = 'u8[2048]{0}', space=vmem, size = 0x800, scoped, tag = 'input window, operand 19, single buffered']
    #allocation20 [shape = 's32[1]{0}', space=sflag, size = 0x4, scoped, tag = 'scoped memory for ae_forward.1']
    #allocation21 [shape = 'u8[3584]{0}', space=vmem, size = 0x1000, scoped, tag = 'input window, operand 20, single buffered']
    %28 = vsyncpa [#allocation3], 0
    %29 = vsyncpa [#allocation5], 0
    %30 = vsyncpa [#allocation8], 0
    %31 = vsyncpa [#allocation11], 0
    %32 = vsyncpa [#allocation14], 0
    %33 = vsyncpa [#allocation17], 0
    %34 = vsyncpa [#allocation20], 0
    // Predicated region
    $region2: #{ae_forward.1} parent=1 // pred_check
      _
    $region3: #{ae_forward.1} parent=1 // pred_check_branch
      %36 = sbr.rel (0) target = $region5
    $region4: #{ae_forward.1} parent=1 // pred_region
      _
    $region5: #{ae_forward.1} parent=1 // pred_fallthru
      _
    // Predicated region
    $region6: #{ae_forward.1} parent=1 // pred_check
      _
    $region7: #{ae_forward.1} parent=1 // pred_check_branch
      %38 = sbr.rel (0) target = $region9
    $region8: #{ae_forward.1} parent=1 // pred_region
      %s40 = ssub.s32 28672, 28672
      %41 = vsyncadd [#allocation3], %s40
      %s42 = sshll.u32 [#allocation2], 4
      %s43 = int_to_ptr.vmem [resolvable:$true] %s42
      %48 = dma.hbm_to_vmem [thread:$0]  %s1, 28672, %s43, [#allocation3], 256, 256, 16
    $region9: #{ae_forward.1} parent=1 // pred_fallthru
      _
    // Predicated region
    $region10: #{ae_forward.1} parent=1 // pred_check
      _
    $region11: #{ae_forward.1} parent=1 // pred_check_branch
      %50 = sbr.rel (0) target = $region13
    $region12: #{ae_forward.1} parent=1 // pred_region
      %s52 = ssub.s32 8192, 8192
      %53 = vsyncadd [#allocation5], %s52
      %s54 = sshll.u32 [#allocation4], 4
      %s55 = int_to_ptr.vmem [resolvable:$true] %s54
      %60 = dma.hbm_to_vmem [thread:$0]  %s2, 8192, %s55, [#allocation5], 128, 128, 8
    $region13: #{ae_forward.1} parent=1 // pred_fallthru
      _
    // Predicated region
    $region14: #{ae_forward.1} parent=1 // pred_check
      _
    $region15: #{ae_forward.1} parent=1 // pred_check_branch
      %62 = sbr.rel (0) target = $region17
    $region16: #{ae_forward.1} parent=1 // pred_region
      _
    $region17: #{ae_forward.1} parent=1 // pred_fallthru
      _
    // Predicated region
    $region18: #{ae_forward.1} parent=1 // pred_check
      _
    $region19: #{ae_forward.1} parent=1 // pred_check_branch
      %64 = sbr.rel (0) target = $region21
    $region20: #{ae_forward.1} parent=1 // pred_region
      _
    $region21: #{ae_forward.1} parent=1 // pred_fallthru
      _
    // Predicated region
    $region22: #{ae_forward.1} parent=1 // pred_check
      _
    $region23: #{ae_forward.1} parent=1 // pred_check_branch
      %66 = sbr.rel (0) target = $region25
    $region24: #{ae_forward.1} parent=1 // pred_region
      %s68 = ssub.s32 1024, 1024
      %69 = vsyncadd [#allocation5], %s68
      %s70 = sshll.u32 [#allocation6], 4
      %s71 = int_to_ptr.vmem [resolvable:$true] %s70
      %76 = dma.hbm_to_vmem [thread:$0]  %s5, 1024, %s71, [#allocation5], 64, 64, 4
    $region25: #{ae_forward.1} parent=1 // pred_fallthru
      _
    // Predicated region
    $region26: #{ae_forward.1} parent=1 // pred_check
      _
    $region27: #{ae_forward.1} parent=1 // pred_check_branch
      %78 = sbr.rel (0) target = $region29
    $region28: #{ae_forward.1} parent=1 // pred_region
      %s80 = ssub.s32 1024, 1024
      %81 = vsyncadd [#allocation8], %s80
      %s82 = sshll.u32 [#allocation7], 4
      %s83 = int_to_ptr.vmem [resolvable:$true] %s82
      %88 = dma.hbm_to_vmem [thread:$0]  %s6, 1024, %s83, [#allocation8], 64, 64, 4
    $region29: #{ae_forward.1} parent=1 // pred_fallthru
      _
    // Predicated region
    $region30: #{ae_forward.1} parent=1 // pred_check
      _
    $region31: #{ae_forward.1} parent=1 // pred_check_branch
      %90 = sbr.rel (0) target = $region33
    $region32: #{ae_forward.1} parent=1 // pred_region
      %s92 = ssub.s32 1024, 1024
      %93 = vsyncadd [#allocation8], %s92
      %s94 = sshll.u32 [#allocation9], 4
      %s95 = int_to_ptr.vmem [resolvable:$true] %s94
      %100 = dma.hbm_to_vmem [thread:$0]  %s7, 1024, %s95, [#allocation8], 64, 64, 4
    $region33: #{ae_forward.1} parent=1 // pred_fallthru
      _
    // Predicated region
    $region34: #{ae_forward.1} parent=1 // pred_check
      _
    $region35: #{ae_forward.1} parent=1 // pred_check_branch
      %102 = sbr.rel (0) target = $region37
    $region36: #{ae_forward.1} parent=1 // pred_region
      _
    $region37: #{ae_forward.1} parent=1 // pred_fallthru
      _
    // Predicated region
    $region38: #{ae_forward.1} parent=1 // pred_check
      _
    $region39: #{ae_forward.1} parent=1 // pred_check_branch
      %104 = sbr.rel (0) target = $region41
    $region40: #{ae_forward.1} parent=1 // pred_region
      %s106 = ssub.s32 8192, 8192
      %107 = vsyncadd [#allocation11], %s106
      %s108 = sshll.u32 [#allocation10], 4
      %s109 = int_to_ptr.vmem [resolvable:$true] %s108
      %114 = dma.hbm_to_vmem [thread:$0]  %s9, 8192, %s109, [#allocation11], 256, 256, 16
    $region41: #{ae_forward.1} parent=1 // pred_fallthru
      _
    // Predicated region
    $region42: #{ae_forward.1} parent=1 // pred_check
      _
    $region43: #{ae_forward.1} parent=1 // pred_check_branch
      %116 = sbr.rel (0) target = $region45
    $region44: #{ae_forward.1} parent=1 // pred_region
      %s118 = ssub.s32 28672, 28672
      %119 = vsyncadd [#allocation11], %s118
      %s120 = sshll.u32 [#allocation12], 4
      %s121 = int_to_ptr.vmem [resolvable:$true] %s120
      %126 = dma.hbm_to_vmem [thread:$0]  %s10, 28672, %s121, [#allocation11], 448, 448, 28
    $region45: #{ae_forward.1} parent=1 // pred_fallthru
      _
    // Predicated region
    $region46: #{ae_forward.1} parent=1 // pred_check
      _
    $region47: #{ae_forward.1} parent=1 // pred_check_branch
      %128 = sbr.rel (0) target = $region49
    $region48: #{ae_forward.1} parent=1 // pred_region
      %s130 = ssub.s32 64, 64
      %131 = vsyncadd [#allocation14], %s130
      %s133 = sshll.u32 [#allocation13], 4
      %s134 = int_to_ptr.vmem [resolvable:$true] %s133
      %136 = dma.hbm_to_vmem [thread:$0]  %s11, 64, %s134, [#allocation14]
    $region49: #{ae_forward.1} parent=1 // pred_fallthru
      _
    // Predicated region
    $region50: #{ae_forward.1} parent=1 // pred_check
      _
    $region51: #{ae_forward.1} parent=1 // pred_check_branch
      %138 = sbr.rel (0) target = $region53
    $region52: #{ae_forward.1} parent=1 // pred_region
      _
    $region53: #{ae_forward.1} parent=1 // pred_fallthru
      _
    // Predicated region
    $region54: #{ae_forward.1} parent=1 // pred_check
      _
    $region55: #{ae_forward.1} parent=1 // pred_check_branch
      %140 = sbr.rel (0) target = $region57
    $region56: #{ae_forward.1} parent=1 // pred_region
      _
    $region57: #{ae_forward.1} parent=1 // pred_fallthru
      _
    // Predicated region
    $region58: #{ae_forward.1} parent=1 // pred_check
      _
    $region59: #{ae_forward.1} parent=1 // pred_check_branch
      %142 = sbr.rel (0) target = $region61
    $region60: #{ae_forward.1} parent=1 // pred_region
      _
    $region61: #{ae_forward.1} parent=1 // pred_fallthru
      _
    // Predicated region
    $region62: #{ae_forward.1} parent=1 // pred_check
      _
    $region63: #{ae_forward.1} parent=1 // pred_check_branch
      %144 = sbr.rel (0) target = $region65
    $region64: #{ae_forward.1} parent=1 // pred_region
      _
    $region65: #{ae_forward.1} parent=1 // pred_fallthru
      _
    // Predicated region
    $region66: #{ae_forward.1} parent=1 // pred_check
      _
    $region67: #{ae_forward.1} parent=1 // pred_check_branch
      %146 = sbr.rel (0) target = $region69
    $region68: #{ae_forward.1} parent=1 // pred_region
      %s148 = ssub.s32 16, 16
      %149 = vsyncadd [#allocation14], %s148
      %s151 = sshll.u32 [#allocation15], 4
      %s152 = int_to_ptr.vmem [resolvable:$true] %s151
      %154 = dma.hbm_to_vmem [thread:$0]  %s16, 16, %s152, [#allocation14]
    $region69: #{ae_forward.1} parent=1 // pred_fallthru
      _
    // Predicated region
    $region70: #{ae_forward.1} parent=1 // pred_check
      _
    $region71: #{ae_forward.1} parent=1 // pred_check_branch
      %156 = sbr.rel (0) target = $region73
    $region72: #{ae_forward.1} parent=1 // pred_region
      %s158 = ssub.s32 16, 16
      %159 = vsyncadd [#allocation17], %s158
      %s161 = sshll.u32 [#allocation16], 4
      %s162 = int_to_ptr.vmem [resolvable:$true] %s161
      %164 = dma.hbm_to_vmem [thread:$0]  %s17, 16, %s162, [#allocation17]
    $region73: #{ae_forward.1} parent=1 // pred_fallthru
      _
    // Predicated region
    $region74: #{ae_forward.1} parent=1 // pred_check
      _
    $region75: #{ae_forward.1} parent=1 // pred_check_branch
      %166 = sbr.rel (0) target = $region77
    $region76: #{ae_forward.1} parent=1 // pred_region
      %s168 = ssub.s32 32, 32
      %169 = vsyncadd [#allocation17], %s168
      %s171 = sshll.u32 [#allocation18], 4
      %s172 = int_to_ptr.vmem [resolvable:$true] %s171
      %174 = dma.hbm_to_vmem [thread:$0]  %s18, 32, %s172, [#allocation17]
    $region77: #{ae_forward.1} parent=1 // pred_fallthru
      _
    // Predicated region
    $region78: #{ae_forward.1} parent=1 // pred_check
      _
    $region79: #{ae_forward.1} parent=1 // pred_check_branch
      %176 = sbr.rel (0) target = $region81
    $region80: #{ae_forward.1} parent=1 // pred_region
      %s178 = ssub.s32 64, 64
      %179 = vsyncadd [#allocation20], %s178
      %s181 = sshll.u32 [#allocation19], 4
      %s182 = int_to_ptr.vmem [resolvable:$true] %s181
      %184 = dma.hbm_to_vmem [thread:$0]  %s19, 64, %s182, [#allocation20]
    $region81: #{ae_forward.1} parent=1 // pred_fallthru
      _
    // Predicated region
    $region82: #{ae_forward.1} parent=1 // pred_check
      _
    $region83: #{ae_forward.1} parent=1 // pred_check_branch
      %186 = sbr.rel (0) target = $region85
    $region84: #{ae_forward.1} parent=1 // pred_region
      %s188 = ssub.s32 112, 112
      %189 = vsyncadd [#allocation20], %s188
      %s191 = sshll.u32 [#allocation21], 4
      %s192 = int_to_ptr.vmem [resolvable:$true] %s191
      %194 = dma.hbm_to_vmem [thread:$0]  %s20, 112, %s192, [#allocation20]
    $region85: #{ae_forward.1} parent=1 // pred_fallthru
      _
    // Predicated region
    $region86: #{ae_forward.1} parent=1 // pred_check
      _
    $region87: #{ae_forward.1} parent=1 // pred_check_branch
      %196 = sbr.rel (0) target = $region89
    $region88: #{ae_forward.1} parent=1 // pred_region
      %197 = dma.done [#allocation3], 28672
    $region89: #{ae_forward.1} parent=1 // pred_fallthru
      _
    // Predicated region
    $region90: #{ae_forward.1} parent=1 // pred_check
      _
    $region91: #{ae_forward.1} parent=1 // pred_check_branch
      %199 = sbr.rel (0) target = $region93
    $region92: #{ae_forward.1} parent=1 // pred_region
      %200 = dma.done [#allocation5], 8192
    $region93: #{ae_forward.1} parent=1 // pred_fallthru
      _
    // Predicated region
    $region94: #{ae_forward.1} parent=1 // pred_check
      _
    $region95: #{ae_forward.1} parent=1 // pred_check_branch
      %202 = sbr.rel (0) target = $region97
    $region96: #{ae_forward.1} parent=1 // pred_region
      %203 = dma.done [#allocation5], 1024
    $region97: #{ae_forward.1} parent=1 // pred_fallthru
      _
    // Predicated region
    $region98: #{ae_forward.1} parent=1 // pred_check
      _
    $region99: #{ae_forward.1} parent=1 // pred_check_branch
      %205 = sbr.rel (0) target = $region101
    $region100: #{ae_forward.1} parent=1 // pred_region
      %206 = dma.done [#allocation8], 1024
    $region101: #{ae_forward.1} parent=1 // pred_fallthru
      _
    // Predicated region
    $region102: #{ae_forward.1} parent=1 // pred_check
      _
    $region103: #{ae_forward.1} parent=1 // pred_check_branch
      %208 = sbr.rel (0) target = $region105
    $region104: #{ae_forward.1} parent=1 // pred_region
      %209 = dma.done [#allocation8], 1024
    $region105: #{ae_forward.1} parent=1 // pred_fallthru
      _
    // Predicated region
    $region106: #{ae_forward.1} parent=1 // pred_check
      _
    $region107: #{ae_forward.1} parent=1 // pred_check_branch
      %211 = sbr.rel (0) target = $region109
    $region108: #{ae_forward.1} parent=1 // pred_region
      %212 = dma.done [#allocation11], 8192
    $region109: #{ae_forward.1} parent=1 // pred_fallthru
      _
    // Predicated region
    $region110: #{ae_forward.1} parent=1 // pred_check
      _
    $region111: #{ae_forward.1} parent=1 // pred_check_branch
      %214 = sbr.rel (0) target = $region113
    $region112: #{ae_forward.1} parent=1 // pred_region
      %215 = dma.done [#allocation11], 28672
    $region113: #{ae_forward.1} parent=1 // pred_fallthru
      _
    // Predicated region
    $region114: #{ae_forward.1} parent=1 // pred_check
      _
    $region115: #{ae_forward.1} parent=1 // pred_check_branch
      %217 = sbr.rel (0) target = $region117
    $region116: #{ae_forward.1} parent=1 // pred_region
      %218 = dma.done [#allocation14], 64
    $region117: #{ae_forward.1} parent=1 // pred_fallthru
      _
    // Predicated region
    $region118: #{ae_forward.1} parent=1 // pred_check
      _
    $region119: #{ae_forward.1} parent=1 // pred_check_branch
      %220 = sbr.rel (0) target = $region121
    $region120: #{ae_forward.1} parent=1 // pred_region
      %221 = dma.done [#allocation14], 16
    $region121: #{ae_forward.1} parent=1 // pred_fallthru
      _
    // Predicated region
    $region122: #{ae_forward.1} parent=1 // pred_check
      _
    $region123: #{ae_forward.1} parent=1 // pred_check_branch
      %223 = sbr.rel (0) target = $region125
    $region124: #{ae_forward.1} parent=1 // pred_region
      %224 = dma.done [#allocation17], 16
    $region125: #{ae_forward.1} parent=1 // pred_fallthru
      _
    // Predicated region
    $region126: #{ae_forward.1} parent=1 // pred_check
      _
    $region127: #{ae_forward.1} parent=1 // pred_check_branch
      %226 = sbr.rel (0) target = $region129
    $region128: #{ae_forward.1} parent=1 // pred_region
      %227 = dma.done [#allocation17], 32
    $region129: #{ae_forward.1} parent=1 // pred_fallthru
      _
    // Predicated region
    $region130: #{ae_forward.1} parent=1 // pred_check
      _
    $region131: #{ae_forward.1} parent=1 // pred_check_branch
      %229 = sbr.rel (0) target = $region133
    $region132: #{ae_forward.1} parent=1 // pred_region
      %230 = dma.done [#allocation20], 64
    $region133: #{ae_forward.1} parent=1 // pred_fallthru
      _
    // Predicated region
    $region134: #{ae_forward.1} parent=1 // pred_check
      _
    $region135: #{ae_forward.1} parent=1 // pred_check_branch
      %232 = sbr.rel (0) target = $region137
    $region136: #{ae_forward.1} parent=1 // pred_region
      %233 = dma.done [#allocation20], 112
    $region137: #{ae_forward.1} parent=1 // pred_fallthru
      _
    %v235 = vld [vmem:[%s0] sm:$0xff]
    %v236 = vld [vmem:[%s0 + $0x8] sm:$0xff]
    %v237 = vld [vmem:[%s0 + $0x10] sm:$0xff]
    %v238 = vld [vmem:[%s0 + $0x18] sm:$0xff]
    %v239 = vld [vmem:[%s0 + $0x20] sm:$0xff]
    %v240 = vld [vmem:[%s0 + $0x28] sm:$0xff]
    %v241 = vld [vmem:[%s0 + $0x30] sm:$0xff]
    %v242 = vpack.c.bf16 %v235, %v235
    %v243 = vpack.c.bf16 %v236, %v236
    %v244 = vpack.c.bf16 %v237, %v237
    %v245 = vpack.c.bf16 %v238, %v238
    %v246 = vpack.c.bf16 %v239, %v239
    %v247 = vpack.c.bf16 %v240, %v240
    %v248 = vpack.c.bf16 %v241, %v241
    %v249 = vld [vmem:[#allocation2] sm:$0xff]
    %v250 = vld [vmem:[#allocation2 + $0x8] sm:$0xff]
    %v251 = vld [vmem:[#allocation2 + $0x10] sm:$0xff]
    %v252 = vld [vmem:[#allocation2 + $0x18] sm:$0xff]
    %v253 = vld [vmem:[#allocation2 + $0x20] sm:$0xff]
    %v254 = vld [vmem:[#allocation2 + $0x28] sm:$0xff]
    %v255 = vld [vmem:[#allocation2 + $0x30] sm:$0xff]
    %v256 = vld [vmem:[#allocation2 + $0x38] sm:$0xff]
    %v257 = vld [vmem:[#allocation2 + $0x40] sm:$0xff]
    %v258 = vld [vmem:[#allocation2 + $0x48] sm:$0xff]
    %v259 = vld [vmem:[#allocation2 + $0x50] sm:$0xff]
    %v260 = vld [vmem:[#allocation2 + $0x58] sm:$0xff]
    %v261 = vld [vmem:[#allocation2 + $0x60] sm:$0xff]
    %v262 = vld [vmem:[#allocation2 + $0x68] sm:$0xff]
    %v263 = vld [vmem:[#allocation2 + $0x70] sm:$0xff]
    %v264 = vld [vmem:[#allocation2 + $0x78] sm:$0xff]
    %v265 = vld [vmem:[#allocation2 + $0x80] sm:$0xff]
    %v266 = vld [vmem:[#allocation2 + $0x88] sm:$0xff]
    %v267 = vld [vmem:[#allocation2 + $0x90] sm:$0xff]
    %v268 = vld [vmem:[#allocation2 + $0x98] sm:$0xff]
    %v269 = vld [vmem:[#allocation2 + $0xa0] sm:$0xff]
    %v270 = vld [vmem:[#allocation2 + $0xa8] sm:$0xff]
    %v271 = vld [vmem:[#allocation2 + $0xb0] sm:$0xff]
    %v272 = vld [vmem:[#allocation2 + $0xb8] sm:$0xff]
    %v273 = vld [vmem:[#allocation2 + $0xc0] sm:$0xff]
    %v274 = vld [vmem:[#allocation2 + $0xc8] sm:$0xff]
    %v275 = vld [vmem:[#allocation2 + $0xd0] sm:$0xff]
    %v276 = vld [vmem:[#allocation2 + $0xd8] sm:$0xff]
    %v277 = vld [vmem:[#allocation2 + $0xe0] sm:$0xff]
    %v278 = vld [vmem:[#allocation2 + $0xe8] sm:$0xff]
    %v279 = vld [vmem:[#allocation2 + $0xf0] sm:$0xff]
    %v280 = vld [vmem:[#allocation2 + $0xf8] sm:$0xff]
    %v281 = vld [vmem:[#allocation2 + $0x100] sm:$0xff]
    %v282 = vld [vmem:[#allocation2 + $0x108] sm:$0xff]
    %v283 = vld [vmem:[#allocation2 + $0x110] sm:$0xff]
    %v284 = vld [vmem:[#allocation2 + $0x118] sm:$0xff]
    %v285 = vld [vmem:[#allocation2 + $0x120] sm:$0xff]
    %v286 = vld [vmem:[#allocation2 + $0x128] sm:$0xff]
    %v287 = vld [vmem:[#allocation2 + $0x130] sm:$0xff]
    %v288 = vld [vmem:[#allocation2 + $0x138] sm:$0xff]
    %v289 = vld [vmem:[#allocation2 + $0x140] sm:$0xff]
    %v290 = vld [vmem:[#allocation2 + $0x148] sm:$0xff]
    %v291 = vld [vmem:[#allocation2 + $0x150] sm:$0xff]
    %v292 = vld [vmem:[#allocation2 + $0x158] sm:$0xff]
    %v293 = vld [vmem:[#allocation2 + $0x160] sm:$0xff]
    %v294 = vld [vmem:[#allocation2 + $0x168] sm:$0xff]
    %v295 = vld [vmem:[#allocation2 + $0x170] sm:$0xff]
    %v296 = vld [vmem:[#allocation2 + $0x178] sm:$0xff]
    %v297 = vld [vmem:[#allocation2 + $0x180] sm:$0xff]
    %v298 = vld [vmem:[#allocation2 + $0x188] sm:$0xff]
    %v299 = vld [vmem:[#allocation2 + $0x190] sm:$0xff]
    %v300 = vld [vmem:[#allocation2 + $0x198] sm:$0xff]
    %v301 = vld [vmem:[#allocation2 + $0x1a0] sm:$0xff]
    %v302 = vld [vmem:[#allocation2 + $0x1a8] sm:$0xff]
    %v303 = vld [vmem:[#allocation2 + $0x1b0] sm:$0xff]
    %v304 = vld [vmem:[#allocation2 + $0x1b8] sm:$0xff]
    %v305 = vld [vmem:[#allocation2 + $0x1c0] sm:$0xff]
    %v306 = vld [vmem:[#allocation2 + $0x1c8] sm:$0xff]
    %v307 = vld [vmem:[#allocation2 + $0x1d0] sm:$0xff]
    %v308 = vld [vmem:[#allocation2 + $0x1d8] sm:$0xff]
    %v309 = vld [vmem:[#allocation2 + $0x1e0] sm:$0xff]
    %v310 = vld [vmem:[#allocation2 + $0x1e8] sm:$0xff]
    %v311 = vld [vmem:[#allocation2 + $0x1f0] sm:$0xff]
    %v312 = vld [vmem:[#allocation2 + $0x1f8] sm:$0xff]
    %v313 = vld [vmem:[#allocation2 + $0x200] sm:$0xff]
    %v314 = vld [vmem:[#allocation2 + $0x208] sm:$0xff]
    %v315 = vld [vmem:[#allocation2 + $0x210] sm:$0xff]
    %v316 = vld [vmem:[#allocation2 + $0x218] sm:$0xff]
    %v317 = vld [vmem:[#allocation2 + $0x220] sm:$0xff]
    %v318 = vld [vmem:[#allocation2 + $0x228] sm:$0xff]
    %v319 = vld [vmem:[#allocation2 + $0x230] sm:$0xff]
    %v320 = vld [vmem:[#allocation2 + $0x238] sm:$0xff]
    %v321 = vld [vmem:[#allocation2 + $0x240] sm:$0xff]
    %v322 = vld [vmem:[#allocation2 + $0x248] sm:$0xff]
    %v323 = vld [vmem:[#allocation2 + $0x250] sm:$0xff]
    %v324 = vld [vmem:[#allocation2 + $0x258] sm:$0xff]
    %v325 = vld [vmem:[#allocation2 + $0x260] sm:$0xff]
    %v326 = vld [vmem:[#allocation2 + $0x268] sm:$0xff]
    %v327 = vld [vmem:[#allocation2 + $0x270] sm:$0xff]
    %v328 = vld [vmem:[#allocation2 + $0x278] sm:$0xff]
    %v329 = vld [vmem:[#allocation2 + $0x280] sm:$0xff]
    %v330 = vld [vmem:[#allocation2 + $0x288] sm:$0xff]
    %v331 = vld [vmem:[#allocation2 + $0x290] sm:$0xff]
    %v332 = vld [vmem:[#allocation2 + $0x298] sm:$0xff]
    %v333 = vld [vmem:[#allocation2 + $0x2a0] sm:$0xff]
    %v334 = vld [vmem:[#allocation2 + $0x2a8] sm:$0xff]
    %v335 = vld [vmem:[#allocation2 + $0x2b0] sm:$0xff]
    %v336 = vld [vmem:[#allocation2 + $0x2b8] sm:$0xff]
    %v337 = vld [vmem:[#allocation2 + $0x2c0] sm:$0xff]
    %v338 = vld [vmem:[#allocation2 + $0x2c8] sm:$0xff]
    %v339 = vld [vmem:[#allocation2 + $0x2d0] sm:$0xff]
    %v340 = vld [vmem:[#allocation2 + $0x2d8] sm:$0xff]
    %v341 = vld [vmem:[#allocation2 + $0x2e0] sm:$0xff]
    %v342 = vld [vmem:[#allocation2 + $0x2e8] sm:$0xff]
    %v343 = vld [vmem:[#allocation2 + $0x2f0] sm:$0xff]
    %v344 = vld [vmem:[#allocation2 + $0x2f8] sm:$0xff]
    %v345 = vld [vmem:[#allocation2 + $0x300] sm:$0xff]
    %v346 = vld [vmem:[#allocation2 + $0x308] sm:$0xff]
    %v347 = vld [vmem:[#allocation2 + $0x310] sm:$0xff]
    %v348 = vld [vmem:[#allocation2 + $0x318] sm:$0xff]
    %v349 = vld [vmem:[#allocation2 + $0x320] sm:$0xff]
    %v350 = vld [vmem:[#allocation2 + $0x328] sm:$0xff]
    %v351 = vld [vmem:[#allocation2 + $0x330] sm:$0xff]
    %v352 = vld [vmem:[#allocation2 + $0x338] sm:$0xff]
    %v353 = vld [vmem:[#allocation2 + $0x340] sm:$0xff]
    %v354 = vld [vmem:[#allocation2 + $0x348] sm:$0xff]
    %v355 = vld [vmem:[#allocation2 + $0x350] sm:$0xff]
    %v356 = vld [vmem:[#allocation2 + $0x358] sm:$0xff]
    %v357 = vld [vmem:[#allocation2 + $0x360] sm:$0xff]
    %v358 = vld [vmem:[#allocation2 + $0x368] sm:$0xff]
    %v359 = vld [vmem:[#allocation2 + $0x370] sm:$0xff]
    %v360 = vld [vmem:[#allocation2 + $0x378] sm:$0xff]
    %v361 = vld [vmem:[#allocation2 + $0x380] sm:$0xff]
    %v362 = vld [vmem:[#allocation2 + $0x388] sm:$0xff]
    %v363 = vld [vmem:[#allocation2 + $0x390] sm:$0xff]
    %v364 = vld [vmem:[#allocation2 + $0x398] sm:$0xff]
    %v365 = vld [vmem:[#allocation2 + $0x3a0] sm:$0xff]
    %v366 = vld [vmem:[#allocation2 + $0x3a8] sm:$0xff]
    %v367 = vld [vmem:[#allocation2 + $0x3b0] sm:$0xff]
    %v368 = vld [vmem:[#allocation2 + $0x3b8] sm:$0xff]
    %v369 = vld [vmem:[#allocation2 + $0x3c0] sm:$0xff]
    %v370 = vld [vmem:[#allocation2 + $0x3c8] sm:$0xff]
    %v371 = vld [vmem:[#allocation2 + $0x3d0] sm:$0xff]
    %v372 = vld [vmem:[#allocation2 + $0x3d8] sm:$0xff]
    %v373 = vld [vmem:[#allocation2 + $0x3e0] sm:$0xff]
    %v374 = vld [vmem:[#allocation2 + $0x3e8] sm:$0xff]
    %v375 = vld [vmem:[#allocation2 + $0x3f0] sm:$0xff]
    %v376 = vld [vmem:[#allocation2 + $0x3f8] sm:$0xff]
    %v377 = vld [vmem:[#allocation2 + $0x400] sm:$0xff]
    %v378 = vld [vmem:[#allocation2 + $0x408] sm:$0xff]
    %v379 = vld [vmem:[#allocation2 + $0x410] sm:$0xff]
    %v380 = vld [vmem:[#allocation2 + $0x418] sm:$0xff]
    %v381 = vld [vmem:[#allocation2 + $0x420] sm:$0xff]
    %v382 = vld [vmem:[#allocation2 + $0x428] sm:$0xff]
    %v383 = vld [vmem:[#allocation2 + $0x430] sm:$0xff]
    %v384 = vld [vmem:[#allocation2 + $0x438] sm:$0xff]
    %v385 = vld [vmem:[#allocation2 + $0x440] sm:$0xff]
    %v386 = vld [vmem:[#allocation2 + $0x448] sm:$0xff]
    %v387 = vld [vmem:[#allocation2 + $0x450] sm:$0xff]
    %v388 = vld [vmem:[#allocation2 + $0x458] sm:$0xff]
    %v389 = vld [vmem:[#allocation2 + $0x460] sm:$0xff]
    %v390 = vld [vmem:[#allocation2 + $0x468] sm:$0xff]
    %v391 = vld [vmem:[#allocation2 + $0x470] sm:$0xff]
    %v392 = vld [vmem:[#allocation2 + $0x478] sm:$0xff]
    %v393 = vld [vmem:[#allocation2 + $0x480] sm:$0xff]
    %v394 = vld [vmem:[#allocation2 + $0x488] sm:$0xff]
    %v395 = vld [vmem:[#allocation2 + $0x490] sm:$0xff]
    %v396 = vld [vmem:[#allocation2 + $0x498] sm:$0xff]
    %v397 = vld [vmem:[#allocation2 + $0x4a0] sm:$0xff]
    %v398 = vld [vmem:[#allocation2 + $0x4a8] sm:$0xff]
    %v399 = vld [vmem:[#allocation2 + $0x4b0] sm:$0xff]
    %v400 = vld [vmem:[#allocation2 + $0x4b8] sm:$0xff]
    %v401 = vld [vmem:[#allocation2 + $0x4c0] sm:$0xff]
    %v402 = vld [vmem:[#allocation2 + $0x4c8] sm:$0xff]
    %v403 = vld [vmem:[#allocation2 + $0x4d0] sm:$0xff]
    %v404 = vld [vmem:[#allocation2 + $0x4d8] sm:$0xff]
    %v405 = vld [vmem:[#allocation2 + $0x4e0] sm:$0xff]
    %v406 = vld [vmem:[#allocation2 + $0x4e8] sm:$0xff]
    %v407 = vld [vmem:[#allocation2 + $0x4f0] sm:$0xff]
    %v408 = vld [vmem:[#allocation2 + $0x4f8] sm:$0xff]
    %v409 = vld [vmem:[#allocation2 + $0x500] sm:$0xff]
    %v410 = vld [vmem:[#allocation2 + $0x508] sm:$0xff]
    %v411 = vld [vmem:[#allocation2 + $0x510] sm:$0xff]
    %v412 = vld [vmem:[#allocation2 + $0x518] sm:$0xff]
    %v413 = vld [vmem:[#allocation2 + $0x520] sm:$0xff]
    %v414 = vld [vmem:[#allocation2 + $0x528] sm:$0xff]
    %v415 = vld [vmem:[#allocation2 + $0x530] sm:$0xff]
    %v416 = vld [vmem:[#allocation2 + $0x538] sm:$0xff]
    %v417 = vld [vmem:[#allocation2 + $0x540] sm:$0xff]
    %v418 = vld [vmem:[#allocation2 + $0x548] sm:$0xff]
    %v419 = vld [vmem:[#allocation2 + $0x550] sm:$0xff]
    %v420 = vld [vmem:[#allocation2 + $0x558] sm:$0xff]
    %v421 = vld [vmem:[#allocation2 + $0x560] sm:$0xff]
    %v422 = vld [vmem:[#allocation2 + $0x568] sm:$0xff]
    %v423 = vld [vmem:[#allocation2 + $0x570] sm:$0xff]
    %v424 = vld [vmem:[#allocation2 + $0x578] sm:$0xff]
    %v425 = vld [vmem:[#allocation2 + $0x580] sm:$0xff]
    %v426 = vld [vmem:[#allocation2 + $0x588] sm:$0xff]
    %v427 = vld [vmem:[#allocation2 + $0x590] sm:$0xff]
    %v428 = vld [vmem:[#allocation2 + $0x598] sm:$0xff]
    %v429 = vld [vmem:[#allocation2 + $0x5a0] sm:$0xff]
    %v430 = vld [vmem:[#allocation2 + $0x5a8] sm:$0xff]
    %v431 = vld [vmem:[#allocation2 + $0x5b0] sm:$0xff]
    %v432 = vld [vmem:[#allocation2 + $0x5b8] sm:$0xff]
    %v433 = vld [vmem:[#allocation2 + $0x5c0] sm:$0xff]
    %v434 = vld [vmem:[#allocation2 + $0x5c8] sm:$0xff]
    %v435 = vld [vmem:[#allocation2 + $0x5d0] sm:$0xff]
    %v436 = vld [vmem:[#allocation2 + $0x5d8] sm:$0xff]
    %v437 = vld [vmem:[#allocation2 + $0x5e0] sm:$0xff]
    %v438 = vld [vmem:[#allocation2 + $0x5e8] sm:$0xff]
    %v439 = vld [vmem:[#allocation2 + $0x5f0] sm:$0xff]
    %v440 = vld [vmem:[#allocation2 + $0x5f8] sm:$0xff]
    %v441 = vld [vmem:[#allocation2 + $0x600] sm:$0xff]
    %v442 = vld [vmem:[#allocation2 + $0x608] sm:$0xff]
    %v443 = vld [vmem:[#allocation2 + $0x610] sm:$0xff]
    %v444 = vld [vmem:[#allocation2 + $0x618] sm:$0xff]
    %v445 = vld [vmem:[#allocation2 + $0x620] sm:$0xff]
    %v446 = vld [vmem:[#allocation2 + $0x628] sm:$0xff]
    %v447 = vld [vmem:[#allocation2 + $0x630] sm:$0xff]
    %v448 = vld [vmem:[#allocation2 + $0x638] sm:$0xff]
    %v449 = vld [vmem:[#allocation2 + $0x640] sm:$0xff]
    %v450 = vld [vmem:[#allocation2 + $0x648] sm:$0xff]
    %v451 = vld [vmem:[#allocation2 + $0x650] sm:$0xff]
    %v452 = vld [vmem:[#allocation2 + $0x658] sm:$0xff]
    %v453 = vld [vmem:[#allocation2 + $0x660] sm:$0xff]
    %v454 = vld [vmem:[#allocation2 + $0x668] sm:$0xff]
    %v455 = vld [vmem:[#allocation2 + $0x670] sm:$0xff]
    %v456 = vld [vmem:[#allocation2 + $0x678] sm:$0xff]
    %v457 = vld [vmem:[#allocation2 + $0x680] sm:$0xff]
    %v458 = vld [vmem:[#allocation2 + $0x688] sm:$0xff]
    %v459 = vld [vmem:[#allocation2 + $0x690] sm:$0xff]
    %v460 = vld [vmem:[#allocation2 + $0x698] sm:$0xff]
    %v461 = vld [vmem:[#allocation2 + $0x6a0] sm:$0xff]
    %v462 = vld [vmem:[#allocation2 + $0x6a8] sm:$0xff]
    %v463 = vld [vmem:[#allocation2 + $0x6b0] sm:$0xff]
    %v464 = vld [vmem:[#allocation2 + $0x6b8] sm:$0xff]
    %v465 = vld [vmem:[#allocation2 + $0x6c0] sm:$0xff]
    %v466 = vld [vmem:[#allocation2 + $0x6c8] sm:$0xff]
    %v467 = vld [vmem:[#allocation2 + $0x6d0] sm:$0xff]
    %v468 = vld [vmem:[#allocation2 + $0x6d8] sm:$0xff]
    %v469 = vld [vmem:[#allocation2 + $0x6e0] sm:$0xff]
    %v470 = vld [vmem:[#allocation2 + $0x6e8] sm:$0xff]
    %v471 = vld [vmem:[#allocation2 + $0x6f0] sm:$0xff]
    %v472 = vld [vmem:[#allocation2 + $0x6f8] sm:$0xff]
    %v473 = vld [vmem:[#allocation13] sm:$0xf]
    %v475 = vlaneseq
    %v476 = vshrl.u32 %v475, 7
    %v477 = vsub.s32 0, %v476
    %v478 = vrot.slane %v473, %v477
    %v479 = vlaneseq
    %v480 = vshrl.u32 %v479, 7
    %v481 = vsub.s32 1, %v480
    %v482 = vrot.slane %v473, %v481
    %v483 = vlaneseq
    %v484 = vshrl.u32 %v483, 7
    %v485 = vsub.s32 2, %v484
    %v486 = vrot.slane %v473, %v485
    %v487 = vlaneseq
    %v488 = vshrl.u32 %v487, 7
    %v489 = vsub.s32 3, %v488
    %v490 = vrot.slane %v473, %v489
    %v719 = vunpack.c.l.b16 %v249
    %v720 = vunpack.c.h.b16 %v249
    %v721 = vunpack.c.l.b16 %v250
    %v722 = vunpack.c.h.b16 %v250
    %v723 = vunpack.c.l.b16 %v251
    %v724 = vunpack.c.h.b16 %v251
    %v725 = vunpack.c.l.b16 %v252
    %v726 = vunpack.c.h.b16 %v252
    %v727 = vunpack.c.l.b16 %v253
    %v728 = vunpack.c.h.b16 %v253
    %v729 = vunpack.c.l.b16 %v254
    %v730 = vunpack.c.h.b16 %v254
    %v731 = vunpack.c.l.b16 %v255
    %v732 = vunpack.c.h.b16 %v255
    %v733 = vunpack.c.l.b16 %v256
    %v734 = vunpack.c.h.b16 %v256
    %v735 = vunpack.c.l.b16 %v257
    %v736 = vunpack.c.h.b16 %v257
    %v737 = vunpack.c.l.b16 %v258
    %v738 = vunpack.c.h.b16 %v258
    %v739 = vunpack.c.l.b16 %v259
    %v740 = vunpack.c.h.b16 %v259
    %v741 = vunpack.c.l.b16 %v260
    %v742 = vunpack.c.h.b16 %v260
    %v743 = vunpack.c.l.b16 %v261
    %v744 = vunpack.c.h.b16 %v261
    %v745 = vunpack.c.l.b16 %v262
    %v746 = vunpack.c.h.b16 %v262
    %v747 = vunpack.c.l.b16 %v263
    %v748 = vunpack.c.h.b16 %v263
    %v749 = vunpack.c.l.b16 %v264
    %v750 = vunpack.c.h.b16 %v264
    %v751 = vunpack.c.l.b16 %v265
    %v752 = vunpack.c.h.b16 %v265
    %v753 = vunpack.c.l.b16 %v266
    %v754 = vunpack.c.h.b16 %v266
    %v755 = vunpack.c.l.b16 %v267
    %v756 = vunpack.c.h.b16 %v267
    %v757 = vunpack.c.l.b16 %v268
    %v758 = vunpack.c.h.b16 %v268
    %v759 = vunpack.c.l.b16 %v269
    %v760 = vunpack.c.h.b16 %v269
    %v761 = vunpack.c.l.b16 %v270
    %v762 = vunpack.c.h.b16 %v270
    %v763 = vunpack.c.l.b16 %v271
    %v764 = vunpack.c.h.b16 %v271
    %v765 = vunpack.c.l.b16 %v272
    %v766 = vunpack.c.h.b16 %v272
    %v767 = vunpack.c.l.b16 %v273
    %v768 = vunpack.c.h.b16 %v273
    %v769 = vunpack.c.l.b16 %v274
    %v770 = vunpack.c.h.b16 %v274
    %v771 = vunpack.c.l.b16 %v275
    %v772 = vunpack.c.h.b16 %v275
    %v773 = vunpack.c.l.b16 %v276
    %v774 = vunpack.c.h.b16 %v276
    %v775 = vunpack.c.l.b16 %v277
    %v776 = vunpack.c.h.b16 %v277
    %v777 = vunpack.c.l.b16 %v278
    %v778 = vunpack.c.h.b16 %v278
    %v779 = vunpack.c.l.b16 %v279
    %v780 = vunpack.c.h.b16 %v279
    %v781 = vunpack.c.l.b16 %v280
    %v782 = vunpack.c.h.b16 %v280
    %v783 = vunpack.c.l.b16 %v281
    %v784 = vunpack.c.h.b16 %v281
    %v785 = vunpack.c.l.b16 %v282
    %v786 = vunpack.c.h.b16 %v282
    %v787 = vunpack.c.l.b16 %v283
    %v788 = vunpack.c.h.b16 %v283
    %v789 = vunpack.c.l.b16 %v284
    %v790 = vunpack.c.h.b16 %v284
    %v791 = vunpack.c.l.b16 %v285
    %v792 = vunpack.c.h.b16 %v285
    %v793 = vunpack.c.l.b16 %v286
    %v794 = vunpack.c.h.b16 %v286
    %v795 = vunpack.c.l.b16 %v287
    %v796 = vunpack.c.h.b16 %v287
    %v797 = vunpack.c.l.b16 %v288
    %v798 = vunpack.c.h.b16 %v288
    %v799 = vunpack.c.l.b16 %v289
    %v800 = vunpack.c.h.b16 %v289
    %v801 = vunpack.c.l.b16 %v290
    %v802 = vunpack.c.h.b16 %v290
    %v803 = vunpack.c.l.b16 %v291
    %v804 = vunpack.c.h.b16 %v291
    %v805 = vunpack.c.l.b16 %v292
    %v806 = vunpack.c.h.b16 %v292
    %v807 = vunpack.c.l.b16 %v293
    %v808 = vunpack.c.h.b16 %v293
    %v809 = vunpack.c.l.b16 %v294
    %v810 = vunpack.c.h.b16 %v294
    %v811 = vunpack.c.l.b16 %v295
    %v812 = vunpack.c.h.b16 %v295
    %v813 = vunpack.c.l.b16 %v296
    %v814 = vunpack.c.h.b16 %v296
    %v815 = vunpack.c.l.b16 %v297
    %v816 = vunpack.c.h.b16 %v297
    %v817 = vunpack.c.l.b16 %v298
    %v818 = vunpack.c.h.b16 %v298
    %v819 = vunpack.c.l.b16 %v299
    %v820 = vunpack.c.h.b16 %v299
    %v821 = vunpack.c.l.b16 %v300
    %v822 = vunpack.c.h.b16 %v300
    %v823 = vunpack.c.l.b16 %v301
    %v824 = vunpack.c.h.b16 %v301
    %v825 = vunpack.c.l.b16 %v302
    %v826 = vunpack.c.h.b16 %v302
    %v827 = vunpack.c.l.b16 %v303
    %v828 = vunpack.c.h.b16 %v303
    %v829 = vunpack.c.l.b16 %v304
    %v830 = vunpack.c.h.b16 %v304
    %v831 = vunpack.c.l.b16 %v305
    %v832 = vunpack.c.h.b16 %v305
    %v833 = vunpack.c.l.b16 %v306
    %v834 = vunpack.c.h.b16 %v306
    %v835 = vunpack.c.l.b16 %v307
    %v836 = vunpack.c.h.b16 %v307
    %v837 = vunpack.c.l.b16 %v308
    %v838 = vunpack.c.h.b16 %v308
    %v839 = vunpack.c.l.b16 %v309
    %v840 = vunpack.c.h.b16 %v309
    %v841 = vunpack.c.l.b16 %v310
    %v842 = vunpack.c.h.b16 %v310
    %v843 = vunpack.c.l.b16 %v311
    %v844 = vunpack.c.h.b16 %v311
    %v845 = vunpack.c.l.b16 %v312
    %v846 = vunpack.c.h.b16 %v312
    %v847 = vunpack.c.l.b16 %v313
    %v848 = vunpack.c.h.b16 %v313
    %v849 = vunpack.c.l.b16 %v314
    %v850 = vunpack.c.h.b16 %v314
    %v851 = vunpack.c.l.b16 %v315
    %v852 = vunpack.c.h.b16 %v315
    %v853 = vunpack.c.l.b16 %v316
    %v854 = vunpack.c.h.b16 %v316
    %v855 = vunpack.c.l.b16 %v317
    %v856 = vunpack.c.h.b16 %v317
    %v857 = vunpack.c.l.b16 %v318
    %v858 = vunpack.c.h.b16 %v318
    %v859 = vunpack.c.l.b16 %v319
    %v860 = vunpack.c.h.b16 %v319
    %v861 = vunpack.c.l.b16 %v320
    %v862 = vunpack.c.h.b16 %v320
    %v863 = vunpack.c.l.b16 %v321
    %v864 = vunpack.c.h.b16 %v321
    %v865 = vunpack.c.l.b16 %v322
    %v866 = vunpack.c.h.b16 %v322
    %v867 = vunpack.c.l.b16 %v323
    %v868 = vunpack.c.h.b16 %v323
    %v869 = vunpack.c.l.b16 %v324
    %v870 = vunpack.c.h.b16 %v324
    %v871 = vunpack.c.l.b16 %v325
    %v872 = vunpack.c.h.b16 %v325
    %v873 = vunpack.c.l.b16 %v326
    %v874 = vunpack.c.h.b16 %v326
    %v875 = vunpack.c.l.b16 %v327
    %v876 = vunpack.c.h.b16 %v327
    %v877 = vunpack.c.l.b16 %v328
    %v878 = vunpack.c.h.b16 %v328
    %v879 = vunpack.c.l.b16 %v329
    %v880 = vunpack.c.h.b16 %v329
    %v881 = vunpack.c.l.b16 %v330
    %v882 = vunpack.c.h.b16 %v330
    %v883 = vunpack.c.l.b16 %v331
    %v884 = vunpack.c.h.b16 %v331
    %v885 = vunpack.c.l.b16 %v332
    %v886 = vunpack.c.h.b16 %v332
    %v887 = vunpack.c.l.b16 %v333
    %v888 = vunpack.c.h.b16 %v333
    %v889 = vunpack.c.l.b16 %v334
    %v890 = vunpack.c.h.b16 %v334
    %v891 = vunpack.c.l.b16 %v335
    %v892 = vunpack.c.h.b16 %v335
    %v893 = vunpack.c.l.b16 %v336
    %v894 = vunpack.c.h.b16 %v336
    %v895 = vunpack.c.l.b16 %v337
    %v896 = vunpack.c.h.b16 %v337
    %v897 = vunpack.c.l.b16 %v338
    %v898 = vunpack.c.h.b16 %v338
    %v899 = vunpack.c.l.b16 %v339
    %v900 = vunpack.c.h.b16 %v339
    %v901 = vunpack.c.l.b16 %v340
    %v902 = vunpack.c.h.b16 %v340
    %v903 = vunpack.c.l.b16 %v341
    %v904 = vunpack.c.h.b16 %v341
    %v905 = vunpack.c.l.b16 %v342
    %v906 = vunpack.c.h.b16 %v342
    %v907 = vunpack.c.l.b16 %v343
    %v908 = vunpack.c.h.b16 %v343
    %v909 = vunpack.c.l.b16 %v344
    %v910 = vunpack.c.h.b16 %v344
    %v911 = vunpack.c.l.b16 %v345
    %v912 = vunpack.c.h.b16 %v345
    %v913 = vunpack.c.l.b16 %v346
    %v914 = vunpack.c.h.b16 %v346
    %v915 = vunpack.c.l.b16 %v347
    %v916 = vunpack.c.h.b16 %v347
    %v917 = vunpack.c.l.b16 %v348
    %v918 = vunpack.c.h.b16 %v348
    %v919 = vunpack.c.l.b16 %v349
    %v920 = vunpack.c.h.b16 %v349
    %v921 = vunpack.c.l.b16 %v350
    %v922 = vunpack.c.h.b16 %v350
    %v923 = vunpack.c.l.b16 %v351
    %v924 = vunpack.c.h.b16 %v351
    %v925 = vunpack.c.l.b16 %v352
    %v926 = vunpack.c.h.b16 %v352
    %v927 = vunpack.c.l.b16 %v353
    %v928 = vunpack.c.h.b16 %v353
    %v929 = vunpack.c.l.b16 %v354
    %v930 = vunpack.c.h.b16 %v354
    %v931 = vunpack.c.l.b16 %v355
    %v932 = vunpack.c.h.b16 %v355
    %v933 = vunpack.c.l.b16 %v356
    %v934 = vunpack.c.h.b16 %v356
    %v935 = vunpack.c.l.b16 %v357
    %v936 = vunpack.c.h.b16 %v357
    %v937 = vunpack.c.l.b16 %v358
    %v938 = vunpack.c.h.b16 %v358
    %v939 = vunpack.c.l.b16 %v359
    %v940 = vunpack.c.h.b16 %v359
    %v941 = vunpack.c.l.b16 %v360
    %v942 = vunpack.c.h.b16 %v360
    %v943 = vunpack.c.l.b16 %v361
    %v944 = vunpack.c.h.b16 %v361
    %v945 = vunpack.c.l.b16 %v362
    %v946 = vunpack.c.h.b16 %v362
    %v947 = vunpack.c.l.b16 %v363
    %v948 = vunpack.c.h.b16 %v363
    %v949 = vunpack.c.l.b16 %v364
    %v950 = vunpack.c.h.b16 %v364
    %v951 = vunpack.c.l.b16 %v365
    %v952 = vunpack.c.h.b16 %v365
    %v953 = vunpack.c.l.b16 %v366
    %v954 = vunpack.c.h.b16 %v366
    %v955 = vunpack.c.l.b16 %v367
    %v956 = vunpack.c.h.b16 %v367
    %v957 = vunpack.c.l.b16 %v368
    %v958 = vunpack.c.h.b16 %v368
    %v959 = vunpack.c.l.b16 %v369
    %v960 = vunpack.c.h.b16 %v369
    %v961 = vunpack.c.l.b16 %v370
    %v962 = vunpack.c.h.b16 %v370
    %v963 = vunpack.c.l.b16 %v371
    %v964 = vunpack.c.h.b16 %v371
    %v965 = vunpack.c.l.b16 %v372
    %v966 = vunpack.c.h.b16 %v372
    %v967 = vunpack.c.l.b16 %v373
    %v968 = vunpack.c.h.b16 %v373
    %v969 = vunpack.c.l.b16 %v374
    %v970 = vunpack.c.h.b16 %v374
    %v971 = vunpack.c.l.b16 %v375
    %v972 = vunpack.c.h.b16 %v375
    %v973 = vunpack.c.l.b16 %v376
    %v974 = vunpack.c.h.b16 %v376
    %v975 = vunpack.c.l.b16 %v377
    %v976 = vunpack.c.h.b16 %v377
    %v977 = vunpack.c.l.b16 %v378
    %v978 = vunpack.c.h.b16 %v378
    %v979 = vunpack.c.l.b16 %v379
    %v980 = vunpack.c.h.b16 %v379
    %v981 = vunpack.c.l.b16 %v380
    %v982 = vunpack.c.h.b16 %v380
    %v983 = vunpack.c.l.b16 %v381
    %v984 = vunpack.c.h.b16 %v381
    %v985 = vunpack.c.l.b16 %v382
    %v986 = vunpack.c.h.b16 %v382
    %v987 = vunpack.c.l.b16 %v383
    %v988 = vunpack.c.h.b16 %v383
    %v989 = vunpack.c.l.b16 %v384
    %v990 = vunpack.c.h.b16 %v384
    %v991 = vunpack.c.l.b16 %v385
    %v992 = vunpack.c.h.b16 %v385
    %v993 = vunpack.c.l.b16 %v386
    %v994 = vunpack.c.h.b16 %v386
    %v995 = vunpack.c.l.b16 %v387
    %v996 = vunpack.c.h.b16 %v387
    %v997 = vunpack.c.l.b16 %v388
    %v998 = vunpack.c.h.b16 %v388
    %v999 = vunpack.c.l.b16 %v389
    %v1000 = vunpack.c.h.b16 %v389
    %v1001 = vunpack.c.l.b16 %v390
    %v1002 = vunpack.c.h.b16 %v390
    %v1003 = vunpack.c.l.b16 %v391
    %v1004 = vunpack.c.h.b16 %v391
    %v1005 = vunpack.c.l.b16 %v392
    %v1006 = vunpack.c.h.b16 %v392
    %v1007 = vunpack.c.l.b16 %v393
    %v1008 = vunpack.c.h.b16 %v393
    %v1009 = vunpack.c.l.b16 %v394
    %v1010 = vunpack.c.h.b16 %v394
    %v1011 = vunpack.c.l.b16 %v395
    %v1012 = vunpack.c.h.b16 %v395
    %v1013 = vunpack.c.l.b16 %v396
    %v1014 = vunpack.c.h.b16 %v396
    %v1015 = vunpack.c.l.b16 %v397
    %v1016 = vunpack.c.h.b16 %v397
    %v1017 = vunpack.c.l.b16 %v398
    %v1018 = vunpack.c.h.b16 %v398
    %v1019 = vunpack.c.l.b16 %v399
    %v1020 = vunpack.c.h.b16 %v399
    %v1021 = vunpack.c.l.b16 %v400
    %v1022 = vunpack.c.h.b16 %v400
    %v1023 = vunpack.c.l.b16 %v401
    %v1024 = vunpack.c.h.b16 %v401
    %v1025 = vunpack.c.l.b16 %v402
    %v1026 = vunpack.c.h.b16 %v402
    %v1027 = vunpack.c.l.b16 %v403
    %v1028 = vunpack.c.h.b16 %v403
    %v1029 = vunpack.c.l.b16 %v404
    %v1030 = vunpack.c.h.b16 %v404
    %v1031 = vunpack.c.l.b16 %v405
    %v1032 = vunpack.c.h.b16 %v405
    %v1033 = vunpack.c.l.b16 %v406
    %v1034 = vunpack.c.h.b16 %v406
    %v1035 = vunpack.c.l.b16 %v407
    %v1036 = vunpack.c.h.b16 %v407
    %v1037 = vunpack.c.l.b16 %v408
    %v1038 = vunpack.c.h.b16 %v408
    %v1039 = vunpack.c.l.b16 %v409
    %v1040 = vunpack.c.h.b16 %v409
    %v1041 = vunpack.c.l.b16 %v410
    %v1042 = vunpack.c.h.b16 %v410
    %v1043 = vunpack.c.l.b16 %v411
    %v1044 = vunpack.c.h.b16 %v411
    %v1045 = vunpack.c.l.b16 %v412
    %v1046 = vunpack.c.h.b16 %v412
    %v1047 = vunpack.c.l.b16 %v413
    %v1048 = vunpack.c.h.b16 %v413
    %v1049 = vunpack.c.l.b16 %v414
    %v1050 = vunpack.c.h.b16 %v414
    %v1051 = vunpack.c.l.b16 %v415
    %v1052 = vunpack.c.h.b16 %v415
    %v1053 = vunpack.c.l.b16 %v416
    %v1054 = vunpack.c.h.b16 %v416
    %v1055 = vunpack.c.l.b16 %v417
    %v1056 = vunpack.c.h.b16 %v417
    %v1057 = vunpack.c.l.b16 %v418
    %v1058 = vunpack.c.h.b16 %v418
    %v1059 = vunpack.c.l.b16 %v419
    %v1060 = vunpack.c.h.b16 %v419
    %v1061 = vunpack.c.l.b16 %v420
    %v1062 = vunpack.c.h.b16 %v420
    %v1063 = vunpack.c.l.b16 %v421
    %v1064 = vunpack.c.h.b16 %v421
    %v1065 = vunpack.c.l.b16 %v422
    %v1066 = vunpack.c.h.b16 %v422
    %v1067 = vunpack.c.l.b16 %v423
    %v1068 = vunpack.c.h.b16 %v423
    %v1069 = vunpack.c.l.b16 %v424
    %v1070 = vunpack.c.h.b16 %v424
    %v1071 = vunpack.c.l.b16 %v425
    %v1072 = vunpack.c.h.b16 %v425
    %v1073 = vunpack.c.l.b16 %v426
    %v1074 = vunpack.c.h.b16 %v426
    %v1075 = vunpack.c.l.b16 %v427
    %v1076 = vunpack.c.h.b16 %v427
    %v1077 = vunpack.c.l.b16 %v428
    %v1078 = vunpack.c.h.b16 %v428
    %v1079 = vunpack.c.l.b16 %v429
    %v1080 = vunpack.c.h.b16 %v429
    %v1081 = vunpack.c.l.b16 %v430
    %v1082 = vunpack.c.h.b16 %v430
    %v1083 = vunpack.c.l.b16 %v431
    %v1084 = vunpack.c.h.b16 %v431
    %v1085 = vunpack.c.l.b16 %v432
    %v1086 = vunpack.c.h.b16 %v432
    %v1087 = vunpack.c.l.b16 %v433
    %v1088 = vunpack.c.h.b16 %v433
    %v1089 = vunpack.c.l.b16 %v434
    %v1090 = vunpack.c.h.b16 %v434
    %v1091 = vunpack.c.l.b16 %v435
    %v1092 = vunpack.c.h.b16 %v435
    %v1093 = vunpack.c.l.b16 %v436
    %v1094 = vunpack.c.h.b16 %v436
    %v1095 = vunpack.c.l.b16 %v437
    %v1096 = vunpack.c.h.b16 %v437
    %v1097 = vunpack.c.l.b16 %v438
    %v1098 = vunpack.c.h.b16 %v438
    %v1099 = vunpack.c.l.b16 %v439
    %v1100 = vunpack.c.h.b16 %v439
    %v1101 = vunpack.c.l.b16 %v440
    %v1102 = vunpack.c.h.b16 %v440
    %v1103 = vunpack.c.l.b16 %v441
    %v1104 = vunpack.c.h.b16 %v441
    %v1105 = vunpack.c.l.b16 %v442
    %v1106 = vunpack.c.h.b16 %v442
    %v1107 = vunpack.c.l.b16 %v443
    %v1108 = vunpack.c.h.b16 %v443
    %v1109 = vunpack.c.l.b16 %v444
    %v1110 = vunpack.c.h.b16 %v444
    %v1111 = vunpack.c.l.b16 %v445
    %v1112 = vunpack.c.h.b16 %v445
    %v1113 = vunpack.c.l.b16 %v446
    %v1114 = vunpack.c.h.b16 %v446
    %v1115 = vunpack.c.l.b16 %v447
    %v1116 = vunpack.c.h.b16 %v447
    %v1117 = vunpack.c.l.b16 %v448
    %v1118 = vunpack.c.h.b16 %v448
    %v1119 = vunpack.c.l.b16 %v449
    %v1120 = vunpack.c.h.b16 %v449
    %v1121 = vunpack.c.l.b16 %v450
    %v1122 = vunpack.c.h.b16 %v450
    %v1123 = vunpack.c.l.b16 %v451
    %v1124 = vunpack.c.h.b16 %v451
    %v1125 = vunpack.c.l.b16 %v452
    %v1126 = vunpack.c.h.b16 %v452
    %v1127 = vunpack.c.l.b16 %v453
    %v1128 = vunpack.c.h.b16 %v453
    %v1129 = vunpack.c.l.b16 %v454
    %v1130 = vunpack.c.h.b16 %v454
    %v1131 = vunpack.c.l.b16 %v455
    %v1132 = vunpack.c.h.b16 %v455
    %v1133 = vunpack.c.l.b16 %v456
    %v1134 = vunpack.c.h.b16 %v456
    %v1135 = vunpack.c.l.b16 %v457
    %v1136 = vunpack.c.h.b16 %v457
    %v1137 = vunpack.c.l.b16 %v458
    %v1138 = vunpack.c.h.b16 %v458
    %v1139 = vunpack.c.l.b16 %v459
    %v1140 = vunpack.c.h.b16 %v459
    %v1141 = vunpack.c.l.b16 %v460
    %v1142 = vunpack.c.h.b16 %v460
    %v1143 = vunpack.c.l.b16 %v461
    %v1144 = vunpack.c.h.b16 %v461
    %v1145 = vunpack.c.l.b16 %v462
    %v1146 = vunpack.c.h.b16 %v462
    %v1147 = vunpack.c.l.b16 %v463
    %v1148 = vunpack.c.h.b16 %v463
    %v1149 = vunpack.c.l.b16 %v464
    %v1150 = vunpack.c.h.b16 %v464
    %v1151 = vunpack.c.l.b16 %v465
    %v1152 = vunpack.c.h.b16 %v465
    %v1153 = vunpack.c.l.b16 %v466
    %v1154 = vunpack.c.h.b16 %v466
    %v1155 = vunpack.c.l.b16 %v467
    %v1156 = vunpack.c.h.b16 %v467
    %v1157 = vunpack.c.l.b16 %v468
    %v1158 = vunpack.c.h.b16 %v468
    %v1159 = vunpack.c.l.b16 %v469
    %v1160 = vunpack.c.h.b16 %v469
    %v1161 = vunpack.c.l.b16 %v470
    %v1162 = vunpack.c.h.b16 %v470
    %v1163 = vunpack.c.l.b16 %v471
    %v1164 = vunpack.c.h.b16 %v471
    %v1165 = vunpack.c.l.b16 %v472
    %v1166 = vunpack.c.h.b16 %v472
    %v1167 = vpack.c.b16 %v723, %v719
    %v1168 = vpack.c.b16 %v724, %v720
    %v1169 = vpack.c.b16 %v725, %v721
    %v1170 = vpack.c.b16 %v726, %v722
    %v1171 = vpack.c.b16 %v731, %v727
    %v1172 = vpack.c.b16 %v732, %v728
    %v1173 = vpack.c.b16 %v733, %v729
    %v1174 = vpack.c.b16 %v734, %v730
    %v1175 = vpack.c.b16 %v739, %v735
    %v1176 = vpack.c.b16 %v740, %v736
    %v1177 = vpack.c.b16 %v741, %v737
    %v1178 = vpack.c.b16 %v742, %v738
    %v1179 = vpack.c.b16 %v747, %v743
    %v1180 = vpack.c.b16 %v748, %v744
    %v1181 = vpack.c.b16 %v749, %v745
    %v1182 = vpack.c.b16 %v750, %v746
    %v1183 = vpack.c.b16 %v755, %v751
    %v1184 = vpack.c.b16 %v756, %v752
    %v1185 = vpack.c.b16 %v757, %v753
    %v1186 = vpack.c.b16 %v758, %v754
    %v1187 = vpack.c.b16 %v763, %v759
    %v1188 = vpack.c.b16 %v764, %v760
    %v1189 = vpack.c.b16 %v765, %v761
    %v1190 = vpack.c.b16 %v766, %v762
    %v1191 = vpack.c.b16 %v771, %v767
    %v1192 = vpack.c.b16 %v772, %v768
    %v1193 = vpack.c.b16 %v773, %v769
    %v1194 = vpack.c.b16 %v774, %v770
    %v1195 = vpack.c.b16 %v779, %v775
    %v1196 = vpack.c.b16 %v780, %v776
    %v1197 = vpack.c.b16 %v781, %v777
    %v1198 = vpack.c.b16 %v782, %v778
    %v1199 = vpack.c.b16 %v787, %v783
    %v1200 = vpack.c.b16 %v788, %v784
    %v1201 = vpack.c.b16 %v789, %v785
    %v1202 = vpack.c.b16 %v790, %v786
    %v1203 = vpack.c.b16 %v795, %v791
    %v1204 = vpack.c.b16 %v796, %v792
    %v1205 = vpack.c.b16 %v797, %v793
    %v1206 = vpack.c.b16 %v798, %v794
    %v1207 = vpack.c.b16 %v803, %v799
    %v1208 = vpack.c.b16 %v804, %v800
    %v1209 = vpack.c.b16 %v805, %v801
    %v1210 = vpack.c.b16 %v806, %v802
    %v1211 = vpack.c.b16 %v811, %v807
    %v1212 = vpack.c.b16 %v812, %v808
    %v1213 = vpack.c.b16 %v813, %v809
    %v1214 = vpack.c.b16 %v814, %v810
    %v1215 = vpack.c.b16 %v819, %v815
    %v1216 = vpack.c.b16 %v820, %v816
    %v1217 = vpack.c.b16 %v821, %v817
    %v1218 = vpack.c.b16 %v822, %v818
    %v1219 = vpack.c.b16 %v827, %v823
    %v1220 = vpack.c.b16 %v828, %v824
    %v1221 = vpack.c.b16 %v829, %v825
    %v1222 = vpack.c.b16 %v830, %v826
    %v1223 = vpack.c.b16 %v835, %v831
    %v1224 = vpack.c.b16 %v836, %v832
    %v1225 = vpack.c.b16 %v837, %v833
    %v1226 = vpack.c.b16 %v838, %v834
    %v1227 = vpack.c.b16 %v843, %v839
    %v1228 = vpack.c.b16 %v844, %v840
    %v1229 = vpack.c.b16 %v845, %v841
    %v1230 = vpack.c.b16 %v846, %v842
    %v1231 = vpack.c.b16 %v851, %v847
    %v1232 = vpack.c.b16 %v852, %v848
    %v1233 = vpack.c.b16 %v853, %v849
    %v1234 = vpack.c.b16 %v854, %v850
    %v1235 = vpack.c.b16 %v859, %v855
    %v1236 = vpack.c.b16 %v860, %v856
    %v1237 = vpack.c.b16 %v861, %v857
    %v1238 = vpack.c.b16 %v862, %v858
    %v1239 = vpack.c.b16 %v867, %v863
    %v1240 = vpack.c.b16 %v868, %v864
    %v1241 = vpack.c.b16 %v869, %v865
    %v1242 = vpack.c.b16 %v870, %v866
    %v1243 = vpack.c.b16 %v875, %v871
    %v1244 = vpack.c.b16 %v876, %v872
    %v1245 = vpack.c.b16 %v877, %v873
    %v1246 = vpack.c.b16 %v878, %v874
    %v1247 = vpack.c.b16 %v883, %v879
    %v1248 = vpack.c.b16 %v884, %v880
    %v1249 = vpack.c.b16 %v885, %v881
    %v1250 = vpack.c.b16 %v886, %v882
    %v1251 = vpack.c.b16 %v891, %v887
    %v1252 = vpack.c.b16 %v892, %v888
    %v1253 = vpack.c.b16 %v893, %v889
    %v1254 = vpack.c.b16 %v894, %v890
    %v1255 = vpack.c.b16 %v899, %v895
    %v1256 = vpack.c.b16 %v900, %v896
    %v1257 = vpack.c.b16 %v901, %v897
    %v1258 = vpack.c.b16 %v902, %v898
    %v1259 = vpack.c.b16 %v907, %v903
    %v1260 = vpack.c.b16 %v908, %v904
    %v1261 = vpack.c.b16 %v909, %v905
    %v1262 = vpack.c.b16 %v910, %v906
    %v1263 = vpack.c.b16 %v915, %v911
    %v1264 = vpack.c.b16 %v916, %v912
    %v1265 = vpack.c.b16 %v917, %v913
    %v1266 = vpack.c.b16 %v918, %v914
    %v1267 = vpack.c.b16 %v923, %v919
    %v1268 = vpack.c.b16 %v924, %v920
    %v1269 = vpack.c.b16 %v925, %v921
    %v1270 = vpack.c.b16 %v926, %v922
    %v1271 = vpack.c.b16 %v931, %v927
    %v1272 = vpack.c.b16 %v932, %v928
    %v1273 = vpack.c.b16 %v933, %v929
    %v1274 = vpack.c.b16 %v934, %v930
    %v1275 = vpack.c.b16 %v939, %v935
    %v1276 = vpack.c.b16 %v940, %v936
    %v1277 = vpack.c.b16 %v941, %v937
    %v1278 = vpack.c.b16 %v942, %v938
    %v1279 = vpack.c.b16 %v947, %v943
    %v1280 = vpack.c.b16 %v948, %v944
    %v1281 = vpack.c.b16 %v949, %v945
    %v1282 = vpack.c.b16 %v950, %v946
    %v1283 = vpack.c.b16 %v955, %v951
    %v1284 = vpack.c.b16 %v956, %v952
    %v1285 = vpack.c.b16 %v957, %v953
    %v1286 = vpack.c.b16 %v958, %v954
    %v1287 = vpack.c.b16 %v963, %v959
    %v1288 = vpack.c.b16 %v964, %v960
    %v1289 = vpack.c.b16 %v965, %v961
    %v1290 = vpack.c.b16 %v966, %v962
    %v1291 = vpack.c.b16 %v971, %v967
    %v1292 = vpack.c.b16 %v972, %v968
    %v1293 = vpack.c.b16 %v973, %v969
    %v1294 = vpack.c.b16 %v974, %v970
    %v1295 = vpack.c.b16 %v979, %v975
    %v1296 = vpack.c.b16 %v980, %v976
    %v1297 = vpack.c.b16 %v981, %v977
    %v1298 = vpack.c.b16 %v982, %v978
    %v1299 = vpack.c.b16 %v987, %v983
    %v1300 = vpack.c.b16 %v988, %v984
    %v1301 = vpack.c.b16 %v989, %v985
    %v1302 = vpack.c.b16 %v990, %v986
    %v1303 = vpack.c.b16 %v995, %v991
    %v1304 = vpack.c.b16 %v996, %v992
    %v1305 = vpack.c.b16 %v997, %v993
    %v1306 = vpack.c.b16 %v998, %v994
    %v1307 = vpack.c.b16 %v1003, %v999
    %v1308 = vpack.c.b16 %v1004, %v1000
    %v1309 = vpack.c.b16 %v1005, %v1001
    %v1310 = vpack.c.b16 %v1006, %v1002
    %v1311 = vpack.c.b16 %v1011, %v1007
    %v1312 = vpack.c.b16 %v1012, %v1008
    %v1313 = vpack.c.b16 %v1013, %v1009
    %v1314 = vpack.c.b16 %v1014, %v1010
    %v1315 = vpack.c.b16 %v1019, %v1015
    %v1316 = vpack.c.b16 %v1020, %v1016
    %v1317 = vpack.c.b16 %v1021, %v1017
    %v1318 = vpack.c.b16 %v1022, %v1018
    %v1319 = vpack.c.b16 %v1027, %v1023
    %v1320 = vpack.c.b16 %v1028, %v1024
    %v1321 = vpack.c.b16 %v1029, %v1025
    %v1322 = vpack.c.b16 %v1030, %v1026
    %v1323 = vpack.c.b16 %v1035, %v1031
    %v1324 = vpack.c.b16 %v1036, %v1032
    %v1325 = vpack.c.b16 %v1037, %v1033
    %v1326 = vpack.c.b16 %v1038, %v1034
    %v1327 = vpack.c.b16 %v1043, %v1039
    %v1328 = vpack.c.b16 %v1044, %v1040
    %v1329 = vpack.c.b16 %v1045, %v1041
    %v1330 = vpack.c.b16 %v1046, %v1042
    %v1331 = vpack.c.b16 %v1051, %v1047
    %v1332 = vpack.c.b16 %v1052, %v1048
    %v1333 = vpack.c.b16 %v1053, %v1049
    %v1334 = vpack.c.b16 %v1054, %v1050
    %v1335 = vpack.c.b16 %v1059, %v1055
    %v1336 = vpack.c.b16 %v1060, %v1056
    %v1337 = vpack.c.b16 %v1061, %v1057
    %v1338 = vpack.c.b16 %v1062, %v1058
    %v1339 = vpack.c.b16 %v1067, %v1063
    %v1340 = vpack.c.b16 %v1068, %v1064
    %v1341 = vpack.c.b16 %v1069, %v1065
    %v1342 = vpack.c.b16 %v1070, %v1066
    %v1343 = vpack.c.b16 %v1075, %v1071
    %v1344 = vpack.c.b16 %v1076, %v1072
    %v1345 = vpack.c.b16 %v1077, %v1073
    %v1346 = vpack.c.b16 %v1078, %v1074
    %v1347 = vpack.c.b16 %v1083, %v1079
    %v1348 = vpack.c.b16 %v1084, %v1080
    %v1349 = vpack.c.b16 %v1085, %v1081
    %v1350 = vpack.c.b16 %v1086, %v1082
    %v1351 = vpack.c.b16 %v1091, %v1087
    %v1352 = vpack.c.b16 %v1092, %v1088
    %v1353 = vpack.c.b16 %v1093, %v1089
    %v1354 = vpack.c.b16 %v1094, %v1090
    %v1355 = vpack.c.b16 %v1099, %v1095
    %v1356 = vpack.c.b16 %v1100, %v1096
    %v1357 = vpack.c.b16 %v1101, %v1097
    %v1358 = vpack.c.b16 %v1102, %v1098
    %v1359 = vpack.c.b16 %v1107, %v1103
    %v1360 = vpack.c.b16 %v1108, %v1104
    %v1361 = vpack.c.b16 %v1109, %v1105
    %v1362 = vpack.c.b16 %v1110, %v1106
    %v1363 = vpack.c.b16 %v1115, %v1111
    %v1364 = vpack.c.b16 %v1116, %v1112
    %v1365 = vpack.c.b16 %v1117, %v1113
    %v1366 = vpack.c.b16 %v1118, %v1114
    %v1367 = vpack.c.b16 %v1123, %v1119
    %v1368 = vpack.c.b16 %v1124, %v1120
    %v1369 = vpack.c.b16 %v1125, %v1121
    %v1370 = vpack.c.b16 %v1126, %v1122
    %v1371 = vpack.c.b16 %v1131, %v1127
    %v1372 = vpack.c.b16 %v1132, %v1128
    %v1373 = vpack.c.b16 %v1133, %v1129
    %v1374 = vpack.c.b16 %v1134, %v1130
    %v1375 = vpack.c.b16 %v1139, %v1135
    %v1376 = vpack.c.b16 %v1140, %v1136
    %v1377 = vpack.c.b16 %v1141, %v1137
    %v1378 = vpack.c.b16 %v1142, %v1138
    %v1379 = vpack.c.b16 %v1147, %v1143
    %v1380 = vpack.c.b16 %v1148, %v1144
    %v1381 = vpack.c.b16 %v1149, %v1145
    %v1382 = vpack.c.b16 %v1150, %v1146
    %v1383 = vpack.c.b16 %v1155, %v1151
    %v1384 = vpack.c.b16 %v1156, %v1152
    %v1385 = vpack.c.b16 %v1157, %v1153
    %v1386 = vpack.c.b16 %v1158, %v1154
    %v1387 = vpack.c.b16 %v1163, %v1159
    %v1388 = vpack.c.b16 %v1164, %v1160
    %v1389 = vpack.c.b16 %v1165, %v1161
    %v1390 = vpack.c.b16 %v1166, %v1162
    %1615 = vmatprep.subr.bf16.mxu0 %v1168
    %1616 = vmatpush1.bf16.msra.mxu0 %v1167
    %1617 = vmatprep.subr.bf16.mxu0 %v1172
    %1618 = vmatpush1.bf16.msra.mxu0 %v1171
    %1619 = vmatprep.subr.bf16.mxu0 %v1176
    %1620 = vmatpush1.bf16.msra.mxu0 %v1175
    %1621 = vmatprep.subr.bf16.mxu0 %v1180
    %1622 = vmatpush1.bf16.msra.mxu0 %v1179
    %1623 = vmatprep.subr.bf16.mxu0 %v1184
    %1624 = vmatpush1.bf16.msra.mxu0 %v1183
    %1625 = vmatprep.subr.bf16.mxu0 %v1188
    %1626 = vmatpush1.bf16.msra.mxu0 %v1187
    %1627 = vmatprep.subr.bf16.mxu0 %v1192
    %1628 = vmatpush1.bf16.msra.mxu0 %v1191
    %1629 = vmatprep.subr.bf16.mxu0 %v1196
    %1630 = vmatpush1.bf16.msra.mxu0 %v1195
    %1631 = vmatprep.subr.bf16.mxu0 %v1200
    %1632 = vmatpush1.bf16.msra.mxu0 %v1199
    %1633 = vmatprep.subr.bf16.mxu0 %v1204
    %1634 = vmatpush1.bf16.msra.mxu0 %v1203
    %1635 = vmatprep.subr.bf16.mxu0 %v1208
    %1636 = vmatpush1.bf16.msra.mxu0 %v1207
    %1637 = vmatprep.subr.bf16.mxu0 %v1212
    %1638 = vmatpush1.bf16.msra.mxu0 %v1211
    %1639 = vmatprep.subr.bf16.mxu0 %v1216
    %1640 = vmatpush1.bf16.msra.mxu0 %v1215
    %1641 = vmatprep.subr.bf16.mxu0 %v1220
    %1642 = vmatpush1.bf16.msra.mxu0 %v1219
    %1643 = vmatprep.subr.bf16.mxu0 %v1224
    %1644 = vmatpush1.bf16.msra.mxu0 %v1223
    %1645 = vmatprep.subr.bf16.mxu0 %v1228
    %1646 = vmatpush1.bf16.msra.mxu0 %v1227
    %1647 = vmatprep.mubr.bf16.mxu0 %v243
    %1648 = vmatmul.mubr.bf16.gmra.mrb[0].mxu0 %v242
    %v1649 = vpop.f32.mrb[0].mxu0
    %v1650 = vadd.f32 %v478, %v1649
    %v1651 = vpop.f32.mrb[0].mxu0
    %v1652 = vadd.f32 %v482, %v1651
    %v1653 = vpop.f32.mrb[0].mxu0
    %v1654 = vpop.f32.mrb[0].mxu0
    %1655 = vdwg.mxu0
    %1656 = vmatprep.subr.bf16.mxu0 %v1232
    %1657 = vmatpush1.bf16.msra.mxu0 %v1231
    %1658 = vmatprep.subr.bf16.mxu0 %v1236
    %1659 = vmatpush1.bf16.msra.mxu0 %v1235
    %1660 = vmatprep.subr.bf16.mxu0 %v1240
    %1661 = vmatpush1.bf16.msra.mxu0 %v1239
    %1662 = vmatprep.subr.bf16.mxu0 %v1244
    %1663 = vmatpush1.bf16.msra.mxu0 %v1243
    %1664 = vmatprep.subr.bf16.mxu0 %v1248
    %1665 = vmatpush1.bf16.msra.mxu0 %v1247
    %1666 = vmatprep.subr.bf16.mxu0 %v1252
    %1667 = vmatpush1.bf16.msra.mxu0 %v1251
    %1668 = vmatprep.subr.bf16.mxu0 %v1256
    %1669 = vmatpush1.bf16.msra.mxu0 %v1255
    %1670 = vmatprep.subr.bf16.mxu0 %v1260
    %1671 = vmatpush1.bf16.msra.mxu0 %v1259
    %1672 = vmatprep.subr.bf16.mxu0 %v1264
    %1673 = vmatpush1.bf16.msra.mxu0 %v1263
    %1674 = vmatprep.subr.bf16.mxu0 %v1268
    %1675 = vmatpush1.bf16.msra.mxu0 %v1267
    %1676 = vmatprep.subr.bf16.mxu0 %v1272
    %1677 = vmatpush1.bf16.msra.mxu0 %v1271
    %1678 = vmatprep.subr.bf16.mxu0 %v1276
    %1679 = vmatpush1.bf16.msra.mxu0 %v1275
    %1680 = vmatprep.subr.bf16.mxu0 %v1280
    %1681 = vmatpush1.bf16.msra.mxu0 %v1279
    %1682 = vmatprep.subr.bf16.mxu0 %v1284
    %1683 = vmatpush1.bf16.msra.mxu0 %v1283
    %1684 = vmatprep.subr.bf16.mxu0 %v1288
    %1685 = vmatpush1.bf16.msra.mxu0 %v1287
    %1686 = vmatprep.subr.bf16.mxu0 %v1292
    %1687 = vmatpush1.bf16.msra.mxu0 %v1291
    %1688 = vmatprep.mubr.bf16.mxu0 %v245
    %1689 = vmatmul.mubr.bf16.gmra.mrb[0].mxu0 %v244
    %v1690 = vpop.f32.mrb[0].mxu0
    %v1691 = vadd.f32 %v1650, %v1690
    %v1692 = vpop.f32.mrb[0].mxu0
    %v1693 = vadd.f32 %v1652, %v1692
    %v1694 = vpop.f32.mrb[0].mxu0
    %v1695 = vpop.f32.mrb[0].mxu0
    %1696 = vdwg.mxu0
    %1697 = vmatprep.subr.bf16.mxu0 %v1296
    %1698 = vmatpush1.bf16.msra.mxu0 %v1295
    %1699 = vmatprep.subr.bf16.mxu0 %v1300
    %1700 = vmatpush1.bf16.msra.mxu0 %v1299
    %1701 = vmatprep.subr.bf16.mxu0 %v1304
    %1702 = vmatpush1.bf16.msra.mxu0 %v1303
    %1703 = vmatprep.subr.bf16.mxu0 %v1308
    %1704 = vmatpush1.bf16.msra.mxu0 %v1307
    %1705 = vmatprep.subr.bf16.mxu0 %v1312
    %1706 = vmatpush1.bf16.msra.mxu0 %v1311
    %1707 = vmatprep.subr.bf16.mxu0 %v1316
    %1708 = vmatpush1.bf16.msra.mxu0 %v1315
    %1709 = vmatprep.subr.bf16.mxu0 %v1320
    %1710 = vmatpush1.bf16.msra.mxu0 %v1319
    %1711 = vmatprep.subr.bf16.mxu0 %v1324
    %1712 = vmatpush1.bf16.msra.mxu0 %v1323
    %1713 = vmatprep.subr.bf16.mxu0 %v1328
    %1714 = vmatpush1.bf16.msra.mxu0 %v1327
    %1715 = vmatprep.subr.bf16.mxu0 %v1332
    %1716 = vmatpush1.bf16.msra.mxu0 %v1331
    %1717 = vmatprep.subr.bf16.mxu0 %v1336
    %1718 = vmatpush1.bf16.msra.mxu0 %v1335
    %1719 = vmatprep.subr.bf16.mxu0 %v1340
    %1720 = vmatpush1.bf16.msra.mxu0 %v1339
    %1721 = vmatprep.subr.bf16.mxu0 %v1344
    %1722 = vmatpush1.bf16.msra.mxu0 %v1343
    %1723 = vmatprep.subr.bf16.mxu0 %v1348
    %1724 = vmatpush1.bf16.msra.mxu0 %v1347
    %1725 = vmatprep.subr.bf16.mxu0 %v1352
    %1726 = vmatpush1.bf16.msra.mxu0 %v1351
    %1727 = vmatprep.subr.bf16.mxu0 %v1356
    %1728 = vmatpush1.bf16.msra.mxu0 %v1355
    %1729 = vmatprep.mubr.bf16.mxu0 %v247
    %1730 = vmatmul.mubr.bf16.gmra.mrb[0].mxu0 %v246
    %v1731 = vpop.f32.mrb[0].mxu0
    %v1732 = vadd.f32 %v1691, %v1731
    %v1733 = vpop.f32.mrb[0].mxu0
    %v1734 = vadd.f32 %v1693, %v1733
    %v1735 = vpop.f32.mrb[0].mxu0
    %v1736 = vpop.f32.mrb[0].mxu0
    %1737 = vdwg.mxu0
    %1738 = vmatprep.subr.bf16.mxu0 %v1360
    %1739 = vmatpush1.bf16.msra.mxu0 %v1359
    %1740 = vmatprep.subr.bf16.mxu0 %v1364
    %1741 = vmatpush1.bf16.msra.mxu0 %v1363
    %1742 = vmatprep.subr.bf16.mxu0 %v1368
    %1743 = vmatpush1.bf16.msra.mxu0 %v1367
    %1744 = vmatprep.subr.bf16.mxu0 %v1372
    %1745 = vmatpush1.bf16.msra.mxu0 %v1371
    %1746 = vmatprep.subr.bf16.mxu0 %v1376
    %1747 = vmatpush1.bf16.msra.mxu0 %v1375
    %1748 = vmatprep.subr.bf16.mxu0 %v1380
    %1749 = vmatpush1.bf16.msra.mxu0 %v1379
    %1750 = vmatprep.subr.bf16.mxu0 %v1384
    %1751 = vmatpush1.bf16.msra.mxu0 %v1383
    %1752 = vmatprep.subr.bf16.mxu0 %v1388
    %1753 = vmatpush1.bf16.msra.mxu0 %v1387
    %1754 = vmatprep.subr.bf16.mxu0 0
    %1755 = vmatpush1.bf16.msra.mxu0 0
    %1756 = vmatprep.subr.bf16.mxu0 0
    %1757 = vmatpush1.bf16.msra.mxu0 0
    %1758 = vmatprep.subr.bf16.mxu0 0
    %1759 = vmatpush1.bf16.msra.mxu0 0
    %1760 = vmatprep.subr.bf16.mxu0 0
    %1761 = vmatpush1.bf16.msra.mxu0 0
    %1762 = vmatprep.subr.bf16.mxu0 0
    %1763 = vmatpush1.bf16.msra.mxu0 0
    %1764 = vmatprep.subr.bf16.mxu0 0
    %1765 = vmatpush1.bf16.msra.mxu0 0
    %1766 = vmatprep.subr.bf16.mxu0 0
    %1767 = vmatpush1.bf16.msra.mxu0 0
    %1768 = vmatprep.subr.bf16.mxu0 0
    %1769 = vmatpush1.bf16.msra.mxu0 0
    %1770 = vmatprep.mubr.bf16.mxu0 0
    %1771 = vmatmul.mubr.bf16.gmra.mrb[0].mxu0 %v248
    %v1772 = vpop.f32.mrb[0].mxu0
    %v1773 = vadd.f32 %v1732, %v1772
    %v1774 = vpop.f32.mrb[0].mxu0
    %v1775 = vadd.f32 %v1734, %v1774
    %v1776 = vpop.f32.mrb[0].mxu0
    %v1777 = vpop.f32.mrb[0].mxu0
    %1778 = vdwg.mxu0
    %1779 = vmatprep.subr.bf16.mxu0 %v1170
    %1780 = vmatpush1.bf16.msra.mxu0 %v1169
    %1781 = vmatprep.subr.bf16.mxu0 %v1174
    %1782 = vmatpush1.bf16.msra.mxu0 %v1173
    %1783 = vmatprep.subr.bf16.mxu0 %v1178
    %1784 = vmatpush1.bf16.msra.mxu0 %v1177
    %1785 = vmatprep.subr.bf16.mxu0 %v1182
    %1786 = vmatpush1.bf16.msra.mxu0 %v1181
    %1787 = vmatprep.subr.bf16.mxu0 %v1186
    %1788 = vmatpush1.bf16.msra.mxu0 %v1185
    %1789 = vmatprep.subr.bf16.mxu0 %v1190
    %1790 = vmatpush1.bf16.msra.mxu0 %v1189
    %1791 = vmatprep.subr.bf16.mxu0 %v1194
    %1792 = vmatpush1.bf16.msra.mxu0 %v1193
    %1793 = vmatprep.subr.bf16.mxu0 %v1198
    %1794 = vmatpush1.bf16.msra.mxu0 %v1197
    %1795 = vmatprep.subr.bf16.mxu0 %v1202
    %1796 = vmatpush1.bf16.msra.mxu0 %v1201
    %1797 = vmatprep.subr.bf16.mxu0 %v1206
    %1798 = vmatpush1.bf16.msra.mxu0 %v1205
    %1799 = vmatprep.subr.bf16.mxu0 %v1210
    %1800 = vmatpush1.bf16.msra.mxu0 %v1209
    %1801 = vmatprep.subr.bf16.mxu0 %v1214
    %1802 = vmatpush1.bf16.msra.mxu0 %v1213
    %1803 = vmatprep.subr.bf16.mxu0 %v1218
    %1804 = vmatpush1.bf16.msra.mxu0 %v1217
    %1805 = vmatprep.subr.bf16.mxu0 %v1222
    %1806 = vmatpush1.bf16.msra.mxu0 %v1221
    %1807 = vmatprep.subr.bf16.mxu0 %v1226
    %1808 = vmatpush1.bf16.msra.mxu0 %v1225
    %1809 = vmatprep.subr.bf16.mxu0 %v1230
    %1810 = vmatpush1.bf16.msra.mxu0 %v1229
    %1811 = vmatprep.mubr.bf16.mxu0 %v243
    %1812 = vmatmul.mubr.bf16.gmra.mrb[0].mxu0 %v242
    %v1813 = vpop.f32.mrb[0].mxu0
    %v1814 = vadd.f32 %v486, %v1813
    %v1815 = vpop.f32.mrb[0].mxu0
    %v1816 = vadd.f32 %v490, %v1815
    %v1817 = vpop.f32.mrb[0].mxu0
    %v1818 = vpop.f32.mrb[0].mxu0
    %1819 = vdwg.mxu0
    %1820 = vmatprep.subr.bf16.mxu0 %v1234
    %1821 = vmatpush1.bf16.msra.mxu0 %v1233
    %1822 = vmatprep.subr.bf16.mxu0 %v1238
    %1823 = vmatpush1.bf16.msra.mxu0 %v1237
    %1824 = vmatprep.subr.bf16.mxu0 %v1242
    %1825 = vmatpush1.bf16.msra.mxu0 %v1241
    %1826 = vmatprep.subr.bf16.mxu0 %v1246
    %1827 = vmatpush1.bf16.msra.mxu0 %v1245
    %1828 = vmatprep.subr.bf16.mxu0 %v1250
    %1829 = vmatpush1.bf16.msra.mxu0 %v1249
    %1830 = vmatprep.subr.bf16.mxu0 %v1254
    %1831 = vmatpush1.bf16.msra.mxu0 %v1253
    %1832 = vmatprep.subr.bf16.mxu0 %v1258
    %1833 = vmatpush1.bf16.msra.mxu0 %v1257
    %1834 = vmatprep.subr.bf16.mxu0 %v1262
    %1835 = vmatpush1.bf16.msra.mxu0 %v1261
    %1836 = vmatprep.subr.bf16.mxu0 %v1266
    %1837 = vmatpush1.bf16.msra.mxu0 %v1265
    %1838 = vmatprep.subr.bf16.mxu0 %v1270
    %1839 = vmatpush1.bf16.msra.mxu0 %v1269
    %1840 = vmatprep.subr.bf16.mxu0 %v1274
    %1841 = vmatpush1.bf16.msra.mxu0 %v1273
    %1842 = vmatprep.subr.bf16.mxu0 %v1278
    %1843 = vmatpush1.bf16.msra.mxu0 %v1277
    %1844 = vmatprep.subr.bf16.mxu0 %v1282
    %1845 = vmatpush1.bf16.msra.mxu0 %v1281
    %1846 = vmatprep.subr.bf16.mxu0 %v1286
    %1847 = vmatpush1.bf16.msra.mxu0 %v1285
    %1848 = vmatprep.subr.bf16.mxu0 %v1290
    %1849 = vmatpush1.bf16.msra.mxu0 %v1289
    %1850 = vmatprep.subr.bf16.mxu0 %v1294
    %1851 = vmatpush1.bf16.msra.mxu0 %v1293
    %1852 = vmatprep.mubr.bf16.mxu0 %v245
    %1853 = vmatmul.mubr.bf16.gmra.mrb[0].mxu0 %v244
    %v1854 = vpop.f32.mrb[0].mxu0
    %v1855 = vadd.f32 %v1814, %v1854
    %v1856 = vpop.f32.mrb[0].mxu0
    %v1857 = vadd.f32 %v1816, %v1856
    %v1858 = vpop.f32.mrb[0].mxu0
    %v1859 = vpop.f32.mrb[0].mxu0
    %1860 = vdwg.mxu0
    %1861 = vmatprep.subr.bf16.mxu0 %v1298
    %1862 = vmatpush1.bf16.msra.mxu0 %v1297
    %1863 = vmatprep.subr.bf16.mxu0 %v1302
    %1864 = vmatpush1.bf16.msra.mxu0 %v1301
    %1865 = vmatprep.subr.bf16.mxu0 %v1306
    %1866 = vmatpush1.bf16.msra.mxu0 %v1305
    %1867 = vmatprep.subr.bf16.mxu0 %v1310
    %1868 = vmatpush1.bf16.msra.mxu0 %v1309
    %1869 = vmatprep.subr.bf16.mxu0 %v1314
    %1870 = vmatpush1.bf16.msra.mxu0 %v1313
    %1871 = vmatprep.subr.bf16.mxu0 %v1318
    %1872 = vmatpush1.bf16.msra.mxu0 %v1317
    %1873 = vmatprep.subr.bf16.mxu0 %v1322
    %1874 = vmatpush1.bf16.msra.mxu0 %v1321
    %1875 = vmatprep.subr.bf16.mxu0 %v1326
    %1876 = vmatpush1.bf16.msra.mxu0 %v1325
    %1877 = vmatprep.subr.bf16.mxu0 %v1330
    %1878 = vmatpush1.bf16.msra.mxu0 %v1329
    %1879 = vmatprep.subr.bf16.mxu0 %v1334
    %1880 = vmatpush1.bf16.msra.mxu0 %v1333
    %1881 = vmatprep.subr.bf16.mxu0 %v1338
    %1882 = vmatpush1.bf16.msra.mxu0 %v1337
    %1883 = vmatprep.subr.bf16.mxu0 %v1342
    %1884 = vmatpush1.bf16.msra.mxu0 %v1341
    %1885 = vmatprep.subr.bf16.mxu0 %v1346
    %1886 = vmatpush1.bf16.msra.mxu0 %v1345
    %1887 = vmatprep.subr.bf16.mxu0 %v1350
    %1888 = vmatpush1.bf16.msra.mxu0 %v1349
    %1889 = vmatprep.subr.bf16.mxu0 %v1354
    %1890 = vmatpush1.bf16.msra.mxu0 %v1353
    %1891 = vmatprep.subr.bf16.mxu0 %v1358
    %1892 = vmatpush1.bf16.msra.mxu0 %v1357
    %1893 = vmatprep.mubr.bf16.mxu0 %v247
    %1894 = vmatmul.mubr.bf16.gmra.mrb[0].mxu0 %v246
    %v1895 = vpop.f32.mrb[0].mxu0
    %v1896 = vadd.f32 %v1855, %v1895
    %v1897 = vpop.f32.mrb[0].mxu0
    %v1898 = vadd.f32 %v1857, %v1897
    %v1899 = vpop.f32.mrb[0].mxu0
    %v1900 = vpop.f32.mrb[0].mxu0
    %1901 = vdwg.mxu0
    %1902 = vmatprep.subr.bf16.mxu0 %v1362
    %1903 = vmatpush1.bf16.msra.mxu0 %v1361
    %1904 = vmatprep.subr.bf16.mxu0 %v1366
    %1905 = vmatpush1.bf16.msra.mxu0 %v1365
    %1906 = vmatprep.subr.bf16.mxu0 %v1370
    %1907 = vmatpush1.bf16.msra.mxu0 %v1369
    %1908 = vmatprep.subr.bf16.mxu0 %v1374
    %1909 = vmatpush1.bf16.msra.mxu0 %v1373
    %1910 = vmatprep.subr.bf16.mxu0 %v1378
    %1911 = vmatpush1.bf16.msra.mxu0 %v1377
    %1912 = vmatprep.subr.bf16.mxu0 %v1382
    %1913 = vmatpush1.bf16.msra.mxu0 %v1381
    %1914 = vmatprep.subr.bf16.mxu0 %v1386
    %1915 = vmatpush1.bf16.msra.mxu0 %v1385
    %1916 = vmatprep.subr.bf16.mxu0 %v1390
    %1917 = vmatpush1.bf16.msra.mxu0 %v1389
    %1918 = vmatprep.subr.bf16.mxu0 0
    %1919 = vmatpush1.bf16.msra.mxu0 0
    %1920 = vmatprep.subr.bf16.mxu0 0
    %1921 = vmatpush1.bf16.msra.mxu0 0
    %1922 = vmatprep.subr.bf16.mxu0 0
    %1923 = vmatpush1.bf16.msra.mxu0 0
    %1924 = vmatprep.subr.bf16.mxu0 0
    %1925 = vmatpush1.bf16.msra.mxu0 0
    %1926 = vmatprep.subr.bf16.mxu0 0
    %1927 = vmatpush1.bf16.msra.mxu0 0
    %1928 = vmatprep.subr.bf16.mxu0 0
    %1929 = vmatpush1.bf16.msra.mxu0 0
    %1930 = vmatprep.subr.bf16.mxu0 0
    %1931 = vmatpush1.bf16.msra.mxu0 0
    %1932 = vmatprep.subr.bf16.mxu0 0
    %1933 = vmatpush1.bf16.msra.mxu0 0
    %1934 = vmatprep.mubr.bf16.mxu0 0
    %1935 = vmatmul.mubr.bf16.gmra.mrb[0].mxu0 %v248
    %v1936 = vpop.f32.mrb[0].mxu0
    %v1937 = vadd.f32 %v1896, %v1936
    %v1938 = vpop.f32.mrb[0].mxu0
    %v1939 = vadd.f32 %v1898, %v1938
    %v1940 = vpop.f32.mrb[0].mxu0
    %v1941 = vpop.f32.mrb[0].mxu0
    %1942 = vdwg.mxu0
    %v1943 = vmax.f32 %v1773, 0.0
    %v1944 = vmax.f32 %v1775, 0.0
    %v1945 = vmax.f32 %v1937, 0.0
    %v1946 = vmax.f32 %v1939, 0.0
    %v1947 = vpack.c.bf16 %v1943, %v1943
    %v1948 = vpack.c.bf16 %v1944, %v1944
    %v1949 = vpack.c.bf16 %v1945, %v1945
    %v1950 = vpack.c.bf16 %v1946, %v1946
    %v1951 = vld [vmem:[#allocation4] sm:$0xff]
    %v1952 = vld [vmem:[#allocation4 + $0x8] sm:$0xff]
    %v1953 = vld [vmem:[#allocation4 + $0x10] sm:$0xff]
    %v1954 = vld [vmem:[#allocation4 + $0x18] sm:$0xff]
    %v1955 = vld [vmem:[#allocation4 + $0x20] sm:$0xff]
    %v1956 = vld [vmem:[#allocation4 + $0x28] sm:$0xff]
    %v1957 = vld [vmem:[#allocation4 + $0x30] sm:$0xff]
    %v1958 = vld [vmem:[#allocation4 + $0x38] sm:$0xff]
    %v1959 = vld [vmem:[#allocation4 + $0x40] sm:$0xff]
    %v1960 = vld [vmem:[#allocation4 + $0x48] sm:$0xff]
    %v1961 = vld [vmem:[#allocation4 + $0x50] sm:$0xff]
    %v1962 = vld [vmem:[#allocation4 + $0x58] sm:$0xff]
    %v1963 = vld [vmem:[#allocation4 + $0x60] sm:$0xff]
    %v1964 = vld [vmem:[#allocation4 + $0x68] sm:$0xff]
    %v1965 = vld [vmem:[#allocation4 + $0x70] sm:$0xff]
    %v1966 = vld [vmem:[#allocation4 + $0x78] sm:$0xff]
    %v1967 = vld [vmem:[#allocation4 + $0x80] sm:$0xff]
    %v1968 = vld [vmem:[#allocation4 + $0x88] sm:$0xff]
    %v1969 = vld [vmem:[#allocation4 + $0x90] sm:$0xff]
    %v1970 = vld [vmem:[#allocation4 + $0x98] sm:$0xff]
    %v1971 = vld [vmem:[#allocation4 + $0xa0] sm:$0xff]
    %v1972 = vld [vmem:[#allocation4 + $0xa8] sm:$0xff]
    %v1973 = vld [vmem:[#allocation4 + $0xb0] sm:$0xff]
    %v1974 = vld [vmem:[#allocation4 + $0xb8] sm:$0xff]
    %v1975 = vld [vmem:[#allocation4 + $0xc0] sm:$0xff]
    %v1976 = vld [vmem:[#allocation4 + $0xc8] sm:$0xff]
    %v1977 = vld [vmem:[#allocation4 + $0xd0] sm:$0xff]
    %v1978 = vld [vmem:[#allocation4 + $0xd8] sm:$0xff]
    %v1979 = vld [vmem:[#allocation4 + $0xe0] sm:$0xff]
    %v1980 = vld [vmem:[#allocation4 + $0xe8] sm:$0xff]
    %v1981 = vld [vmem:[#allocation4 + $0xf0] sm:$0xff]
    %v1982 = vld [vmem:[#allocation4 + $0xf8] sm:$0xff]
    %v1983 = vld [vmem:[#allocation4 + $0x100] sm:$0xff]
    %v1984 = vld [vmem:[#allocation4 + $0x108] sm:$0xff]
    %v1985 = vld [vmem:[#allocation4 + $0x110] sm:$0xff]
    %v1986 = vld [vmem:[#allocation4 + $0x118] sm:$0xff]
    %v1987 = vld [vmem:[#allocation4 + $0x120] sm:$0xff]
    %v1988 = vld [vmem:[#allocation4 + $0x128] sm:$0xff]
    %v1989 = vld [vmem:[#allocation4 + $0x130] sm:$0xff]
    %v1990 = vld [vmem:[#allocation4 + $0x138] sm:$0xff]
    %v1991 = vld [vmem:[#allocation4 + $0x140] sm:$0xff]
    %v1992 = vld [vmem:[#allocation4 + $0x148] sm:$0xff]
    %v1993 = vld [vmem:[#allocation4 + $0x150] sm:$0xff]
    %v1994 = vld [vmem:[#allocation4 + $0x158] sm:$0xff]
    %v1995 = vld [vmem:[#allocation4 + $0x160] sm:$0xff]
    %v1996 = vld [vmem:[#allocation4 + $0x168] sm:$0xff]
    %v1997 = vld [vmem:[#allocation4 + $0x170] sm:$0xff]
    %v1998 = vld [vmem:[#allocation4 + $0x178] sm:$0xff]
    %v1999 = vld [vmem:[#allocation4 + $0x180] sm:$0xff]
    %v2000 = vld [vmem:[#allocation4 + $0x188] sm:$0xff]
    %v2001 = vld [vmem:[#allocation4 + $0x190] sm:$0xff]
    %v2002 = vld [vmem:[#allocation4 + $0x198] sm:$0xff]
    %v2003 = vld [vmem:[#allocation4 + $0x1a0] sm:$0xff]
    %v2004 = vld [vmem:[#allocation4 + $0x1a8] sm:$0xff]
    %v2005 = vld [vmem:[#allocation4 + $0x1b0] sm:$0xff]
    %v2006 = vld [vmem:[#allocation4 + $0x1b8] sm:$0xff]
    %v2007 = vld [vmem:[#allocation4 + $0x1c0] sm:$0xff]
    %v2008 = vld [vmem:[#allocation4 + $0x1c8] sm:$0xff]
    %v2009 = vld [vmem:[#allocation4 + $0x1d0] sm:$0xff]
    %v2010 = vld [vmem:[#allocation4 + $0x1d8] sm:$0xff]
    %v2011 = vld [vmem:[#allocation4 + $0x1e0] sm:$0xff]
    %v2012 = vld [vmem:[#allocation4 + $0x1e8] sm:$0xff]
    %v2013 = vld [vmem:[#allocation4 + $0x1f0] sm:$0xff]
    %v2014 = vld [vmem:[#allocation4 + $0x1f8] sm:$0xff]
    %v2015 = vld [vmem:[%s12] sm:$0x3]
    %v2017 = vlaneseq
    %v2018 = vshrl.u32 %v2017, 7
    %v2019 = vsub.s32 0, %v2018
    %v2020 = vrot.slane %v2015, %v2019
    %v2021 = vlaneseq
    %v2022 = vshrl.u32 %v2021, 7
    %v2023 = vsub.s32 1, %v2022
    %v2024 = vrot.slane %v2015, %v2023
    %v2091 = vunpack.c.l.b16 %v1951
    %v2092 = vunpack.c.h.b16 %v1951
    %v2093 = vunpack.c.l.b16 %v1952
    %v2094 = vunpack.c.h.b16 %v1952
    %v2095 = vunpack.c.l.b16 %v1953
    %v2096 = vunpack.c.h.b16 %v1953
    %v2097 = vunpack.c.l.b16 %v1954
    %v2098 = vunpack.c.h.b16 %v1954
    %v2099 = vunpack.c.l.b16 %v1955
    %v2100 = vunpack.c.h.b16 %v1955
    %v2101 = vunpack.c.l.b16 %v1956
    %v2102 = vunpack.c.h.b16 %v1956
    %v2103 = vunpack.c.l.b16 %v1957
    %v2104 = vunpack.c.h.b16 %v1957
    %v2105 = vunpack.c.l.b16 %v1958
    %v2106 = vunpack.c.h.b16 %v1958
    %v2107 = vunpack.c.l.b16 %v1959
    %v2108 = vunpack.c.h.b16 %v1959
    %v2109 = vunpack.c.l.b16 %v1960
    %v2110 = vunpack.c.h.b16 %v1960
    %v2111 = vunpack.c.l.b16 %v1961
    %v2112 = vunpack.c.h.b16 %v1961
    %v2113 = vunpack.c.l.b16 %v1962
    %v2114 = vunpack.c.h.b16 %v1962
    %v2115 = vunpack.c.l.b16 %v1963
    %v2116 = vunpack.c.h.b16 %v1963
    %v2117 = vunpack.c.l.b16 %v1964
    %v2118 = vunpack.c.h.b16 %v1964
    %v2119 = vunpack.c.l.b16 %v1965
    %v2120 = vunpack.c.h.b16 %v1965
    %v2121 = vunpack.c.l.b16 %v1966
    %v2122 = vunpack.c.h.b16 %v1966
    %v2123 = vunpack.c.l.b16 %v1967
    %v2124 = vunpack.c.h.b16 %v1967
    %v2125 = vunpack.c.l.b16 %v1968
    %v2126 = vunpack.c.h.b16 %v1968
    %v2127 = vunpack.c.l.b16 %v1969
    %v2128 = vunpack.c.h.b16 %v1969
    %v2129 = vunpack.c.l.b16 %v1970
    %v2130 = vunpack.c.h.b16 %v1970
    %v2131 = vunpack.c.l.b16 %v1971
    %v2132 = vunpack.c.h.b16 %v1971
    %v2133 = vunpack.c.l.b16 %v1972
    %v2134 = vunpack.c.h.b16 %v1972
    %v2135 = vunpack.c.l.b16 %v1973
    %v2136 = vunpack.c.h.b16 %v1973
    %v2137 = vunpack.c.l.b16 %v1974
    %v2138 = vunpack.c.h.b16 %v1974
    %v2139 = vunpack.c.l.b16 %v1975
    %v2140 = vunpack.c.h.b16 %v1975
    %v2141 = vunpack.c.l.b16 %v1976
    %v2142 = vunpack.c.h.b16 %v1976
    %v2143 = vunpack.c.l.b16 %v1977
    %v2144 = vunpack.c.h.b16 %v1977
    %v2145 = vunpack.c.l.b16 %v1978
    %v2146 = vunpack.c.h.b16 %v1978
    %v2147 = vunpack.c.l.b16 %v1979
    %v2148 = vunpack.c.h.b16 %v1979
    %v2149 = vunpack.c.l.b16 %v1980
    %v2150 = vunpack.c.h.b16 %v1980
    %v2151 = vunpack.c.l.b16 %v1981
    %v2152 = vunpack.c.h.b16 %v1981
    %v2153 = vunpack.c.l.b16 %v1982
    %v2154 = vunpack.c.h.b16 %v1982
    %v2155 = vunpack.c.l.b16 %v1983
    %v2156 = vunpack.c.h.b16 %v1983
    %v2157 = vunpack.c.l.b16 %v1984
    %v2158 = vunpack.c.h.b16 %v1984
    %v2159 = vunpack.c.l.b16 %v1985
    %v2160 = vunpack.c.h.b16 %v1985
    %v2161 = vunpack.c.l.b16 %v1986
    %v2162 = vunpack.c.h.b16 %v1986
    %v2163 = vunpack.c.l.b16 %v1987
    %v2164 = vunpack.c.h.b16 %v1987
    %v2165 = vunpack.c.l.b16 %v1988
    %v2166 = vunpack.c.h.b16 %v1988
    %v2167 = vunpack.c.l.b16 %v1989
    %v2168 = vunpack.c.h.b16 %v1989
    %v2169 = vunpack.c.l.b16 %v1990
    %v2170 = vunpack.c.h.b16 %v1990
    %v2171 = vunpack.c.l.b16 %v1991
    %v2172 = vunpack.c.h.b16 %v1991
    %v2173 = vunpack.c.l.b16 %v1992
    %v2174 = vunpack.c.h.b16 %v1992
    %v2175 = vunpack.c.l.b16 %v1993
    %v2176 = vunpack.c.h.b16 %v1993
    %v2177 = vunpack.c.l.b16 %v1994
    %v2178 = vunpack.c.h.b16 %v1994
    %v2179 = vunpack.c.l.b16 %v1995
    %v2180 = vunpack.c.h.b16 %v1995
    %v2181 = vunpack.c.l.b16 %v1996
    %v2182 = vunpack.c.h.b16 %v1996
    %v2183 = vunpack.c.l.b16 %v1997
    %v2184 = vunpack.c.h.b16 %v1997
    %v2185 = vunpack.c.l.b16 %v1998
    %v2186 = vunpack.c.h.b16 %v1998
    %v2187 = vunpack.c.l.b16 %v1999
    %v2188 = vunpack.c.h.b16 %v1999
    %v2189 = vunpack.c.l.b16 %v2000
    %v2190 = vunpack.c.h.b16 %v2000
    %v2191 = vunpack.c.l.b16 %v2001
    %v2192 = vunpack.c.h.b16 %v2001
    %v2193 = vunpack.c.l.b16 %v2002
    %v2194 = vunpack.c.h.b16 %v2002
    %v2195 = vunpack.c.l.b16 %v2003
    %v2196 = vunpack.c.h.b16 %v2003
    %v2197 = vunpack.c.l.b16 %v2004
    %v2198 = vunpack.c.h.b16 %v2004
    %v2199 = vunpack.c.l.b16 %v2005
    %v2200 = vunpack.c.h.b16 %v2005
    %v2201 = vunpack.c.l.b16 %v2006
    %v2202 = vunpack.c.h.b16 %v2006
    %v2203 = vunpack.c.l.b16 %v2007
    %v2204 = vunpack.c.h.b16 %v2007
    %v2205 = vunpack.c.l.b16 %v2008
    %v2206 = vunpack.c.h.b16 %v2008
    %v2207 = vunpack.c.l.b16 %v2009
    %v2208 = vunpack.c.h.b16 %v2009
    %v2209 = vunpack.c.l.b16 %v2010
    %v2210 = vunpack.c.h.b16 %v2010
    %v2211 = vunpack.c.l.b16 %v2011
    %v2212 = vunpack.c.h.b16 %v2011
    %v2213 = vunpack.c.l.b16 %v2012
    %v2214 = vunpack.c.h.b16 %v2012
    %v2215 = vunpack.c.l.b16 %v2013
    %v2216 = vunpack.c.h.b16 %v2013
    %v2217 = vunpack.c.l.b16 %v2014
    %v2218 = vunpack.c.h.b16 %v2014
    %v2219 = vpack.c.b16 %v2093, %v2091
    %v2220 = vpack.c.b16 %v2094, %v2092
    %v2221 = vpack.c.b16 %v2097, %v2095
    %v2222 = vpack.c.b16 %v2098, %v2096
    %v2223 = vpack.c.b16 %v2101, %v2099
    %v2224 = vpack.c.b16 %v2102, %v2100
    %v2225 = vpack.c.b16 %v2105, %v2103
    %v2226 = vpack.c.b16 %v2106, %v2104
    %v2227 = vpack.c.b16 %v2109, %v2107
    %v2228 = vpack.c.b16 %v2110, %v2108
    %v2229 = vpack.c.b16 %v2113, %v2111
    %v2230 = vpack.c.b16 %v2114, %v2112
    %v2231 = vpack.c.b16 %v2117, %v2115
    %v2232 = vpack.c.b16 %v2118, %v2116
    %v2233 = vpack.c.b16 %v2121, %v2119
    %v2234 = vpack.c.b16 %v2122, %v2120
    %v2235 = vpack.c.b16 %v2125, %v2123
    %v2236 = vpack.c.b16 %v2126, %v2124
    %v2237 = vpack.c.b16 %v2129, %v2127
    %v2238 = vpack.c.b16 %v2130, %v2128
    %v2239 = vpack.c.b16 %v2133, %v2131
    %v2240 = vpack.c.b16 %v2134, %v2132
    %v2241 = vpack.c.b16 %v2137, %v2135
    %v2242 = vpack.c.b16 %v2138, %v2136
    %v2243 = vpack.c.b16 %v2141, %v2139
    %v2244 = vpack.c.b16 %v2142, %v2140
    %v2245 = vpack.c.b16 %v2145, %v2143
    %v2246 = vpack.c.b16 %v2146, %v2144
    %v2247 = vpack.c.b16 %v2149, %v2147
    %v2248 = vpack.c.b16 %v2150, %v2148
    %v2249 = vpack.c.b16 %v2153, %v2151
    %v2250 = vpack.c.b16 %v2154, %v2152
    %v2251 = vpack.c.b16 %v2157, %v2155
    %v2252 = vpack.c.b16 %v2158, %v2156
    %v2253 = vpack.c.b16 %v2161, %v2159
    %v2254 = vpack.c.b16 %v2162, %v2160
    %v2255 = vpack.c.b16 %v2165, %v2163
    %v2256 = vpack.c.b16 %v2166, %v2164
    %v2257 = vpack.c.b16 %v2169, %v2167
    %v2258 = vpack.c.b16 %v2170, %v2168
    %v2259 = vpack.c.b16 %v2173, %v2171
    %v2260 = vpack.c.b16 %v2174, %v2172
    %v2261 = vpack.c.b16 %v2177, %v2175
    %v2262 = vpack.c.b16 %v2178, %v2176
    %v2263 = vpack.c.b16 %v2181, %v2179
    %v2264 = vpack.c.b16 %v2182, %v2180
    %v2265 = vpack.c.b16 %v2185, %v2183
    %v2266 = vpack.c.b16 %v2186, %v2184
    %v2267 = vpack.c.b16 %v2189, %v2187
    %v2268 = vpack.c.b16 %v2190, %v2188
    %v2269 = vpack.c.b16 %v2193, %v2191
    %v2270 = vpack.c.b16 %v2194, %v2192
    %v2271 = vpack.c.b16 %v2197, %v2195
    %v2272 = vpack.c.b16 %v2198, %v2196
    %v2273 = vpack.c.b16 %v2201, %v2199
    %v2274 = vpack.c.b16 %v2202, %v2200
    %v2275 = vpack.c.b16 %v2205, %v2203
    %v2276 = vpack.c.b16 %v2206, %v2204
    %v2277 = vpack.c.b16 %v2209, %v2207
    %v2278 = vpack.c.b16 %v2210, %v2208
    %v2279 = vpack.c.b16 %v2213, %v2211
    %v2280 = vpack.c.b16 %v2214, %v2212
    %v2281 = vpack.c.b16 %v2217, %v2215
    %v2282 = vpack.c.b16 %v2218, %v2216
    %2347 = vmatprep.subr.bf16.mxu0 %v2220
    %2348 = vmatpush1.bf16.msra.mxu0 %v2219
    %2349 = vmatprep.subr.bf16.mxu0 %v2222
    %2350 = vmatpush1.bf16.msra.mxu0 %v2221
    %2351 = vmatprep.subr.bf16.mxu0 %v2224
    %2352 = vmatpush1.bf16.msra.mxu0 %v2223
    %2353 = vmatprep.subr.bf16.mxu0 %v2226
    %2354 = vmatpush1.bf16.msra.mxu0 %v2225
    %2355 = vmatprep.subr.bf16.mxu0 %v2228
    %2356 = vmatpush1.bf16.msra.mxu0 %v2227
    %2357 = vmatprep.subr.bf16.mxu0 %v2230
    %2358 = vmatpush1.bf16.msra.mxu0 %v2229
    %2359 = vmatprep.subr.bf16.mxu0 %v2232
    %2360 = vmatpush1.bf16.msra.mxu0 %v2231
    %2361 = vmatprep.subr.bf16.mxu0 %v2234
    %2362 = vmatpush1.bf16.msra.mxu0 %v2233
    %2363 = vmatprep.subr.bf16.mxu0 %v2236
    %2364 = vmatpush1.bf16.msra.mxu0 %v2235
    %2365 = vmatprep.subr.bf16.mxu0 %v2238
    %2366 = vmatpush1.bf16.msra.mxu0 %v2237
    %2367 = vmatprep.subr.bf16.mxu0 %v2240
    %2368 = vmatpush1.bf16.msra.mxu0 %v2239
    %2369 = vmatprep.subr.bf16.mxu0 %v2242
    %2370 = vmatpush1.bf16.msra.mxu0 %v2241
    %2371 = vmatprep.subr.bf16.mxu0 %v2244
    %2372 = vmatpush1.bf16.msra.mxu0 %v2243
    %2373 = vmatprep.subr.bf16.mxu0 %v2246
    %2374 = vmatpush1.bf16.msra.mxu0 %v2245
    %2375 = vmatprep.subr.bf16.mxu0 %v2248
    %2376 = vmatpush1.bf16.msra.mxu0 %v2247
    %2377 = vmatprep.subr.bf16.mxu0 %v2250
    %2378 = vmatpush1.bf16.msra.mxu0 %v2249
    %2379 = vmatprep.mubr.bf16.mxu0 %v1948
    %2380 = vmatmul.mubr.bf16.gmra.mrb[0].mxu0 %v1947
    %v2381 = vpop.f32.mrb[0].mxu0
    %v2382 = vadd.f32 %v2020, %v2381
    %v2383 = vpop.f32.mrb[0].mxu0
    %v2384 = vadd.f32 %v2024, %v2383
    %v2385 = vpop.f32.mrb[0].mxu0
    %v2386 = vpop.f32.mrb[0].mxu0
    %2387 = vdwg.mxu0
    %2388 = vmatprep.subr.bf16.mxu0 %v2252
    %2389 = vmatpush1.bf16.msra.mxu0 %v2251
    %2390 = vmatprep.subr.bf16.mxu0 %v2254
    %2391 = vmatpush1.bf16.msra.mxu0 %v2253
    %2392 = vmatprep.subr.bf16.mxu0 %v2256
    %2393 = vmatpush1.bf16.msra.mxu0 %v2255
    %2394 = vmatprep.subr.bf16.mxu0 %v2258
    %2395 = vmatpush1.bf16.msra.mxu0 %v2257
    %2396 = vmatprep.subr.bf16.mxu0 %v2260
    %2397 = vmatpush1.bf16.msra.mxu0 %v2259
    %2398 = vmatprep.subr.bf16.mxu0 %v2262
    %2399 = vmatpush1.bf16.msra.mxu0 %v2261
    %2400 = vmatprep.subr.bf16.mxu0 %v2264
    %2401 = vmatpush1.bf16.msra.mxu0 %v2263
    %2402 = vmatprep.subr.bf16.mxu0 %v2266
    %2403 = vmatpush1.bf16.msra.mxu0 %v2265
    %2404 = vmatprep.subr.bf16.mxu0 %v2268
    %2405 = vmatpush1.bf16.msra.mxu0 %v2267
    %2406 = vmatprep.subr.bf16.mxu0 %v2270
    %2407 = vmatpush1.bf16.msra.mxu0 %v2269
    %2408 = vmatprep.subr.bf16.mxu0 %v2272
    %2409 = vmatpush1.bf16.msra.mxu0 %v2271
    %2410 = vmatprep.subr.bf16.mxu0 %v2274
    %2411 = vmatpush1.bf16.msra.mxu0 %v2273
    %2412 = vmatprep.subr.bf16.mxu0 %v2276
    %2413 = vmatpush1.bf16.msra.mxu0 %v2275
    %2414 = vmatprep.subr.bf16.mxu0 %v2278
    %2415 = vmatpush1.bf16.msra.mxu0 %v2277
    %2416 = vmatprep.subr.bf16.mxu0 %v2280
    %2417 = vmatpush1.bf16.msra.mxu0 %v2279
    %2418 = vmatprep.subr.bf16.mxu0 %v2282
    %2419 = vmatpush1.bf16.msra.mxu0 %v2281
    %2420 = vmatprep.mubr.bf16.mxu0 %v1950
    %2421 = vmatmul.mubr.bf16.gmra.mrb[0].mxu0 %v1949
    %v2422 = vpop.f32.mrb[0].mxu0
    %v2423 = vadd.f32 %v2382, %v2422
    %v2424 = vpop.f32.mrb[0].mxu0
    %v2425 = vadd.f32 %v2384, %v2424
    %v2426 = vpop.f32.mrb[0].mxu0
    %v2427 = vpop.f32.mrb[0].mxu0
    %2428 = vdwg.mxu0
    %v2429 = vmax.f32 %v2423, 0.0
    %v2430 = vmax.f32 %v2425, 0.0
    %v2431 = vpack.c.bf16 %v2429, %v2429
    %v2432 = vpack.c.bf16 %v2430, %v2430
    %v2433 = vld [vmem:[%s3] sm:$0xf]
    %v2434 = vld [vmem:[%s3 + $0x4] sm:$0xf]
    %v2435 = vld [vmem:[%s3 + $0x8] sm:$0xf]
    %v2436 = vld [vmem:[%s3 + $0xc] sm:$0xf]
    %v2437 = vld [vmem:[%s3 + $0x10] sm:$0xf]
    %v2438 = vld [vmem:[%s3 + $0x14] sm:$0xf]
    %v2439 = vld [vmem:[%s3 + $0x18] sm:$0xf]
    %v2440 = vld [vmem:[%s3 + $0x1c] sm:$0xf]
    %v2441 = vld [vmem:[%s3 + $0x20] sm:$0xf]
    %v2442 = vld [vmem:[%s3 + $0x24] sm:$0xf]
    %v2443 = vld [vmem:[%s3 + $0x28] sm:$0xf]
    %v2444 = vld [vmem:[%s3 + $0x2c] sm:$0xf]
    %v2445 = vld [vmem:[%s3 + $0x30] sm:$0xf]
    %v2446 = vld [vmem:[%s3 + $0x34] sm:$0xf]
    %v2447 = vld [vmem:[%s3 + $0x38] sm:$0xf]
    %v2448 = vld [vmem:[%s3 + $0x3c] sm:$0xf]
    %v2449 = vld [vmem:[%s3 + $0x40] sm:$0xf]
    %v2450 = vld [vmem:[%s3 + $0x44] sm:$0xf]
    %v2451 = vld [vmem:[%s3 + $0x48] sm:$0xf]
    %v2452 = vld [vmem:[%s3 + $0x4c] sm:$0xf]
    %v2453 = vld [vmem:[%s3 + $0x50] sm:$0xf]
    %v2454 = vld [vmem:[%s3 + $0x54] sm:$0xf]
    %v2455 = vld [vmem:[%s3 + $0x58] sm:$0xf]
    %v2456 = vld [vmem:[%s3 + $0x5c] sm:$0xf]
    %v2457 = vld [vmem:[%s3 + $0x60] sm:$0xf]
    %v2458 = vld [vmem:[%s3 + $0x64] sm:$0xf]
    %v2459 = vld [vmem:[%s3 + $0x68] sm:$0xf]
    %v2460 = vld [vmem:[%s3 + $0x6c] sm:$0xf]
    %v2461 = vld [vmem:[%s3 + $0x70] sm:$0xf]
    %v2462 = vld [vmem:[%s3 + $0x74] sm:$0xf]
    %v2463 = vld [vmem:[%s3 + $0x78] sm:$0xf]
    %v2464 = vld [vmem:[%s3 + $0x7c] sm:$0xf]
    %v2465 = vld [vmem:[%s13] sm:$0x1]
    %v2467 = vlaneseq
    %v2468 = vshrl.u32 %v2467, 7
    %v2469 = vsub.s32 0, %v2468
    %v2470 = vrot.slane %v2465, %v2469
    %v2504 = vunpack.c.l.b16 %v2433
    %v2505 = vunpack.c.l.b16 %v2434
    %v2506 = vunpack.c.l.b16 %v2435
    %v2507 = vunpack.c.l.b16 %v2436
    %v2508 = vunpack.c.l.b16 %v2437
    %v2509 = vunpack.c.l.b16 %v2438
    %v2510 = vunpack.c.l.b16 %v2439
    %v2511 = vunpack.c.l.b16 %v2440
    %v2512 = vunpack.c.l.b16 %v2441
    %v2513 = vunpack.c.l.b16 %v2442
    %v2514 = vunpack.c.l.b16 %v2443
    %v2515 = vunpack.c.l.b16 %v2444
    %v2516 = vunpack.c.l.b16 %v2445
    %v2517 = vunpack.c.l.b16 %v2446
    %v2518 = vunpack.c.l.b16 %v2447
    %v2519 = vunpack.c.l.b16 %v2448
    %v2520 = vunpack.c.l.b16 %v2449
    %v2521 = vunpack.c.l.b16 %v2450
    %v2522 = vunpack.c.l.b16 %v2451
    %v2523 = vunpack.c.l.b16 %v2452
    %v2524 = vunpack.c.l.b16 %v2453
    %v2525 = vunpack.c.l.b16 %v2454
    %v2526 = vunpack.c.l.b16 %v2455
    %v2527 = vunpack.c.l.b16 %v2456
    %v2528 = vunpack.c.l.b16 %v2457
    %v2529 = vunpack.c.l.b16 %v2458
    %v2530 = vunpack.c.l.b16 %v2459
    %v2531 = vunpack.c.l.b16 %v2460
    %v2532 = vunpack.c.l.b16 %v2461
    %v2533 = vunpack.c.l.b16 %v2462
    %v2534 = vunpack.c.l.b16 %v2463
    %v2535 = vunpack.c.l.b16 %v2464
    %v2536 = vpack.c.b16 %v2505, %v2504
    %v2537 = vpack.c.b16 %v2507, %v2506
    %v2538 = vpack.c.b16 %v2509, %v2508
    %v2539 = vpack.c.b16 %v2511, %v2510
    %v2540 = vpack.c.b16 %v2513, %v2512
    %v2541 = vpack.c.b16 %v2515, %v2514
    %v2542 = vpack.c.b16 %v2517, %v2516
    %v2543 = vpack.c.b16 %v2519, %v2518
    %v2544 = vpack.c.b16 %v2521, %v2520
    %v2545 = vpack.c.b16 %v2523, %v2522
    %v2546 = vpack.c.b16 %v2525, %v2524
    %v2547 = vpack.c.b16 %v2527, %v2526
    %v2548 = vpack.c.b16 %v2529, %v2528
    %v2549 = vpack.c.b16 %v2531, %v2530
    %v2550 = vpack.c.b16 %v2533, %v2532
    %v2551 = vpack.c.b16 %v2535, %v2534
    %2568 = vmatprep.subr.bf16.mxu0 0
    %2569 = vmatpush1.bf16.msra.mxu0 %v2536
    %2570 = vmatprep.subr.bf16.mxu0 0
    %2571 = vmatpush1.bf16.msra.mxu0 %v2537
    %2572 = vmatprep.subr.bf16.mxu0 0
    %2573 = vmatpush1.bf16.msra.mxu0 %v2538
    %2574 = vmatprep.subr.bf16.mxu0 0
    %2575 = vmatpush1.bf16.msra.mxu0 %v2539
    %2576 = vmatprep.subr.bf16.mxu0 0
    %2577 = vmatpush1.bf16.msra.mxu0 %v2540
    %2578 = vmatprep.subr.bf16.mxu0 0
    %2579 = vmatpush1.bf16.msra.mxu0 %v2541
    %2580 = vmatprep.subr.bf16.mxu0 0
    %2581 = vmatpush1.bf16.msra.mxu0 %v2542
    %2582 = vmatprep.subr.bf16.mxu0 0
    %2583 = vmatpush1.bf16.msra.mxu0 %v2543
    %2584 = vmatprep.subr.bf16.mxu0 0
    %2585 = vmatpush1.bf16.msra.mxu0 %v2544
    %2586 = vmatprep.subr.bf16.mxu0 0
    %2587 = vmatpush1.bf16.msra.mxu0 %v2545
    %2588 = vmatprep.subr.bf16.mxu0 0
    %2589 = vmatpush1.bf16.msra.mxu0 %v2546
    %2590 = vmatprep.subr.bf16.mxu0 0
    %2591 = vmatpush1.bf16.msra.mxu0 %v2547
    %2592 = vmatprep.subr.bf16.mxu0 0
    %2593 = vmatpush1.bf16.msra.mxu0 %v2548
    %2594 = vmatprep.subr.bf16.mxu0 0
    %2595 = vmatpush1.bf16.msra.mxu0 %v2549
    %2596 = vmatprep.subr.bf16.mxu0 0
    %2597 = vmatpush1.bf16.msra.mxu0 %v2550
    %2598 = vmatprep.subr.bf16.mxu0 0
    %2599 = vmatpush1.bf16.msra.mxu0 %v2551
    %2600 = vmatprep.mubr.bf16.mxu0 %v2432
    %2601 = vmatmul.mubr.bf16.gmra.mrb[0].mxu0 %v2431
    %v2602 = vpop.f32.mrb[0].mxu0
    %v2603 = vadd.f32 %v2470, %v2602
    %v2604 = vpop.f32.mrb[0].mxu0
    %v2605 = vpop.f32.mrb[0].mxu0
    %v2606 = vpop.f32.mrb[0].mxu0
    %2607 = vdwg.mxu0
    %v2608 = vmax.f32 %v2603, 0.0
    %v2609 = vpack.c.bf16 %v2608, %v2608
    %v2610 = vld [vmem:[%s4] sm:$0xf]
    %v2611 = vld [vmem:[%s4 + $0x4] sm:$0xf]
    %v2612 = vld [vmem:[%s4 + $0x8] sm:$0xf]
    %v2613 = vld [vmem:[%s4 + $0xc] sm:$0xf]
    %v2614 = vld [vmem:[%s4 + $0x10] sm:$0xf]
    %v2615 = vld [vmem:[%s4 + $0x14] sm:$0xf]
    %v2616 = vld [vmem:[%s4 + $0x18] sm:$0xf]
    %v2617 = vld [vmem:[%s4 + $0x1c] sm:$0xf]
    %v2618 = vld [vmem:[%s4 + $0x20] sm:$0xf]
    %v2619 = vld [vmem:[%s4 + $0x24] sm:$0xf]
    %v2620 = vld [vmem:[%s4 + $0x28] sm:$0xf]
    %v2621 = vld [vmem:[%s4 + $0x2c] sm:$0xf]
    %v2622 = vld [vmem:[%s4 + $0x30] sm:$0xf]
    %v2623 = vld [vmem:[%s4 + $0x34] sm:$0xf]
    %v2624 = vld [vmem:[%s4 + $0x38] sm:$0xf]
    %v2625 = vld [vmem:[%s4 + $0x3c] sm:$0xf]
    %v2626 = vld [vmem:[%s14] sm:$0x1]
    %v2628 = vlaneseq
    %v2629 = vshrl.u32 %v2628, 7
    %v2630 = vsub.s32 0, %v2629
    %v2631 = vrot.slane %v2626, %v2630
    %v2649 = vunpack.c.l.b16 %v2610
    %v2650 = vunpack.c.l.b16 %v2611
    %v2651 = vunpack.c.l.b16 %v2612
    %v2652 = vunpack.c.l.b16 %v2613
    %v2653 = vunpack.c.l.b16 %v2614
    %v2654 = vunpack.c.l.b16 %v2615
    %v2655 = vunpack.c.l.b16 %v2616
    %v2656 = vunpack.c.l.b16 %v2617
    %v2657 = vunpack.c.l.b16 %v2618
    %v2658 = vunpack.c.l.b16 %v2619
    %v2659 = vunpack.c.l.b16 %v2620
    %v2660 = vunpack.c.l.b16 %v2621
    %v2661 = vunpack.c.l.b16 %v2622
    %v2662 = vunpack.c.l.b16 %v2623
    %v2663 = vunpack.c.l.b16 %v2624
    %v2664 = vunpack.c.l.b16 %v2625
    %v2665 = vpack.c.b16 %v2650, %v2649
    %v2666 = vpack.c.b16 %v2652, %v2651
    %v2667 = vpack.c.b16 %v2654, %v2653
    %v2668 = vpack.c.b16 %v2656, %v2655
    %v2669 = vpack.c.b16 %v2658, %v2657
    %v2670 = vpack.c.b16 %v2660, %v2659
    %v2671 = vpack.c.b16 %v2662, %v2661
    %v2672 = vpack.c.b16 %v2664, %v2663
    %2681 = vmatprep.subr.bf16.mxu0 0
    %2682 = vmatpush1.bf16.msra.mxu0 %v2665
    %2683 = vmatprep.subr.bf16.mxu0 0
    %2684 = vmatpush1.bf16.msra.mxu0 %v2666
    %2685 = vmatprep.subr.bf16.mxu0 0
    %2686 = vmatpush1.bf16.msra.mxu0 %v2667
    %2687 = vmatprep.subr.bf16.mxu0 0
    %2688 = vmatpush1.bf16.msra.mxu0 %v2668
    %2689 = vmatprep.subr.bf16.mxu0 0
    %2690 = vmatpush1.bf16.msra.mxu0 %v2669
    %2691 = vmatprep.subr.bf16.mxu0 0
    %2692 = vmatpush1.bf16.msra.mxu0 %v2670
    %2693 = vmatprep.subr.bf16.mxu0 0
    %2694 = vmatpush1.bf16.msra.mxu0 %v2671
    %2695 = vmatprep.subr.bf16.mxu0 0
    %2696 = vmatpush1.bf16.msra.mxu0 %v2672
    %2697 = vmatprep.subr.bf16.mxu0 0
    %2698 = vmatpush1.bf16.msra.mxu0 0
    %2699 = vmatprep.subr.bf16.mxu0 0
    %2700 = vmatpush1.bf16.msra.mxu0 0
    %2701 = vmatprep.subr.bf16.mxu0 0
    %2702 = vmatpush1.bf16.msra.mxu0 0
    %2703 = vmatprep.subr.bf16.mxu0 0
    %2704 = vmatpush1.bf16.msra.mxu0 0
    %2705 = vmatprep.subr.bf16.mxu0 0
    %2706 = vmatpush1.bf16.msra.mxu0 0
    %2707 = vmatprep.subr.bf16.mxu0 0
    %2708 = vmatpush1.bf16.msra.mxu0 0
    %2709 = vmatprep.subr.bf16.mxu0 0
    %2710 = vmatpush1.bf16.msra.mxu0 0
    %2711 = vmatprep.subr.bf16.mxu0 0
    %2712 = vmatpush1.bf16.msra.mxu0 0
    %2713 = vmatprep.mubr.bf16.mxu0 0
    %2714 = vmatmul.mubr.bf16.gmra.mrb[0].mxu0 %v2609
    %v2715 = vpop.f32.mrb[0].mxu0
    %v2716 = vadd.f32 %v2631, %v2715
    %v2717 = vpop.f32.mrb[0].mxu0
    %v2718 = vpop.f32.mrb[0].mxu0
    %v2719 = vpop.f32.mrb[0].mxu0
    %2720 = vdwg.mxu0
    %v2721 = vmax.f32 %v2716, 0.0
    %v2722 = vpack.c.bf16 %v2721, %v2721
    %v2723 = vld [vmem:[#allocation6] sm:$0xf]
    %v2724 = vld [vmem:[#allocation6 + $0x4] sm:$0xf]
    %v2725 = vld [vmem:[#allocation6 + $0x8] sm:$0xf]
    %v2726 = vld [vmem:[#allocation6 + $0xc] sm:$0xf]
    %v2727 = vld [vmem:[#allocation6 + $0x10] sm:$0xf]
    %v2728 = vld [vmem:[#allocation6 + $0x14] sm:$0xf]
    %v2729 = vld [vmem:[#allocation6 + $0x18] sm:$0xf]
    %v2730 = vld [vmem:[#allocation6 + $0x1c] sm:$0xf]
    %v2731 = vld [vmem:[#allocation6 + $0x20] sm:$0xf]
    %v2732 = vld [vmem:[#allocation6 + $0x24] sm:$0xf]
    %v2733 = vld [vmem:[#allocation6 + $0x28] sm:$0xf]
    %v2734 = vld [vmem:[#allocation6 + $0x2c] sm:$0xf]
    %v2735 = vld [vmem:[#allocation6 + $0x30] sm:$0xf]
    %v2736 = vld [vmem:[#allocation6 + $0x34] sm:$0xf]
    %v2737 = vld [vmem:[#allocation6 + $0x38] sm:$0xf]
    %v2738 = vld [vmem:[#allocation6 + $0x3c] sm:$0xf]
    %v2739 = vld [vmem:[%s15] sm:$0x1]
    %v2741 = vlaneseq
    %v2742 = vshrl.u32 %v2741, 7
    %v2743 = vsub.s32 0, %v2742
    %v2744 = vrot.slane %v2739, %v2743
    %v2762 = vunpack.c.l.b16 %v2723
    %v2763 = vunpack.c.l.b16 %v2724
    %v2764 = vunpack.c.l.b16 %v2725
    %v2765 = vunpack.c.l.b16 %v2726
    %v2766 = vunpack.c.l.b16 %v2727
    %v2767 = vunpack.c.l.b16 %v2728
    %v2768 = vunpack.c.l.b16 %v2729
    %v2769 = vunpack.c.l.b16 %v2730
    %v2770 = vunpack.c.l.b16 %v2731
    %v2771 = vunpack.c.l.b16 %v2732
    %v2772 = vunpack.c.l.b16 %v2733
    %v2773 = vunpack.c.l.b16 %v2734
    %v2774 = vunpack.c.l.b16 %v2735
    %v2775 = vunpack.c.l.b16 %v2736
    %v2776 = vunpack.c.l.b16 %v2737
    %v2777 = vunpack.c.l.b16 %v2738
    %v2778 = vpack.c.b16 %v2763, %v2762
    %v2779 = vpack.c.b16 %v2765, %v2764
    %v2780 = vpack.c.b16 %v2767, %v2766
    %v2781 = vpack.c.b16 %v2769, %v2768
    %v2782 = vpack.c.b16 %v2771, %v2770
    %v2783 = vpack.c.b16 %v2773, %v2772
    %v2784 = vpack.c.b16 %v2775, %v2774
    %v2785 = vpack.c.b16 %v2777, %v2776
    %2794 = vmatprep.subr.bf16.mxu0 0
    %2795 = vmatpush1.bf16.msra.mxu0 %v2778
    %2796 = vmatprep.subr.bf16.mxu0 0
    %2797 = vmatpush1.bf16.msra.mxu0 %v2779
    %2798 = vmatprep.subr.bf16.mxu0 0
    %2799 = vmatpush1.bf16.msra.mxu0 %v2780
    %2800 = vmatprep.subr.bf16.mxu0 0
    %2801 = vmatpush1.bf16.msra.mxu0 %v2781
    %2802 = vmatprep.subr.bf16.mxu0 0
    %2803 = vmatpush1.bf16.msra.mxu0 %v2782
    %2804 = vmatprep.subr.bf16.mxu0 0
    %2805 = vmatpush1.bf16.msra.mxu0 %v2783
    %2806 = vmatprep.subr.bf16.mxu0 0
    %2807 = vmatpush1.bf16.msra.mxu0 %v2784
    %2808 = vmatprep.subr.bf16.mxu0 0
    %2809 = vmatpush1.bf16.msra.mxu0 %v2785
    %2810 = vmatprep.subr.bf16.mxu0 0
    %2811 = vmatpush1.bf16.msra.mxu0 0
    %2812 = vmatprep.subr.bf16.mxu0 0
    %2813 = vmatpush1.bf16.msra.mxu0 0
    %2814 = vmatprep.subr.bf16.mxu0 0
    %2815 = vmatpush1.bf16.msra.mxu0 0
    %2816 = vmatprep.subr.bf16.mxu0 0
    %2817 = vmatpush1.bf16.msra.mxu0 0
    %2818 = vmatprep.subr.bf16.mxu0 0
    %2819 = vmatpush1.bf16.msra.mxu0 0
    %2820 = vmatprep.subr.bf16.mxu0 0
    %2821 = vmatpush1.bf16.msra.mxu0 0
    %2822 = vmatprep.subr.bf16.mxu0 0
    %2823 = vmatpush1.bf16.msra.mxu0 0
    %2824 = vmatprep.subr.bf16.mxu0 0
    %2825 = vmatpush1.bf16.msra.mxu0 0
    %2826 = vmatprep.mubr.bf16.mxu0 0
    %2827 = vmatmul.mubr.bf16.gmra.mrb[0].mxu0 %v2722
    %v2828 = vpop.f32.mrb[0].mxu0
    %v2829 = vadd.f32 %v2744, %v2828
    %v2830 = vpop.f32.mrb[0].mxu0
    %v2831 = vpop.f32.mrb[0].mxu0
    %v2832 = vpop.f32.mrb[0].mxu0
    %2833 = vdwg.mxu0
    %v2834 = vtanh.pop %v2829
    %2835 = vst [vmem:[%s22] sm:$0xff] %v2834
    %v2836 = vpack.c.bf16 %v2834, %v2834
    %v2837 = vld [vmem:[#allocation7] sm:$0xf]
    %v2838 = vld [vmem:[#allocation7 + $0x4] sm:$0xf]
    %v2839 = vld [vmem:[#allocation7 + $0x8] sm:$0xf]
    %v2840 = vld [vmem:[#allocation7 + $0xc] sm:$0xf]
    %v2841 = vld [vmem:[#allocation7 + $0x10] sm:$0xf]
    %v2842 = vld [vmem:[#allocation7 + $0x14] sm:$0xf]
    %v2843 = vld [vmem:[#allocation7 + $0x18] sm:$0xf]
    %v2844 = vld [vmem:[#allocation7 + $0x1c] sm:$0xf]
    %v2845 = vld [vmem:[#allocation7 + $0x20] sm:$0xf]
    %v2846 = vld [vmem:[#allocation7 + $0x24] sm:$0xf]
    %v2847 = vld [vmem:[#allocation7 + $0x28] sm:$0xf]
    %v2848 = vld [vmem:[#allocation7 + $0x2c] sm:$0xf]
    %v2849 = vld [vmem:[#allocation7 + $0x30] sm:$0xf]
    %v2850 = vld [vmem:[#allocation7 + $0x34] sm:$0xf]
    %v2851 = vld [vmem:[#allocation7 + $0x38] sm:$0xf]
    %v2852 = vld [vmem:[#allocation7 + $0x3c] sm:$0xf]
    %v2853 = vld [vmem:[#allocation15] sm:$0x1]
    %v2855 = vlaneseq
    %v2856 = vshrl.u32 %v2855, 7
    %v2857 = vsub.s32 0, %v2856
    %v2858 = vrot.slane %v2853, %v2857
    %v2876 = vunpack.c.l.b16 %v2837
    %v2877 = vunpack.c.l.b16 %v2838
    %v2878 = vunpack.c.l.b16 %v2839
    %v2879 = vunpack.c.l.b16 %v2840
    %v2880 = vunpack.c.l.b16 %v2841
    %v2881 = vunpack.c.l.b16 %v2842
    %v2882 = vunpack.c.l.b16 %v2843
    %v2883 = vunpack.c.l.b16 %v2844
    %v2884 = vunpack.c.l.b16 %v2845
    %v2885 = vunpack.c.l.b16 %v2846
    %v2886 = vunpack.c.l.b16 %v2847
    %v2887 = vunpack.c.l.b16 %v2848
    %v2888 = vunpack.c.l.b16 %v2849
    %v2889 = vunpack.c.l.b16 %v2850
    %v2890 = vunpack.c.l.b16 %v2851
    %v2891 = vunpack.c.l.b16 %v2852
    %v2892 = vpack.c.b16 %v2877, %v2876
    %v2893 = vpack.c.b16 %v2879, %v2878
    %v2894 = vpack.c.b16 %v2881, %v2880
    %v2895 = vpack.c.b16 %v2883, %v2882
    %v2896 = vpack.c.b16 %v2885, %v2884
    %v2897 = vpack.c.b16 %v2887, %v2886
    %v2898 = vpack.c.b16 %v2889, %v2888
    %v2899 = vpack.c.b16 %v2891, %v2890
    %2908 = vmatprep.subr.bf16.mxu0 0
    %2909 = vmatpush1.bf16.msra.mxu0 %v2892
    %2910 = vmatprep.subr.bf16.mxu0 0
    %2911 = vmatpush1.bf16.msra.mxu0 %v2893
    %2912 = vmatprep.subr.bf16.mxu0 0
    %2913 = vmatpush1.bf16.msra.mxu0 %v2894
    %2914 = vmatprep.subr.bf16.mxu0 0
    %2915 = vmatpush1.bf16.msra.mxu0 %v2895
    %2916 = vmatprep.subr.bf16.mxu0 0
    %2917 = vmatpush1.bf16.msra.mxu0 %v2896
    %2918 = vmatprep.subr.bf16.mxu0 0
    %2919 = vmatpush1.bf16.msra.mxu0 %v2897
    %2920 = vmatprep.subr.bf16.mxu0 0
    %2921 = vmatpush1.bf16.msra.mxu0 %v2898
    %2922 = vmatprep.subr.bf16.mxu0 0
    %2923 = vmatpush1.bf16.msra.mxu0 %v2899
    %2924 = vmatprep.subr.bf16.mxu0 0
    %2925 = vmatpush1.bf16.msra.mxu0 0
    %2926 = vmatprep.subr.bf16.mxu0 0
    %2927 = vmatpush1.bf16.msra.mxu0 0
    %2928 = vmatprep.subr.bf16.mxu0 0
    %2929 = vmatpush1.bf16.msra.mxu0 0
    %2930 = vmatprep.subr.bf16.mxu0 0
    %2931 = vmatpush1.bf16.msra.mxu0 0
    %2932 = vmatprep.subr.bf16.mxu0 0
    %2933 = vmatpush1.bf16.msra.mxu0 0
    %2934 = vmatprep.subr.bf16.mxu0 0
    %2935 = vmatpush1.bf16.msra.mxu0 0
    %2936 = vmatprep.subr.bf16.mxu0 0
    %2937 = vmatpush1.bf16.msra.mxu0 0
    %2938 = vmatprep.subr.bf16.mxu0 0
    %2939 = vmatpush1.bf16.msra.mxu0 0
    %2940 = vmatprep.mubr.bf16.mxu0 0
    %2941 = vmatmul.mubr.bf16.gmra.mrb[0].mxu0 %v2836
    %v2942 = vpop.f32.mrb[0].mxu0
    %v2943 = vadd.f32 %v2858, %v2942
    %v2944 = vpop.f32.mrb[0].mxu0
    %v2945 = vpop.f32.mrb[0].mxu0
    %v2946 = vpop.f32.mrb[0].mxu0
    %2947 = vdwg.mxu0
    %v2948 = vmax.f32 %v2943, 0.0
    %v2949 = vpack.c.bf16 %v2948, %v2948
    %v2950 = vld [vmem:[#allocation9] sm:$0xf]
    %v2951 = vld [vmem:[#allocation9 + $0x4] sm:$0xf]
    %v2952 = vld [vmem:[#allocation9 + $0x8] sm:$0xf]
    %v2953 = vld [vmem:[#allocation9 + $0xc] sm:$0xf]
    %v2954 = vld [vmem:[#allocation9 + $0x10] sm:$0xf]
    %v2955 = vld [vmem:[#allocation9 + $0x14] sm:$0xf]
    %v2956 = vld [vmem:[#allocation9 + $0x18] sm:$0xf]
    %v2957 = vld [vmem:[#allocation9 + $0x1c] sm:$0xf]
    %v2958 = vld [vmem:[#allocation9 + $0x20] sm:$0xf]
    %v2959 = vld [vmem:[#allocation9 + $0x24] sm:$0xf]
    %v2960 = vld [vmem:[#allocation9 + $0x28] sm:$0xf]
    %v2961 = vld [vmem:[#allocation9 + $0x2c] sm:$0xf]
    %v2962 = vld [vmem:[#allocation9 + $0x30] sm:$0xf]
    %v2963 = vld [vmem:[#allocation9 + $0x34] sm:$0xf]
    %v2964 = vld [vmem:[#allocation9 + $0x38] sm:$0xf]
    %v2965 = vld [vmem:[#allocation9 + $0x3c] sm:$0xf]
    %v2966 = vld [vmem:[#allocation16] sm:$0x1]
    %v2968 = vlaneseq
    %v2969 = vshrl.u32 %v2968, 7
    %v2970 = vsub.s32 0, %v2969
    %v2971 = vrot.slane %v2966, %v2970
    %v2989 = vunpack.c.l.b16 %v2950
    %v2990 = vunpack.c.l.b16 %v2951
    %v2991 = vunpack.c.l.b16 %v2952
    %v2992 = vunpack.c.l.b16 %v2953
    %v2993 = vunpack.c.l.b16 %v2954
    %v2994 = vunpack.c.l.b16 %v2955
    %v2995 = vunpack.c.l.b16 %v2956
    %v2996 = vunpack.c.l.b16 %v2957
    %v2997 = vunpack.c.l.b16 %v2958
    %v2998 = vunpack.c.l.b16 %v2959
    %v2999 = vunpack.c.l.b16 %v2960
    %v3000 = vunpack.c.l.b16 %v2961
    %v3001 = vunpack.c.l.b16 %v2962
    %v3002 = vunpack.c.l.b16 %v2963
    %v3003 = vunpack.c.l.b16 %v2964
    %v3004 = vunpack.c.l.b16 %v2965
    %v3005 = vpack.c.b16 %v2990, %v2989
    %v3006 = vpack.c.b16 %v2992, %v2991
    %v3007 = vpack.c.b16 %v2994, %v2993
    %v3008 = vpack.c.b16 %v2996, %v2995
    %v3009 = vpack.c.b16 %v2998, %v2997
    %v3010 = vpack.c.b16 %v3000, %v2999
    %v3011 = vpack.c.b16 %v3002, %v3001
    %v3012 = vpack.c.b16 %v3004, %v3003
    %3021 = vmatprep.subr.bf16.mxu0 0
    %3022 = vmatpush1.bf16.msra.mxu0 %v3005
    %3023 = vmatprep.subr.bf16.mxu0 0
    %3024 = vmatpush1.bf16.msra.mxu0 %v3006
    %3025 = vmatprep.subr.bf16.mxu0 0
    %3026 = vmatpush1.bf16.msra.mxu0 %v3007
    %3027 = vmatprep.subr.bf16.mxu0 0
    %3028 = vmatpush1.bf16.msra.mxu0 %v3008
    %3029 = vmatprep.subr.bf16.mxu0 0
    %3030 = vmatpush1.bf16.msra.mxu0 %v3009
    %3031 = vmatprep.subr.bf16.mxu0 0
    %3032 = vmatpush1.bf16.msra.mxu0 %v3010
    %3033 = vmatprep.subr.bf16.mxu0 0
    %3034 = vmatpush1.bf16.msra.mxu0 %v3011
    %3035 = vmatprep.subr.bf16.mxu0 0
    %3036 = vmatpush1.bf16.msra.mxu0 %v3012
    %3037 = vmatprep.subr.bf16.mxu0 0
    %3038 = vmatpush1.bf16.msra.mxu0 0
    %3039 = vmatprep.subr.bf16.mxu0 0
    %3040 = vmatpush1.bf16.msra.mxu0 0
    %3041 = vmatprep.subr.bf16.mxu0 0
    %3042 = vmatpush1.bf16.msra.mxu0 0
    %3043 = vmatprep.subr.bf16.mxu0 0
    %3044 = vmatpush1.bf16.msra.mxu0 0
    %3045 = vmatprep.subr.bf16.mxu0 0
    %3046 = vmatpush1.bf16.msra.mxu0 0
    %3047 = vmatprep.subr.bf16.mxu0 0
    %3048 = vmatpush1.bf16.msra.mxu0 0
    %3049 = vmatprep.subr.bf16.mxu0 0
    %3050 = vmatpush1.bf16.msra.mxu0 0
    %3051 = vmatprep.subr.bf16.mxu0 0
    %3052 = vmatpush1.bf16.msra.mxu0 0
    %3053 = vmatprep.mubr.bf16.mxu0 0
    %3054 = vmatmul.mubr.bf16.gmra.mrb[0].mxu0 %v2949
    %v3055 = vpop.f32.mrb[0].mxu0
    %v3056 = vadd.f32 %v2971, %v3055
    %v3057 = vpop.f32.mrb[0].mxu0
    %v3058 = vpop.f32.mrb[0].mxu0
    %v3059 = vpop.f32.mrb[0].mxu0
    %3060 = vdwg.mxu0
    %v3061 = vmax.f32 %v3056, 0.0
    %v3062 = vpack.c.bf16 %v3061, %v3061
    %v3063 = vld [vmem:[%s8] sm:$0xff]
    %v3064 = vld [vmem:[%s8 + $0x8] sm:$0xff]
    %v3065 = vld [vmem:[%s8 + $0x10] sm:$0xff]
    %v3066 = vld [vmem:[%s8 + $0x18] sm:$0xff]
    %v3067 = vld [vmem:[%s8 + $0x20] sm:$0xff]
    %v3068 = vld [vmem:[%s8 + $0x28] sm:$0xff]
    %v3069 = vld [vmem:[%s8 + $0x30] sm:$0xff]
    %v3070 = vld [vmem:[%s8 + $0x38] sm:$0xff]
    %v3071 = vld [vmem:[%s8 + $0x40] sm:$0xff]
    %v3072 = vld [vmem:[%s8 + $0x48] sm:$0xff]
    %v3073 = vld [vmem:[%s8 + $0x50] sm:$0xff]
    %v3074 = vld [vmem:[%s8 + $0x58] sm:$0xff]
    %v3075 = vld [vmem:[%s8 + $0x60] sm:$0xff]
    %v3076 = vld [vmem:[%s8 + $0x68] sm:$0xff]
    %v3077 = vld [vmem:[%s8 + $0x70] sm:$0xff]
    %v3078 = vld [vmem:[%s8 + $0x78] sm:$0xff]
    %v3079 = vld [vmem:[#allocation18] sm:$0x3]
    %v3081 = vlaneseq
    %v3082 = vshrl.u32 %v3081, 7
    %v3083 = vsub.s32 0, %v3082
    %v3084 = vrot.slane %v3079, %v3083
    %v3085 = vlaneseq
    %v3086 = vshrl.u32 %v3085, 7
    %v3087 = vsub.s32 1, %v3086
    %v3088 = vrot.slane %v3079, %v3087
    %v3107 = vunpack.c.l.b16 %v3063
    %v3108 = vunpack.c.h.b16 %v3063
    %v3109 = vunpack.c.l.b16 %v3064
    %v3110 = vunpack.c.h.b16 %v3064
    %v3111 = vunpack.c.l.b16 %v3065
    %v3112 = vunpack.c.h.b16 %v3065
    %v3113 = vunpack.c.l.b16 %v3066
    %v3114 = vunpack.c.h.b16 %v3066
    %v3115 = vunpack.c.l.b16 %v3067
    %v3116 = vunpack.c.h.b16 %v3067
    %v3117 = vunpack.c.l.b16 %v3068
    %v3118 = vunpack.c.h.b16 %v3068
    %v3119 = vunpack.c.l.b16 %v3069
    %v3120 = vunpack.c.h.b16 %v3069
    %v3121 = vunpack.c.l.b16 %v3070
    %v3122 = vunpack.c.h.b16 %v3070
    %v3123 = vunpack.c.l.b16 %v3071
    %v3124 = vunpack.c.h.b16 %v3071
    %v3125 = vunpack.c.l.b16 %v3072
    %v3126 = vunpack.c.h.b16 %v3072
    %v3127 = vunpack.c.l.b16 %v3073
    %v3128 = vunpack.c.h.b16 %v3073
    %v3129 = vunpack.c.l.b16 %v3074
    %v3130 = vunpack.c.h.b16 %v3074
    %v3131 = vunpack.c.l.b16 %v3075
    %v3132 = vunpack.c.h.b16 %v3075
    %v3133 = vunpack.c.l.b16 %v3076
    %v3134 = vunpack.c.h.b16 %v3076
    %v3135 = vunpack.c.l.b16 %v3077
    %v3136 = vunpack.c.h.b16 %v3077
    %v3137 = vunpack.c.l.b16 %v3078
    %v3138 = vunpack.c.h.b16 %v3078
    %v3139 = vpack.c.b16 %v3109, %v3107
    %v3140 = vpack.c.b16 %v3110, %v3108
    %v3141 = vpack.c.b16 %v3113, %v3111
    %v3142 = vpack.c.b16 %v3114, %v3112
    %v3143 = vpack.c.b16 %v3117, %v3115
    %v3144 = vpack.c.b16 %v3118, %v3116
    %v3145 = vpack.c.b16 %v3121, %v3119
    %v3146 = vpack.c.b16 %v3122, %v3120
    %v3147 = vpack.c.b16 %v3125, %v3123
    %v3148 = vpack.c.b16 %v3126, %v3124
    %v3149 = vpack.c.b16 %v3129, %v3127
    %v3150 = vpack.c.b16 %v3130, %v3128
    %v3151 = vpack.c.b16 %v3133, %v3131
    %v3152 = vpack.c.b16 %v3134, %v3132
    %v3153 = vpack.c.b16 %v3137, %v3135
    %v3154 = vpack.c.b16 %v3138, %v3136
    %3171 = vmatprep.subr.bf16.mxu0 %v3140
    %3172 = vmatpush1.bf16.msra.mxu0 %v3139
    %3173 = vmatprep.subr.bf16.mxu0 %v3142
    %3174 = vmatpush1.bf16.msra.mxu0 %v3141
    %3175 = vmatprep.subr.bf16.mxu0 %v3144
    %3176 = vmatpush1.bf16.msra.mxu0 %v3143
    %3177 = vmatprep.subr.bf16.mxu0 %v3146
    %3178 = vmatpush1.bf16.msra.mxu0 %v3145
    %3179 = vmatprep.subr.bf16.mxu0 %v3148
    %3180 = vmatpush1.bf16.msra.mxu0 %v3147
    %3181 = vmatprep.subr.bf16.mxu0 %v3150
    %3182 = vmatpush1.bf16.msra.mxu0 %v3149
    %3183 = vmatprep.subr.bf16.mxu0 %v3152
    %3184 = vmatpush1.bf16.msra.mxu0 %v3151
    %3185 = vmatprep.subr.bf16.mxu0 %v3154
    %3186 = vmatpush1.bf16.msra.mxu0 %v3153
    %3187 = vmatprep.subr.bf16.mxu0 0
    %3188 = vmatpush1.bf16.msra.mxu0 0
    %3189 = vmatprep.subr.bf16.mxu0 0
    %3190 = vmatpush1.bf16.msra.mxu0 0
    %3191 = vmatprep.subr.bf16.mxu0 0
    %3192 = vmatpush1.bf16.msra.mxu0 0
    %3193 = vmatprep.subr.bf16.mxu0 0
    %3194 = vmatpush1.bf16.msra.mxu0 0
    %3195 = vmatprep.subr.bf16.mxu0 0
    %3196 = vmatpush1.bf16.msra.mxu0 0
    %3197 = vmatprep.subr.bf16.mxu0 0
    %3198 = vmatpush1.bf16.msra.mxu0 0
    %3199 = vmatprep.subr.bf16.mxu0 0
    %3200 = vmatpush1.bf16.msra.mxu0 0
    %3201 = vmatprep.subr.bf16.mxu0 0
    %3202 = vmatpush1.bf16.msra.mxu0 0
    %3203 = vmatprep.mubr.bf16.mxu0 0
    %3204 = vmatmul.mubr.bf16.gmra.mrb[0].mxu0 %v3062
    %v3205 = vpop.f32.mrb[0].mxu0
    %v3206 = vadd.f32 %v3084, %v3205
    %v3207 = vpop.f32.mrb[0].mxu0
    %v3208 = vadd.f32 %v3088, %v3207
    %v3209 = vpop.f32.mrb[0].mxu0
    %v3210 = vpop.f32.mrb[0].mxu0
    %3211 = vdwg.mxu0
    %v3212 = vmax.f32 %v3206, 0.0
    %v3213 = vmax.f32 %v3208, 0.0
    %v3214 = vpack.c.bf16 %v3212, %v3212
    %v3215 = vpack.c.bf16 %v3213, %v3213
    %v3216 = vld [vmem:[#allocation10] sm:$0xff]
    %v3217 = vld [vmem:[#allocation10 + $0x8] sm:$0xff]
    %v3218 = vld [vmem:[#allocation10 + $0x10] sm:$0xff]
    %v3219 = vld [vmem:[#allocation10 + $0x18] sm:$0xff]
    %v3220 = vld [vmem:[#allocation10 + $0x20] sm:$0xff]
    %v3221 = vld [vmem:[#allocation10 + $0x28] sm:$0xff]
    %v3222 = vld [vmem:[#allocation10 + $0x30] sm:$0xff]
    %v3223 = vld [vmem:[#allocation10 + $0x38] sm:$0xff]
    %v3224 = vld [vmem:[#allocation10 + $0x40] sm:$0xff]
    %v3225 = vld [vmem:[#allocation10 + $0x48] sm:$0xff]
    %v3226 = vld [vmem:[#allocation10 + $0x50] sm:$0xff]
    %v3227 = vld [vmem:[#allocation10 + $0x58] sm:$0xff]
    %v3228 = vld [vmem:[#allocation10 + $0x60] sm:$0xff]
    %v3229 = vld [vmem:[#allocation10 + $0x68] sm:$0xff]
    %v3230 = vld [vmem:[#allocation10 + $0x70] sm:$0xff]
    %v3231 = vld [vmem:[#allocation10 + $0x78] sm:$0xff]
    %v3232 = vld [vmem:[#allocation10 + $0x80] sm:$0xff]
    %v3233 = vld [vmem:[#allocation10 + $0x88] sm:$0xff]
    %v3234 = vld [vmem:[#allocation10 + $0x90] sm:$0xff]
    %v3235 = vld [vmem:[#allocation10 + $0x98] sm:$0xff]
    %v3236 = vld [vmem:[#allocation10 + $0xa0] sm:$0xff]
    %v3237 = vld [vmem:[#allocation10 + $0xa8] sm:$0xff]
    %v3238 = vld [vmem:[#allocation10 + $0xb0] sm:$0xff]
    %v3239 = vld [vmem:[#allocation10 + $0xb8] sm:$0xff]
    %v3240 = vld [vmem:[#allocation10 + $0xc0] sm:$0xff]
    %v3241 = vld [vmem:[#allocation10 + $0xc8] sm:$0xff]
    %v3242 = vld [vmem:[#allocation10 + $0xd0] sm:$0xff]
    %v3243 = vld [vmem:[#allocation10 + $0xd8] sm:$0xff]
    %v3244 = vld [vmem:[#allocation10 + $0xe0] sm:$0xff]
    %v3245 = vld [vmem:[#allocation10 + $0xe8] sm:$0xff]
    %v3246 = vld [vmem:[#allocation10 + $0xf0] sm:$0xff]
    %v3247 = vld [vmem:[#allocation10 + $0xf8] sm:$0xff]
    %v3248 = vld [vmem:[#allocation10 + $0x100] sm:$0xff]
    %v3249 = vld [vmem:[#allocation10 + $0x108] sm:$0xff]
    %v3250 = vld [vmem:[#allocation10 + $0x110] sm:$0xff]
    %v3251 = vld [vmem:[#allocation10 + $0x118] sm:$0xff]
    %v3252 = vld [vmem:[#allocation10 + $0x120] sm:$0xff]
    %v3253 = vld [vmem:[#allocation10 + $0x128] sm:$0xff]
    %v3254 = vld [vmem:[#allocation10 + $0x130] sm:$0xff]
    %v3255 = vld [vmem:[#allocation10 + $0x138] sm:$0xff]
    %v3256 = vld [vmem:[#allocation10 + $0x140] sm:$0xff]
    %v3257 = vld [vmem:[#allocation10 + $0x148] sm:$0xff]
    %v3258 = vld [vmem:[#allocation10 + $0x150] sm:$0xff]
    %v3259 = vld [vmem:[#allocation10 + $0x158] sm:$0xff]
    %v3260 = vld [vmem:[#allocation10 + $0x160] sm:$0xff]
    %v3261 = vld [vmem:[#allocation10 + $0x168] sm:$0xff]
    %v3262 = vld [vmem:[#allocation10 + $0x170] sm:$0xff]
    %v3263 = vld [vmem:[#allocation10 + $0x178] sm:$0xff]
    %v3264 = vld [vmem:[#allocation10 + $0x180] sm:$0xff]
    %v3265 = vld [vmem:[#allocation10 + $0x188] sm:$0xff]
    %v3266 = vld [vmem:[#allocation10 + $0x190] sm:$0xff]
    %v3267 = vld [vmem:[#allocation10 + $0x198] sm:$0xff]
    %v3268 = vld [vmem:[#allocation10 + $0x1a0] sm:$0xff]
    %v3269 = vld [vmem:[#allocation10 + $0x1a8] sm:$0xff]
    %v3270 = vld [vmem:[#allocation10 + $0x1b0] sm:$0xff]
    %v3271 = vld [vmem:[#allocation10 + $0x1b8] sm:$0xff]
    %v3272 = vld [vmem:[#allocation10 + $0x1c0] sm:$0xff]
    %v3273 = vld [vmem:[#allocation10 + $0x1c8] sm:$0xff]
    %v3274 = vld [vmem:[#allocation10 + $0x1d0] sm:$0xff]
    %v3275 = vld [vmem:[#allocation10 + $0x1d8] sm:$0xff]
    %v3276 = vld [vmem:[#allocation10 + $0x1e0] sm:$0xff]
    %v3277 = vld [vmem:[#allocation10 + $0x1e8] sm:$0xff]
    %v3278 = vld [vmem:[#allocation10 + $0x1f0] sm:$0xff]
    %v3279 = vld [vmem:[#allocation10 + $0x1f8] sm:$0xff]
    %v3280 = vld [vmem:[#allocation19] sm:$0xf]
    %v3282 = vlaneseq
    %v3283 = vshrl.u32 %v3282, 7
    %v3284 = vsub.s32 0, %v3283
    %v3285 = vrot.slane %v3280, %v3284
    %v3286 = vlaneseq
    %v3287 = vshrl.u32 %v3286, 7
    %v3288 = vsub.s32 1, %v3287
    %v3289 = vrot.slane %v3280, %v3288
    %v3290 = vlaneseq
    %v3291 = vshrl.u32 %v3290, 7
    %v3292 = vsub.s32 2, %v3291
    %v3293 = vrot.slane %v3280, %v3292
    %v3294 = vlaneseq
    %v3295 = vshrl.u32 %v3294, 7
    %v3296 = vsub.s32 3, %v3295
    %v3297 = vrot.slane %v3280, %v3296
    %v3366 = vunpack.c.l.b16 %v3216
    %v3367 = vunpack.c.h.b16 %v3216
    %v3368 = vunpack.c.l.b16 %v3217
    %v3369 = vunpack.c.h.b16 %v3217
    %v3370 = vunpack.c.l.b16 %v3218
    %v3371 = vunpack.c.h.b16 %v3218
    %v3372 = vunpack.c.l.b16 %v3219
    %v3373 = vunpack.c.h.b16 %v3219
    %v3374 = vunpack.c.l.b16 %v3220
    %v3375 = vunpack.c.h.b16 %v3220
    %v3376 = vunpack.c.l.b16 %v3221
    %v3377 = vunpack.c.h.b16 %v3221
    %v3378 = vunpack.c.l.b16 %v3222
    %v3379 = vunpack.c.h.b16 %v3222
    %v3380 = vunpack.c.l.b16 %v3223
    %v3381 = vunpack.c.h.b16 %v3223
    %v3382 = vunpack.c.l.b16 %v3224
    %v3383 = vunpack.c.h.b16 %v3224
    %v3384 = vunpack.c.l.b16 %v3225
    %v3385 = vunpack.c.h.b16 %v3225
    %v3386 = vunpack.c.l.b16 %v3226
    %v3387 = vunpack.c.h.b16 %v3226
    %v3388 = vunpack.c.l.b16 %v3227
    %v3389 = vunpack.c.h.b16 %v3227
    %v3390 = vunpack.c.l.b16 %v3228
    %v3391 = vunpack.c.h.b16 %v3228
    %v3392 = vunpack.c.l.b16 %v3229
    %v3393 = vunpack.c.h.b16 %v3229
    %v3394 = vunpack.c.l.b16 %v3230
    %v3395 = vunpack.c.h.b16 %v3230
    %v3396 = vunpack.c.l.b16 %v3231
    %v3397 = vunpack.c.h.b16 %v3231
    %v3398 = vunpack.c.l.b16 %v3232
    %v3399 = vunpack.c.h.b16 %v3232
    %v3400 = vunpack.c.l.b16 %v3233
    %v3401 = vunpack.c.h.b16 %v3233
    %v3402 = vunpack.c.l.b16 %v3234
    %v3403 = vunpack.c.h.b16 %v3234
    %v3404 = vunpack.c.l.b16 %v3235
    %v3405 = vunpack.c.h.b16 %v3235
    %v3406 = vunpack.c.l.b16 %v3236
    %v3407 = vunpack.c.h.b16 %v3236
    %v3408 = vunpack.c.l.b16 %v3237
    %v3409 = vunpack.c.h.b16 %v3237
    %v3410 = vunpack.c.l.b16 %v3238
    %v3411 = vunpack.c.h.b16 %v3238
    %v3412 = vunpack.c.l.b16 %v3239
    %v3413 = vunpack.c.h.b16 %v3239
    %v3414 = vunpack.c.l.b16 %v3240
    %v3415 = vunpack.c.h.b16 %v3240
    %v3416 = vunpack.c.l.b16 %v3241
    %v3417 = vunpack.c.h.b16 %v3241
    %v3418 = vunpack.c.l.b16 %v3242
    %v3419 = vunpack.c.h.b16 %v3242
    %v3420 = vunpack.c.l.b16 %v3243
    %v3421 = vunpack.c.h.b16 %v3243
    %v3422 = vunpack.c.l.b16 %v3244
    %v3423 = vunpack.c.h.b16 %v3244
    %v3424 = vunpack.c.l.b16 %v3245
    %v3425 = vunpack.c.h.b16 %v3245
    %v3426 = vunpack.c.l.b16 %v3246
    %v3427 = vunpack.c.h.b16 %v3246
    %v3428 = vunpack.c.l.b16 %v3247
    %v3429 = vunpack.c.h.b16 %v3247
    %v3430 = vunpack.c.l.b16 %v3248
    %v3431 = vunpack.c.h.b16 %v3248
    %v3432 = vunpack.c.l.b16 %v3249
    %v3433 = vunpack.c.h.b16 %v3249
    %v3434 = vunpack.c.l.b16 %v3250
    %v3435 = vunpack.c.h.b16 %v3250
    %v3436 = vunpack.c.l.b16 %v3251
    %v3437 = vunpack.c.h.b16 %v3251
    %v3438 = vunpack.c.l.b16 %v3252
    %v3439 = vunpack.c.h.b16 %v3252
    %v3440 = vunpack.c.l.b16 %v3253
    %v3441 = vunpack.c.h.b16 %v3253
    %v3442 = vunpack.c.l.b16 %v3254
    %v3443 = vunpack.c.h.b16 %v3254
    %v3444 = vunpack.c.l.b16 %v3255
    %v3445 = vunpack.c.h.b16 %v3255
    %v3446 = vunpack.c.l.b16 %v3256
    %v3447 = vunpack.c.h.b16 %v3256
    %v3448 = vunpack.c.l.b16 %v3257
    %v3449 = vunpack.c.h.b16 %v3257
    %v3450 = vunpack.c.l.b16 %v3258
    %v3451 = vunpack.c.h.b16 %v3258
    %v3452 = vunpack.c.l.b16 %v3259
    %v3453 = vunpack.c.h.b16 %v3259
    %v3454 = vunpack.c.l.b16 %v3260
    %v3455 = vunpack.c.h.b16 %v3260
    %v3456 = vunpack.c.l.b16 %v3261
    %v3457 = vunpack.c.h.b16 %v3261
    %v3458 = vunpack.c.l.b16 %v3262
    %v3459 = vunpack.c.h.b16 %v3262
    %v3460 = vunpack.c.l.b16 %v3263
    %v3461 = vunpack.c.h.b16 %v3263
    %v3462 = vunpack.c.l.b16 %v3264
    %v3463 = vunpack.c.h.b16 %v3264
    %v3464 = vunpack.c.l.b16 %v3265
    %v3465 = vunpack.c.h.b16 %v3265
    %v3466 = vunpack.c.l.b16 %v3266
    %v3467 = vunpack.c.h.b16 %v3266
    %v3468 = vunpack.c.l.b16 %v3267
    %v3469 = vunpack.c.h.b16 %v3267
    %v3470 = vunpack.c.l.b16 %v3268
    %v3471 = vunpack.c.h.b16 %v3268
    %v3472 = vunpack.c.l.b16 %v3269
    %v3473 = vunpack.c.h.b16 %v3269
    %v3474 = vunpack.c.l.b16 %v3270
    %v3475 = vunpack.c.h.b16 %v3270
    %v3476 = vunpack.c.l.b16 %v3271
    %v3477 = vunpack.c.h.b16 %v3271
    %v3478 = vunpack.c.l.b16 %v3272
    %v3479 = vunpack.c.h.b16 %v3272
    %v3480 = vunpack.c.l.b16 %v3273
    %v3481 = vunpack.c.h.b16 %v3273
    %v3482 = vunpack.c.l.b16 %v3274
    %v3483 = vunpack.c.h.b16 %v3274
    %v3484 = vunpack.c.l.b16 %v3275
    %v3485 = vunpack.c.h.b16 %v3275
    %v3486 = vunpack.c.l.b16 %v3276
    %v3487 = vunpack.c.h.b16 %v3276
    %v3488 = vunpack.c.l.b16 %v3277
    %v3489 = vunpack.c.h.b16 %v3277
    %v3490 = vunpack.c.l.b16 %v3278
    %v3491 = vunpack.c.h.b16 %v3278
    %v3492 = vunpack.c.l.b16 %v3279
    %v3493 = vunpack.c.h.b16 %v3279
    %v3494 = vpack.c.b16 %v3370, %v3366
    %v3495 = vpack.c.b16 %v3371, %v3367
    %v3496 = vpack.c.b16 %v3372, %v3368
    %v3497 = vpack.c.b16 %v3373, %v3369
    %v3498 = vpack.c.b16 %v3378, %v3374
    %v3499 = vpack.c.b16 %v3379, %v3375
    %v3500 = vpack.c.b16 %v3380, %v3376
    %v3501 = vpack.c.b16 %v3381, %v3377
    %v3502 = vpack.c.b16 %v3386, %v3382
    %v3503 = vpack.c.b16 %v3387, %v3383
    %v3504 = vpack.c.b16 %v3388, %v3384
    %v3505 = vpack.c.b16 %v3389, %v3385
    %v3506 = vpack.c.b16 %v3394, %v3390
    %v3507 = vpack.c.b16 %v3395, %v3391
    %v3508 = vpack.c.b16 %v3396, %v3392
    %v3509 = vpack.c.b16 %v3397, %v3393
    %v3510 = vpack.c.b16 %v3402, %v3398
    %v3511 = vpack.c.b16 %v3403, %v3399
    %v3512 = vpack.c.b16 %v3404, %v3400
    %v3513 = vpack.c.b16 %v3405, %v3401
    %v3514 = vpack.c.b16 %v3410, %v3406
    %v3515 = vpack.c.b16 %v3411, %v3407
    %v3516 = vpack.c.b16 %v3412, %v3408
    %v3517 = vpack.c.b16 %v3413, %v3409
    %v3518 = vpack.c.b16 %v3418, %v3414
    %v3519 = vpack.c.b16 %v3419, %v3415
    %v3520 = vpack.c.b16 %v3420, %v3416
    %v3521 = vpack.c.b16 %v3421, %v3417
    %v3522 = vpack.c.b16 %v3426, %v3422
    %v3523 = vpack.c.b16 %v3427, %v3423
    %v3524 = vpack.c.b16 %v3428, %v3424
    %v3525 = vpack.c.b16 %v3429, %v3425
    %v3526 = vpack.c.b16 %v3434, %v3430
    %v3527 = vpack.c.b16 %v3435, %v3431
    %v3528 = vpack.c.b16 %v3436, %v3432
    %v3529 = vpack.c.b16 %v3437, %v3433
    %v3530 = vpack.c.b16 %v3442, %v3438
    %v3531 = vpack.c.b16 %v3443, %v3439
    %v3532 = vpack.c.b16 %v3444, %v3440
    %v3533 = vpack.c.b16 %v3445, %v3441
    %v3534 = vpack.c.b16 %v3450, %v3446
    %v3535 = vpack.c.b16 %v3451, %v3447
    %v3536 = vpack.c.b16 %v3452, %v3448
    %v3537 = vpack.c.b16 %v3453, %v3449
    %v3538 = vpack.c.b16 %v3458, %v3454
    %v3539 = vpack.c.b16 %v3459, %v3455
    %v3540 = vpack.c.b16 %v3460, %v3456
    %v3541 = vpack.c.b16 %v3461, %v3457
    %v3542 = vpack.c.b16 %v3466, %v3462
    %v3543 = vpack.c.b16 %v3467, %v3463
    %v3544 = vpack.c.b16 %v3468, %v3464
    %v3545 = vpack.c.b16 %v3469, %v3465
    %v3546 = vpack.c.b16 %v3474, %v3470
    %v3547 = vpack.c.b16 %v3475, %v3471
    %v3548 = vpack.c.b16 %v3476, %v3472
    %v3549 = vpack.c.b16 %v3477, %v3473
    %v3550 = vpack.c.b16 %v3482, %v3478
    %v3551 = vpack.c.b16 %v3483, %v3479
    %v3552 = vpack.c.b16 %v3484, %v3480
    %v3553 = vpack.c.b16 %v3485, %v3481
    %v3554 = vpack.c.b16 %v3490, %v3486
    %v3555 = vpack.c.b16 %v3491, %v3487
    %v3556 = vpack.c.b16 %v3492, %v3488
    %v3557 = vpack.c.b16 %v3493, %v3489
    %3622 = vmatprep.subr.bf16.mxu0 %v3495
    %3623 = vmatpush1.bf16.msra.mxu0 %v3494
    %3624 = vmatprep.subr.bf16.mxu0 %v3499
    %3625 = vmatpush1.bf16.msra.mxu0 %v3498
    %3626 = vmatprep.subr.bf16.mxu0 %v3503
    %3627 = vmatpush1.bf16.msra.mxu0 %v3502
    %3628 = vmatprep.subr.bf16.mxu0 %v3507
    %3629 = vmatpush1.bf16.msra.mxu0 %v3506
    %3630 = vmatprep.subr.bf16.mxu0 %v3511
    %3631 = vmatpush1.bf16.msra.mxu0 %v3510
    %3632 = vmatprep.subr.bf16.mxu0 %v3515
    %3633 = vmatpush1.bf16.msra.mxu0 %v3514
    %3634 = vmatprep.subr.bf16.mxu0 %v3519
    %3635 = vmatpush1.bf16.msra.mxu0 %v3518
    %3636 = vmatprep.subr.bf16.mxu0 %v3523
    %3637 = vmatpush1.bf16.msra.mxu0 %v3522
    %3638 = vmatprep.subr.bf16.mxu0 %v3527
    %3639 = vmatpush1.bf16.msra.mxu0 %v3526
    %3640 = vmatprep.subr.bf16.mxu0 %v3531
    %3641 = vmatpush1.bf16.msra.mxu0 %v3530
    %3642 = vmatprep.subr.bf16.mxu0 %v3535
    %3643 = vmatpush1.bf16.msra.mxu0 %v3534
    %3644 = vmatprep.subr.bf16.mxu0 %v3539
    %3645 = vmatpush1.bf16.msra.mxu0 %v3538
    %3646 = vmatprep.subr.bf16.mxu0 %v3543
    %3647 = vmatpush1.bf16.msra.mxu0 %v3542
    %3648 = vmatprep.subr.bf16.mxu0 %v3547
    %3649 = vmatpush1.bf16.msra.mxu0 %v3546
    %3650 = vmatprep.subr.bf16.mxu0 %v3551
    %3651 = vmatpush1.bf16.msra.mxu0 %v3550
    %3652 = vmatprep.subr.bf16.mxu0 %v3555
    %3653 = vmatpush1.bf16.msra.mxu0 %v3554
    %3654 = vmatprep.mubr.bf16.mxu0 %v3215
    %3655 = vmatmul.mubr.bf16.gmra.mrb[0].mxu0 %v3214
    %v3656 = vpop.f32.mrb[0].mxu0
    %v3657 = vadd.f32 %v3285, %v3656
    %v3658 = vpop.f32.mrb[0].mxu0
    %v3659 = vadd.f32 %v3289, %v3658
    %v3660 = vpop.f32.mrb[0].mxu0
    %v3661 = vpop.f32.mrb[0].mxu0
    %3662 = vdwg.mxu0
    %3663 = vmatprep.subr.bf16.mxu0 %v3497
    %3664 = vmatpush1.bf16.msra.mxu0 %v3496
    %3665 = vmatprep.subr.bf16.mxu0 %v3501
    %3666 = vmatpush1.bf16.msra.mxu0 %v3500
    %3667 = vmatprep.subr.bf16.mxu0 %v3505
    %3668 = vmatpush1.bf16.msra.mxu0 %v3504
    %3669 = vmatprep.subr.bf16.mxu0 %v3509
    %3670 = vmatpush1.bf16.msra.mxu0 %v3508
    %3671 = vmatprep.subr.bf16.mxu0 %v3513
    %3672 = vmatpush1.bf16.msra.mxu0 %v3512
    %3673 = vmatprep.subr.bf16.mxu0 %v3517
    %3674 = vmatpush1.bf16.msra.mxu0 %v3516
    %3675 = vmatprep.subr.bf16.mxu0 %v3521
    %3676 = vmatpush1.bf16.msra.mxu0 %v3520
    %3677 = vmatprep.subr.bf16.mxu0 %v3525
    %3678 = vmatpush1.bf16.msra.mxu0 %v3524
    %3679 = vmatprep.subr.bf16.mxu0 %v3529
    %3680 = vmatpush1.bf16.msra.mxu0 %v3528
    %3681 = vmatprep.subr.bf16.mxu0 %v3533
    %3682 = vmatpush1.bf16.msra.mxu0 %v3532
    %3683 = vmatprep.subr.bf16.mxu0 %v3537
    %3684 = vmatpush1.bf16.msra.mxu0 %v3536
    %3685 = vmatprep.subr.bf16.mxu0 %v3541
    %3686 = vmatpush1.bf16.msra.mxu0 %v3540
    %3687 = vmatprep.subr.bf16.mxu0 %v3545
    %3688 = vmatpush1.bf16.msra.mxu0 %v3544
    %3689 = vmatprep.subr.bf16.mxu0 %v3549
    %3690 = vmatpush1.bf16.msra.mxu0 %v3548
    %3691 = vmatprep.subr.bf16.mxu0 %v3553
    %3692 = vmatpush1.bf16.msra.mxu0 %v3552
    %3693 = vmatprep.subr.bf16.mxu0 %v3557
    %3694 = vmatpush1.bf16.msra.mxu0 %v3556
    %3695 = vmatprep.mubr.bf16.mxu0 %v3215
    %3696 = vmatmul.mubr.bf16.gmra.mrb[0].mxu0 %v3214
    %v3697 = vpop.f32.mrb[0].mxu0
    %v3698 = vadd.f32 %v3293, %v3697
    %v3699 = vpop.f32.mrb[0].mxu0
    %v3700 = vadd.f32 %v3297, %v3699
    %v3701 = vpop.f32.mrb[0].mxu0
    %v3702 = vpop.f32.mrb[0].mxu0
    %3703 = vdwg.mxu0
    %v3704 = vmax.f32 %v3657, 0.0
    %v3705 = vmax.f32 %v3659, 0.0
    %v3706 = vmax.f32 %v3698, 0.0
    %v3707 = vmax.f32 %v3700, 0.0
    %v3708 = vpack.c.bf16 %v3704, %v3704
    %v3709 = vpack.c.bf16 %v3705, %v3705
    %v3710 = vpack.c.bf16 %v3706, %v3706
    %v3711 = vpack.c.bf16 %v3707, %v3707
    %v3712 = vld [vmem:[#allocation12] sm:$0xff]
    %v3713 = vld [vmem:[#allocation12 + $0x8] sm:$0xff]
    %v3714 = vld [vmem:[#allocation12 + $0x10] sm:$0xff]
    %v3715 = vld [vmem:[#allocation12 + $0x18] sm:$0xf]
    %v3716 = vld [vmem:[#allocation12 + $0x1c] sm:$0xff]
    %v3717 = vld [vmem:[#allocation12 + $0x24] sm:$0xff]
    %v3718 = vld [vmem:[#allocation12 + $0x2c] sm:$0xff]
    %v3719 = vld [vmem:[#allocation12 + $0x34] sm:$0xf]
    %v3720 = vld [vmem:[#allocation12 + $0x38] sm:$0xff]
    %v3721 = vld [vmem:[#allocation12 + $0x40] sm:$0xff]
    %v3722 = vld [vmem:[#allocation12 + $0x48] sm:$0xff]
    %v3723 = vld [vmem:[#allocation12 + $0x50] sm:$0xf]
    %v3724 = vld [vmem:[#allocation12 + $0x54] sm:$0xff]
    %v3725 = vld [vmem:[#allocation12 + $0x5c] sm:$0xff]
    %v3726 = vld [vmem:[#allocation12 + $0x64] sm:$0xff]
    %v3727 = vld [vmem:[#allocation12 + $0x6c] sm:$0xf]
    %v3728 = vld [vmem:[#allocation12 + $0x70] sm:$0xff]
    %v3729 = vld [vmem:[#allocation12 + $0x78] sm:$0xff]
    %v3730 = vld [vmem:[#allocation12 + $0x80] sm:$0xff]
    %v3731 = vld [vmem:[#allocation12 + $0x88] sm:$0xf]
    %v3732 = vld [vmem:[#allocation12 + $0x8c] sm:$0xff]
    %v3733 = vld [vmem:[#allocation12 + $0x94] sm:$0xff]
    %v3734 = vld [vmem:[#allocation12 + $0x9c] sm:$0xff]
    %v3735 = vld [vmem:[#allocation12 + $0xa4] sm:$0xf]
    %v3736 = vld [vmem:[#allocation12 + $0xa8] sm:$0xff]
    %v3737 = vld [vmem:[#allocation12 + $0xb0] sm:$0xff]
    %v3738 = vld [vmem:[#allocation12 + $0xb8] sm:$0xff]
    %v3739 = vld [vmem:[#allocation12 + $0xc0] sm:$0xf]
    %v3740 = vld [vmem:[#allocation12 + $0xc4] sm:$0xff]
    %v3741 = vld [vmem:[#allocation12 + $0xcc] sm:$0xff]
    %v3742 = vld [vmem:[#allocation12 + $0xd4] sm:$0xff]
    %v3743 = vld [vmem:[#allocation12 + $0xdc] sm:$0xf]
    %v3744 = vld [vmem:[#allocation12 + $0xe0] sm:$0xff]
    %v3745 = vld [vmem:[#allocation12 + $0xe8] sm:$0xff]
    %v3746 = vld [vmem:[#allocation12 + $0xf0] sm:$0xff]
    %v3747 = vld [vmem:[#allocation12 + $0xf8] sm:$0xf]
    %v3748 = vld [vmem:[#allocation12 + $0xfc] sm:$0xff]
    %v3749 = vld [vmem:[#allocation12 + $0x104] sm:$0xff]
    %v3750 = vld [vmem:[#allocation12 + $0x10c] sm:$0xff]
    %v3751 = vld [vmem:[#allocation12 + $0x114] sm:$0xf]
    %v3752 = vld [vmem:[#allocation12 + $0x118] sm:$0xff]
    %v3753 = vld [vmem:[#allocation12 + $0x120] sm:$0xff]
    %v3754 = vld [vmem:[#allocation12 + $0x128] sm:$0xff]
    %v3755 = vld [vmem:[#allocation12 + $0x130] sm:$0xf]
    %v3756 = vld [vmem:[#allocation12 + $0x134] sm:$0xff]
    %v3757 = vld [vmem:[#allocation12 + $0x13c] sm:$0xff]
    %v3758 = vld [vmem:[#allocation12 + $0x144] sm:$0xff]
    %v3759 = vld [vmem:[#allocation12 + $0x14c] sm:$0xf]
    %v3760 = vld [vmem:[#allocation12 + $0x150] sm:$0xff]
    %v3761 = vld [vmem:[#allocation12 + $0x158] sm:$0xff]
    %v3762 = vld [vmem:[#allocation12 + $0x160] sm:$0xff]
    %v3763 = vld [vmem:[#allocation12 + $0x168] sm:$0xf]
    %v3764 = vld [vmem:[#allocation12 + $0x16c] sm:$0xff]
    %v3765 = vld [vmem:[#allocation12 + $0x174] sm:$0xff]
    %v3766 = vld [vmem:[#allocation12 + $0x17c] sm:$0xff]
    %v3767 = vld [vmem:[#allocation12 + $0x184] sm:$0xf]
    %v3768 = vld [vmem:[#allocation12 + $0x188] sm:$0xff]
    %v3769 = vld [vmem:[#allocation12 + $0x190] sm:$0xff]
    %v3770 = vld [vmem:[#allocation12 + $0x198] sm:$0xff]
    %v3771 = vld [vmem:[#allocation12 + $0x1a0] sm:$0xf]
    %v3772 = vld [vmem:[#allocation12 + $0x1a4] sm:$0xff]
    %v3773 = vld [vmem:[#allocation12 + $0x1ac] sm:$0xff]
    %v3774 = vld [vmem:[#allocation12 + $0x1b4] sm:$0xff]
    %v3775 = vld [vmem:[#allocation12 + $0x1bc] sm:$0xf]
    %v3776 = vld [vmem:[#allocation12 + $0x1c0] sm:$0xff]
    %v3777 = vld [vmem:[#allocation12 + $0x1c8] sm:$0xff]
    %v3778 = vld [vmem:[#allocation12 + $0x1d0] sm:$0xff]
    %v3779 = vld [vmem:[#allocation12 + $0x1d8] sm:$0xf]
    %v3780 = vld [vmem:[#allocation12 + $0x1dc] sm:$0xff]
    %v3781 = vld [vmem:[#allocation12 + $0x1e4] sm:$0xff]
    %v3782 = vld [vmem:[#allocation12 + $0x1ec] sm:$0xff]
    %v3783 = vld [vmem:[#allocation12 + $0x1f4] sm:$0xf]
    %v3784 = vld [vmem:[#allocation12 + $0x1f8] sm:$0xff]
    %v3785 = vld [vmem:[#allocation12 + $0x200] sm:$0xff]
    %v3786 = vld [vmem:[#allocation12 + $0x208] sm:$0xff]
    %v3787 = vld [vmem:[#allocation12 + $0x210] sm:$0xf]
    %v3788 = vld [vmem:[#allocation12 + $0x214] sm:$0xff]
    %v3789 = vld [vmem:[#allocation12 + $0x21c] sm:$0xff]
    %v3790 = vld [vmem:[#allocation12 + $0x224] sm:$0xff]
    %v3791 = vld [vmem:[#allocation12 + $0x22c] sm:$0xf]
    %v3792 = vld [vmem:[#allocation12 + $0x230] sm:$0xff]
    %v3793 = vld [vmem:[#allocation12 + $0x238] sm:$0xff]
    %v3794 = vld [vmem:[#allocation12 + $0x240] sm:$0xff]
    %v3795 = vld [vmem:[#allocation12 + $0x248] sm:$0xf]
    %v3796 = vld [vmem:[#allocation12 + $0x24c] sm:$0xff]
    %v3797 = vld [vmem:[#allocation12 + $0x254] sm:$0xff]
    %v3798 = vld [vmem:[#allocation12 + $0x25c] sm:$0xff]
    %v3799 = vld [vmem:[#allocation12 + $0x264] sm:$0xf]
    %v3800 = vld [vmem:[#allocation12 + $0x268] sm:$0xff]
    %v3801 = vld [vmem:[#allocation12 + $0x270] sm:$0xff]
    %v3802 = vld [vmem:[#allocation12 + $0x278] sm:$0xff]
    %v3803 = vld [vmem:[#allocation12 + $0x280] sm:$0xf]
    %v3804 = vld [vmem:[#allocation12 + $0x284] sm:$0xff]
    %v3805 = vld [vmem:[#allocation12 + $0x28c] sm:$0xff]
    %v3806 = vld [vmem:[#allocation12 + $0x294] sm:$0xff]
    %v3807 = vld [vmem:[#allocation12 + $0x29c] sm:$0xf]
    %v3808 = vld [vmem:[#allocation12 + $0x2a0] sm:$0xff]
    %v3809 = vld [vmem:[#allocation12 + $0x2a8] sm:$0xff]
    %v3810 = vld [vmem:[#allocation12 + $0x2b0] sm:$0xff]
    %v3811 = vld [vmem:[#allocation12 + $0x2b8] sm:$0xf]
    %v3812 = vld [vmem:[#allocation12 + $0x2bc] sm:$0xff]
    %v3813 = vld [vmem:[#allocation12 + $0x2c4] sm:$0xff]
    %v3814 = vld [vmem:[#allocation12 + $0x2cc] sm:$0xff]
    %v3815 = vld [vmem:[#allocation12 + $0x2d4] sm:$0xf]
    %v3816 = vld [vmem:[#allocation12 + $0x2d8] sm:$0xff]
    %v3817 = vld [vmem:[#allocation12 + $0x2e0] sm:$0xff]
    %v3818 = vld [vmem:[#allocation12 + $0x2e8] sm:$0xff]
    %v3819 = vld [vmem:[#allocation12 + $0x2f0] sm:$0xf]
    %v3820 = vld [vmem:[#allocation12 + $0x2f4] sm:$0xff]
    %v3821 = vld [vmem:[#allocation12 + $0x2fc] sm:$0xff]
    %v3822 = vld [vmem:[#allocation12 + $0x304] sm:$0xff]
    %v3823 = vld [vmem:[#allocation12 + $0x30c] sm:$0xf]
    %v3824 = vld [vmem:[#allocation12 + $0x310] sm:$0xff]
    %v3825 = vld [vmem:[#allocation12 + $0x318] sm:$0xff]
    %v3826 = vld [vmem:[#allocation12 + $0x320] sm:$0xff]
    %v3827 = vld [vmem:[#allocation12 + $0x328] sm:$0xf]
    %v3828 = vld [vmem:[#allocation12 + $0x32c] sm:$0xff]
    %v3829 = vld [vmem:[#allocation12 + $0x334] sm:$0xff]
    %v3830 = vld [vmem:[#allocation12 + $0x33c] sm:$0xff]
    %v3831 = vld [vmem:[#allocation12 + $0x344] sm:$0xf]
    %v3832 = vld [vmem:[#allocation12 + $0x348] sm:$0xff]
    %v3833 = vld [vmem:[#allocation12 + $0x350] sm:$0xff]
    %v3834 = vld [vmem:[#allocation12 + $0x358] sm:$0xff]
    %v3835 = vld [vmem:[#allocation12 + $0x360] sm:$0xf]
    %v3836 = vld [vmem:[#allocation12 + $0x364] sm:$0xff]
    %v3837 = vld [vmem:[#allocation12 + $0x36c] sm:$0xff]
    %v3838 = vld [vmem:[#allocation12 + $0x374] sm:$0xff]
    %v3839 = vld [vmem:[#allocation12 + $0x37c] sm:$0xf]
    %v3840 = vld [vmem:[#allocation12 + $0x380] sm:$0xff]
    %v3841 = vld [vmem:[#allocation12 + $0x388] sm:$0xff]
    %v3842 = vld [vmem:[#allocation12 + $0x390] sm:$0xff]
    %v3843 = vld [vmem:[#allocation12 + $0x398] sm:$0xf]
    %v3844 = vld [vmem:[#allocation12 + $0x39c] sm:$0xff]
    %v3845 = vld [vmem:[#allocation12 + $0x3a4] sm:$0xff]
    %v3846 = vld [vmem:[#allocation12 + $0x3ac] sm:$0xff]
    %v3847 = vld [vmem:[#allocation12 + $0x3b4] sm:$0xf]
    %v3848 = vld [vmem:[#allocation12 + $0x3b8] sm:$0xff]
    %v3849 = vld [vmem:[#allocation12 + $0x3c0] sm:$0xff]
    %v3850 = vld [vmem:[#allocation12 + $0x3c8] sm:$0xff]
    %v3851 = vld [vmem:[#allocation12 + $0x3d0] sm:$0xf]
    %v3852 = vld [vmem:[#allocation12 + $0x3d4] sm:$0xff]
    %v3853 = vld [vmem:[#allocation12 + $0x3dc] sm:$0xff]
    %v3854 = vld [vmem:[#allocation12 + $0x3e4] sm:$0xff]
    %v3855 = vld [vmem:[#allocation12 + $0x3ec] sm:$0xf]
    %v3856 = vld [vmem:[#allocation12 + $0x3f0] sm:$0xff]
    %v3857 = vld [vmem:[#allocation12 + $0x3f8] sm:$0xff]
    %v3858 = vld [vmem:[#allocation12 + $0x400] sm:$0xff]
    %v3859 = vld [vmem:[#allocation12 + $0x408] sm:$0xf]
    %v3860 = vld [vmem:[#allocation12 + $0x40c] sm:$0xff]
    %v3861 = vld [vmem:[#allocation12 + $0x414] sm:$0xff]
    %v3862 = vld [vmem:[#allocation12 + $0x41c] sm:$0xff]
    %v3863 = vld [vmem:[#allocation12 + $0x424] sm:$0xf]
    %v3864 = vld [vmem:[#allocation12 + $0x428] sm:$0xff]
    %v3865 = vld [vmem:[#allocation12 + $0x430] sm:$0xff]
    %v3866 = vld [vmem:[#allocation12 + $0x438] sm:$0xff]
    %v3867 = vld [vmem:[#allocation12 + $0x440] sm:$0xf]
    %v3868 = vld [vmem:[#allocation12 + $0x444] sm:$0xff]
    %v3869 = vld [vmem:[#allocation12 + $0x44c] sm:$0xff]
    %v3870 = vld [vmem:[#allocation12 + $0x454] sm:$0xff]
    %v3871 = vld [vmem:[#allocation12 + $0x45c] sm:$0xf]
    %v3872 = vld [vmem:[#allocation12 + $0x460] sm:$0xff]
    %v3873 = vld [vmem:[#allocation12 + $0x468] sm:$0xff]
    %v3874 = vld [vmem:[#allocation12 + $0x470] sm:$0xff]
    %v3875 = vld [vmem:[#allocation12 + $0x478] sm:$0xf]
    %v3876 = vld [vmem:[#allocation12 + $0x47c] sm:$0xff]
    %v3877 = vld [vmem:[#allocation12 + $0x484] sm:$0xff]
    %v3878 = vld [vmem:[#allocation12 + $0x48c] sm:$0xff]
    %v3879 = vld [vmem:[#allocation12 + $0x494] sm:$0xf]
    %v3880 = vld [vmem:[#allocation12 + $0x498] sm:$0xff]
    %v3881 = vld [vmem:[#allocation12 + $0x4a0] sm:$0xff]
    %v3882 = vld [vmem:[#allocation12 + $0x4a8] sm:$0xff]
    %v3883 = vld [vmem:[#allocation12 + $0x4b0] sm:$0xf]
    %v3884 = vld [vmem:[#allocation12 + $0x4b4] sm:$0xff]
    %v3885 = vld [vmem:[#allocation12 + $0x4bc] sm:$0xff]
    %v3886 = vld [vmem:[#allocation12 + $0x4c4] sm:$0xff]
    %v3887 = vld [vmem:[#allocation12 + $0x4cc] sm:$0xf]
    %v3888 = vld [vmem:[#allocation12 + $0x4d0] sm:$0xff]
    %v3889 = vld [vmem:[#allocation12 + $0x4d8] sm:$0xff]
    %v3890 = vld [vmem:[#allocation12 + $0x4e0] sm:$0xff]
    %v3891 = vld [vmem:[#allocation12 + $0x4e8] sm:$0xf]
    %v3892 = vld [vmem:[#allocation12 + $0x4ec] sm:$0xff]
    %v3893 = vld [vmem:[#allocation12 + $0x4f4] sm:$0xff]
    %v3894 = vld [vmem:[#allocation12 + $0x4fc] sm:$0xff]
    %v3895 = vld [vmem:[#allocation12 + $0x504] sm:$0xf]
    %v3896 = vld [vmem:[#allocation12 + $0x508] sm:$0xff]
    %v3897 = vld [vmem:[#allocation12 + $0x510] sm:$0xff]
    %v3898 = vld [vmem:[#allocation12 + $0x518] sm:$0xff]
    %v3899 = vld [vmem:[#allocation12 + $0x520] sm:$0xf]
    %v3900 = vld [vmem:[#allocation12 + $0x524] sm:$0xff]
    %v3901 = vld [vmem:[#allocation12 + $0x52c] sm:$0xff]
    %v3902 = vld [vmem:[#allocation12 + $0x534] sm:$0xff]
    %v3903 = vld [vmem:[#allocation12 + $0x53c] sm:$0xf]
    %v3904 = vld [vmem:[#allocation12 + $0x540] sm:$0xff]
    %v3905 = vld [vmem:[#allocation12 + $0x548] sm:$0xff]
    %v3906 = vld [vmem:[#allocation12 + $0x550] sm:$0xff]
    %v3907 = vld [vmem:[#allocation12 + $0x558] sm:$0xf]
    %v3908 = vld [vmem:[#allocation12 + $0x55c] sm:$0xff]
    %v3909 = vld [vmem:[#allocation12 + $0x564] sm:$0xff]
    %v3910 = vld [vmem:[#allocation12 + $0x56c] sm:$0xff]
    %v3911 = vld [vmem:[#allocation12 + $0x574] sm:$0xf]
    %v3912 = vld [vmem:[#allocation12 + $0x578] sm:$0xff]
    %v3913 = vld [vmem:[#allocation12 + $0x580] sm:$0xff]
    %v3914 = vld [vmem:[#allocation12 + $0x588] sm:$0xff]
    %v3915 = vld [vmem:[#allocation12 + $0x590] sm:$0xf]
    %v3916 = vld [vmem:[#allocation12 + $0x594] sm:$0xff]
    %v3917 = vld [vmem:[#allocation12 + $0x59c] sm:$0xff]
    %v3918 = vld [vmem:[#allocation12 + $0x5a4] sm:$0xff]
    %v3919 = vld [vmem:[#allocation12 + $0x5ac] sm:$0xf]
    %v3920 = vld [vmem:[#allocation12 + $0x5b0] sm:$0xff]
    %v3921 = vld [vmem:[#allocation12 + $0x5b8] sm:$0xff]
    %v3922 = vld [vmem:[#allocation12 + $0x5c0] sm:$0xff]
    %v3923 = vld [vmem:[#allocation12 + $0x5c8] sm:$0xf]
    %v3924 = vld [vmem:[#allocation12 + $0x5cc] sm:$0xff]
    %v3925 = vld [vmem:[#allocation12 + $0x5d4] sm:$0xff]
    %v3926 = vld [vmem:[#allocation12 + $0x5dc] sm:$0xff]
    %v3927 = vld [vmem:[#allocation12 + $0x5e4] sm:$0xf]
    %v3928 = vld [vmem:[#allocation12 + $0x5e8] sm:$0xff]
    %v3929 = vld [vmem:[#allocation12 + $0x5f0] sm:$0xff]
    %v3930 = vld [vmem:[#allocation12 + $0x5f8] sm:$0xff]
    %v3931 = vld [vmem:[#allocation12 + $0x600] sm:$0xf]
    %v3932 = vld [vmem:[#allocation12 + $0x604] sm:$0xff]
    %v3933 = vld [vmem:[#allocation12 + $0x60c] sm:$0xff]
    %v3934 = vld [vmem:[#allocation12 + $0x614] sm:$0xff]
    %v3935 = vld [vmem:[#allocation12 + $0x61c] sm:$0xf]
    %v3936 = vld [vmem:[#allocation12 + $0x620] sm:$0xff]
    %v3937 = vld [vmem:[#allocation12 + $0x628] sm:$0xff]
    %v3938 = vld [vmem:[#allocation12 + $0x630] sm:$0xff]
    %v3939 = vld [vmem:[#allocation12 + $0x638] sm:$0xf]
    %v3940 = vld [vmem:[#allocation12 + $0x63c] sm:$0xff]
    %v3941 = vld [vmem:[#allocation12 + $0x644] sm:$0xff]
    %v3942 = vld [vmem:[#allocation12 + $0x64c] sm:$0xff]
    %v3943 = vld [vmem:[#allocation12 + $0x654] sm:$0xf]
    %v3944 = vld [vmem:[#allocation12 + $0x658] sm:$0xff]
    %v3945 = vld [vmem:[#allocation12 + $0x660] sm:$0xff]
    %v3946 = vld [vmem:[#allocation12 + $0x668] sm:$0xff]
    %v3947 = vld [vmem:[#allocation12 + $0x670] sm:$0xf]
    %v3948 = vld [vmem:[#allocation12 + $0x674] sm:$0xff]
    %v3949 = vld [vmem:[#allocation12 + $0x67c] sm:$0xff]
    %v3950 = vld [vmem:[#allocation12 + $0x684] sm:$0xff]
    %v3951 = vld [vmem:[#allocation12 + $0x68c] sm:$0xf]
    %v3952 = vld [vmem:[#allocation12 + $0x690] sm:$0xff]
    %v3953 = vld [vmem:[#allocation12 + $0x698] sm:$0xff]
    %v3954 = vld [vmem:[#allocation12 + $0x6a0] sm:$0xff]
    %v3955 = vld [vmem:[#allocation12 + $0x6a8] sm:$0xf]
    %v3956 = vld [vmem:[#allocation12 + $0x6ac] sm:$0xff]
    %v3957 = vld [vmem:[#allocation12 + $0x6b4] sm:$0xff]
    %v3958 = vld [vmem:[#allocation12 + $0x6bc] sm:$0xff]
    %v3959 = vld [vmem:[#allocation12 + $0x6c4] sm:$0xf]
    %v3960 = vld [vmem:[#allocation12 + $0x6c8] sm:$0xff]
    %v3961 = vld [vmem:[#allocation12 + $0x6d0] sm:$0xff]
    %v3962 = vld [vmem:[#allocation12 + $0x6d8] sm:$0xff]
    %v3963 = vld [vmem:[#allocation12 + $0x6e0] sm:$0xf]
    %v3964 = vld [vmem:[#allocation12 + $0x6e4] sm:$0xff]
    %v3965 = vld [vmem:[#allocation12 + $0x6ec] sm:$0xff]
    %v3966 = vld [vmem:[#allocation12 + $0x6f4] sm:$0xff]
    %v3967 = vld [vmem:[#allocation12 + $0x6fc] sm:$0xf]
    %v3968 = vld [vmem:[#allocation21] sm:$0xff]
    %v3970 = vlaneseq
    %v3971 = vshrl.u32 %v3970, 7
    %v3972 = vsub.s32 0, %v3971
    %v3973 = vrot.slane %v3968, %v3972
    %v3974 = vlaneseq
    %v3975 = vshrl.u32 %v3974, 7
    %v3976 = vsub.s32 1, %v3975
    %v3977 = vrot.slane %v3968, %v3976
    %v3978 = vlaneseq
    %v3979 = vshrl.u32 %v3978, 7
    %v3980 = vsub.s32 2, %v3979
    %v3981 = vrot.slane %v3968, %v3980
    %v3982 = vlaneseq
    %v3983 = vshrl.u32 %v3982, 7
    %v3984 = vsub.s32 3, %v3983
    %v3985 = vrot.slane %v3968, %v3984
    %v3986 = vlaneseq
    %v3987 = vshrl.u32 %v3986, 7
    %v3988 = vsub.s32 4, %v3987
    %v3989 = vrot.slane %v3968, %v3988
    %v3990 = vlaneseq
    %v3991 = vshrl.u32 %v3990, 7
    %v3992 = vsub.s32 5, %v3991
    %v3993 = vrot.slane %v3968, %v3992
    %v3994 = vlaneseq
    %v3995 = vshrl.u32 %v3994, 7
    %v3996 = vsub.s32 6, %v3995
    %v3997 = vrot.slane %v3968, %v3996
    %v4261 = vunpack.c.l.b16 %v3712
    %v4262 = vunpack.c.h.b16 %v3712
    %v4263 = vunpack.c.l.b16 %v3713
    %v4264 = vunpack.c.h.b16 %v3713
    %v4265 = vunpack.c.l.b16 %v3714
    %v4266 = vunpack.c.h.b16 %v3714
    %v4267 = vunpack.c.l.b16 %v3715
    %v4268 = vunpack.c.l.b16 %v3716
    %v4269 = vunpack.c.h.b16 %v3716
    %v4270 = vunpack.c.l.b16 %v3717
    %v4271 = vunpack.c.h.b16 %v3717
    %v4272 = vunpack.c.l.b16 %v3718
    %v4273 = vunpack.c.h.b16 %v3718
    %v4274 = vunpack.c.l.b16 %v3719
    %v4275 = vunpack.c.l.b16 %v3720
    %v4276 = vunpack.c.h.b16 %v3720
    %v4277 = vunpack.c.l.b16 %v3721
    %v4278 = vunpack.c.h.b16 %v3721
    %v4279 = vunpack.c.l.b16 %v3722
    %v4280 = vunpack.c.h.b16 %v3722
    %v4281 = vunpack.c.l.b16 %v3723
    %v4282 = vunpack.c.l.b16 %v3724
    %v4283 = vunpack.c.h.b16 %v3724
    %v4284 = vunpack.c.l.b16 %v3725
    %v4285 = vunpack.c.h.b16 %v3725
    %v4286 = vunpack.c.l.b16 %v3726
    %v4287 = vunpack.c.h.b16 %v3726
    %v4288 = vunpack.c.l.b16 %v3727
    %v4289 = vunpack.c.l.b16 %v3728
    %v4290 = vunpack.c.h.b16 %v3728
    %v4291 = vunpack.c.l.b16 %v3729
    %v4292 = vunpack.c.h.b16 %v3729
    %v4293 = vunpack.c.l.b16 %v3730
    %v4294 = vunpack.c.h.b16 %v3730
    %v4295 = vunpack.c.l.b16 %v3731
    %v4296 = vunpack.c.l.b16 %v3732
    %v4297 = vunpack.c.h.b16 %v3732
    %v4298 = vunpack.c.l.b16 %v3733
    %v4299 = vunpack.c.h.b16 %v3733
    %v4300 = vunpack.c.l.b16 %v3734
    %v4301 = vunpack.c.h.b16 %v3734
    %v4302 = vunpack.c.l.b16 %v3735
    %v4303 = vunpack.c.l.b16 %v3736
    %v4304 = vunpack.c.h.b16 %v3736
    %v4305 = vunpack.c.l.b16 %v3737
    %v4306 = vunpack.c.h.b16 %v3737
    %v4307 = vunpack.c.l.b16 %v3738
    %v4308 = vunpack.c.h.b16 %v3738
    %v4309 = vunpack.c.l.b16 %v3739
    %v4310 = vunpack.c.l.b16 %v3740
    %v4311 = vunpack.c.h.b16 %v3740
    %v4312 = vunpack.c.l.b16 %v3741
    %v4313 = vunpack.c.h.b16 %v3741
    %v4314 = vunpack.c.l.b16 %v3742
    %v4315 = vunpack.c.h.b16 %v3742
    %v4316 = vunpack.c.l.b16 %v3743
    %v4317 = vunpack.c.l.b16 %v3744
    %v4318 = vunpack.c.h.b16 %v3744
    %v4319 = vunpack.c.l.b16 %v3745
    %v4320 = vunpack.c.h.b16 %v3745
    %v4321 = vunpack.c.l.b16 %v3746
    %v4322 = vunpack.c.h.b16 %v3746
    %v4323 = vunpack.c.l.b16 %v3747
    %v4324 = vunpack.c.l.b16 %v3748
    %v4325 = vunpack.c.h.b16 %v3748
    %v4326 = vunpack.c.l.b16 %v3749
    %v4327 = vunpack.c.h.b16 %v3749
    %v4328 = vunpack.c.l.b16 %v3750
    %v4329 = vunpack.c.h.b16 %v3750
    %v4330 = vunpack.c.l.b16 %v3751
    %v4331 = vunpack.c.l.b16 %v3752
    %v4332 = vunpack.c.h.b16 %v3752
    %v4333 = vunpack.c.l.b16 %v3753
    %v4334 = vunpack.c.h.b16 %v3753
    %v4335 = vunpack.c.l.b16 %v3754
    %v4336 = vunpack.c.h.b16 %v3754
    %v4337 = vunpack.c.l.b16 %v3755
    %v4338 = vunpack.c.l.b16 %v3756
    %v4339 = vunpack.c.h.b16 %v3756
    %v4340 = vunpack.c.l.b16 %v3757
    %v4341 = vunpack.c.h.b16 %v3757
    %v4342 = vunpack.c.l.b16 %v3758
    %v4343 = vunpack.c.h.b16 %v3758
    %v4344 = vunpack.c.l.b16 %v3759
    %v4345 = vunpack.c.l.b16 %v3760
    %v4346 = vunpack.c.h.b16 %v3760
    %v4347 = vunpack.c.l.b16 %v3761
    %v4348 = vunpack.c.h.b16 %v3761
    %v4349 = vunpack.c.l.b16 %v3762
    %v4350 = vunpack.c.h.b16 %v3762
    %v4351 = vunpack.c.l.b16 %v3763
    %v4352 = vunpack.c.l.b16 %v3764
    %v4353 = vunpack.c.h.b16 %v3764
    %v4354 = vunpack.c.l.b16 %v3765
    %v4355 = vunpack.c.h.b16 %v3765
    %v4356 = vunpack.c.l.b16 %v3766
    %v4357 = vunpack.c.h.b16 %v3766
    %v4358 = vunpack.c.l.b16 %v3767
    %v4359 = vunpack.c.l.b16 %v3768
    %v4360 = vunpack.c.h.b16 %v3768
    %v4361 = vunpack.c.l.b16 %v3769
    %v4362 = vunpack.c.h.b16 %v3769
    %v4363 = vunpack.c.l.b16 %v3770
    %v4364 = vunpack.c.h.b16 %v3770
    %v4365 = vunpack.c.l.b16 %v3771
    %v4366 = vunpack.c.l.b16 %v3772
    %v4367 = vunpack.c.h.b16 %v3772
    %v4368 = vunpack.c.l.b16 %v3773
    %v4369 = vunpack.c.h.b16 %v3773
    %v4370 = vunpack.c.l.b16 %v3774
    %v4371 = vunpack.c.h.b16 %v3774
    %v4372 = vunpack.c.l.b16 %v3775
    %v4373 = vunpack.c.l.b16 %v3776
    %v4374 = vunpack.c.h.b16 %v3776
    %v4375 = vunpack.c.l.b16 %v3777
    %v4376 = vunpack.c.h.b16 %v3777
    %v4377 = vunpack.c.l.b16 %v3778
    %v4378 = vunpack.c.h.b16 %v3778
    %v4379 = vunpack.c.l.b16 %v3779
    %v4380 = vunpack.c.l.b16 %v3780
    %v4381 = vunpack.c.h.b16 %v3780
    %v4382 = vunpack.c.l.b16 %v3781
    %v4383 = vunpack.c.h.b16 %v3781
    %v4384 = vunpack.c.l.b16 %v3782
    %v4385 = vunpack.c.h.b16 %v3782
    %v4386 = vunpack.c.l.b16 %v3783
    %v4387 = vunpack.c.l.b16 %v3784
    %v4388 = vunpack.c.h.b16 %v3784
    %v4389 = vunpack.c.l.b16 %v3785
    %v4390 = vunpack.c.h.b16 %v3785
    %v4391 = vunpack.c.l.b16 %v3786
    %v4392 = vunpack.c.h.b16 %v3786
    %v4393 = vunpack.c.l.b16 %v3787
    %v4394 = vunpack.c.l.b16 %v3788
    %v4395 = vunpack.c.h.b16 %v3788
    %v4396 = vunpack.c.l.b16 %v3789
    %v4397 = vunpack.c.h.b16 %v3789
    %v4398 = vunpack.c.l.b16 %v3790
    %v4399 = vunpack.c.h.b16 %v3790
    %v4400 = vunpack.c.l.b16 %v3791
    %v4401 = vunpack.c.l.b16 %v3792
    %v4402 = vunpack.c.h.b16 %v3792
    %v4403 = vunpack.c.l.b16 %v3793
    %v4404 = vunpack.c.h.b16 %v3793
    %v4405 = vunpack.c.l.b16 %v3794
    %v4406 = vunpack.c.h.b16 %v3794
    %v4407 = vunpack.c.l.b16 %v3795
    %v4408 = vunpack.c.l.b16 %v3796
    %v4409 = vunpack.c.h.b16 %v3796
    %v4410 = vunpack.c.l.b16 %v3797
    %v4411 = vunpack.c.h.b16 %v3797
    %v4412 = vunpack.c.l.b16 %v3798
    %v4413 = vunpack.c.h.b16 %v3798
    %v4414 = vunpack.c.l.b16 %v3799
    %v4415 = vunpack.c.l.b16 %v3800
    %v4416 = vunpack.c.h.b16 %v3800
    %v4417 = vunpack.c.l.b16 %v3801
    %v4418 = vunpack.c.h.b16 %v3801
    %v4419 = vunpack.c.l.b16 %v3802
    %v4420 = vunpack.c.h.b16 %v3802
    %v4421 = vunpack.c.l.b16 %v3803
    %v4422 = vunpack.c.l.b16 %v3804
    %v4423 = vunpack.c.h.b16 %v3804
    %v4424 = vunpack.c.l.b16 %v3805
    %v4425 = vunpack.c.h.b16 %v3805
    %v4426 = vunpack.c.l.b16 %v3806
    %v4427 = vunpack.c.h.b16 %v3806
    %v4428 = vunpack.c.l.b16 %v3807
    %v4429 = vunpack.c.l.b16 %v3808
    %v4430 = vunpack.c.h.b16 %v3808
    %v4431 = vunpack.c.l.b16 %v3809
    %v4432 = vunpack.c.h.b16 %v3809
    %v4433 = vunpack.c.l.b16 %v3810
    %v4434 = vunpack.c.h.b16 %v3810
    %v4435 = vunpack.c.l.b16 %v3811
    %v4436 = vunpack.c.l.b16 %v3812
    %v4437 = vunpack.c.h.b16 %v3812
    %v4438 = vunpack.c.l.b16 %v3813
    %v4439 = vunpack.c.h.b16 %v3813
    %v4440 = vunpack.c.l.b16 %v3814
    %v4441 = vunpack.c.h.b16 %v3814
    %v4442 = vunpack.c.l.b16 %v3815
    %v4443 = vunpack.c.l.b16 %v3816
    %v4444 = vunpack.c.h.b16 %v3816
    %v4445 = vunpack.c.l.b16 %v3817
    %v4446 = vunpack.c.h.b16 %v3817
    %v4447 = vunpack.c.l.b16 %v3818
    %v4448 = vunpack.c.h.b16 %v3818
    %v4449 = vunpack.c.l.b16 %v3819
    %v4450 = vunpack.c.l.b16 %v3820
    %v4451 = vunpack.c.h.b16 %v3820
    %v4452 = vunpack.c.l.b16 %v3821
    %v4453 = vunpack.c.h.b16 %v3821
    %v4454 = vunpack.c.l.b16 %v3822
    %v4455 = vunpack.c.h.b16 %v3822
    %v4456 = vunpack.c.l.b16 %v3823
    %v4457 = vunpack.c.l.b16 %v3824
    %v4458 = vunpack.c.h.b16 %v3824
    %v4459 = vunpack.c.l.b16 %v3825
    %v4460 = vunpack.c.h.b16 %v3825
    %v4461 = vunpack.c.l.b16 %v3826
    %v4462 = vunpack.c.h.b16 %v3826
    %v4463 = vunpack.c.l.b16 %v3827
    %v4464 = vunpack.c.l.b16 %v3828
    %v4465 = vunpack.c.h.b16 %v3828
    %v4466 = vunpack.c.l.b16 %v3829
    %v4467 = vunpack.c.h.b16 %v3829
    %v4468 = vunpack.c.l.b16 %v3830
    %v4469 = vunpack.c.h.b16 %v3830
    %v4470 = vunpack.c.l.b16 %v3831
    %v4471 = vunpack.c.l.b16 %v3832
    %v4472 = vunpack.c.h.b16 %v3832
    %v4473 = vunpack.c.l.b16 %v3833
    %v4474 = vunpack.c.h.b16 %v3833
    %v4475 = vunpack.c.l.b16 %v3834
    %v4476 = vunpack.c.h.b16 %v3834
    %v4477 = vunpack.c.l.b16 %v3835
    %v4478 = vunpack.c.l.b16 %v3836
    %v4479 = vunpack.c.h.b16 %v3836
    %v4480 = vunpack.c.l.b16 %v3837
    %v4481 = vunpack.c.h.b16 %v3837
    %v4482 = vunpack.c.l.b16 %v3838
    %v4483 = vunpack.c.h.b16 %v3838
    %v4484 = vunpack.c.l.b16 %v3839
    %v4485 = vunpack.c.l.b16 %v3840
    %v4486 = vunpack.c.h.b16 %v3840
    %v4487 = vunpack.c.l.b16 %v3841
    %v4488 = vunpack.c.h.b16 %v3841
    %v4489 = vunpack.c.l.b16 %v3842
    %v4490 = vunpack.c.h.b16 %v3842
    %v4491 = vunpack.c.l.b16 %v3843
    %v4492 = vunpack.c.l.b16 %v3844
    %v4493 = vunpack.c.h.b16 %v3844
    %v4494 = vunpack.c.l.b16 %v3845
    %v4495 = vunpack.c.h.b16 %v3845
    %v4496 = vunpack.c.l.b16 %v3846
    %v4497 = vunpack.c.h.b16 %v3846
    %v4498 = vunpack.c.l.b16 %v3847
    %v4499 = vunpack.c.l.b16 %v3848
    %v4500 = vunpack.c.h.b16 %v3848
    %v4501 = vunpack.c.l.b16 %v3849
    %v4502 = vunpack.c.h.b16 %v3849
    %v4503 = vunpack.c.l.b16 %v3850
    %v4504 = vunpack.c.h.b16 %v3850
    %v4505 = vunpack.c.l.b16 %v3851
    %v4506 = vunpack.c.l.b16 %v3852
    %v4507 = vunpack.c.h.b16 %v3852
    %v4508 = vunpack.c.l.b16 %v3853
    %v4509 = vunpack.c.h.b16 %v3853
    %v4510 = vunpack.c.l.b16 %v3854
    %v4511 = vunpack.c.h.b16 %v3854
    %v4512 = vunpack.c.l.b16 %v3855
    %v4513 = vunpack.c.l.b16 %v3856
    %v4514 = vunpack.c.h.b16 %v3856
    %v4515 = vunpack.c.l.b16 %v3857
    %v4516 = vunpack.c.h.b16 %v3857
    %v4517 = vunpack.c.l.b16 %v3858
    %v4518 = vunpack.c.h.b16 %v3858
    %v4519 = vunpack.c.l.b16 %v3859
    %v4520 = vunpack.c.l.b16 %v3860
    %v4521 = vunpack.c.h.b16 %v3860
    %v4522 = vunpack.c.l.b16 %v3861
    %v4523 = vunpack.c.h.b16 %v3861
    %v4524 = vunpack.c.l.b16 %v3862
    %v4525 = vunpack.c.h.b16 %v3862
    %v4526 = vunpack.c.l.b16 %v3863
    %v4527 = vunpack.c.l.b16 %v3864
    %v4528 = vunpack.c.h.b16 %v3864
    %v4529 = vunpack.c.l.b16 %v3865
    %v4530 = vunpack.c.h.b16 %v3865
    %v4531 = vunpack.c.l.b16 %v3866
    %v4532 = vunpack.c.h.b16 %v3866
    %v4533 = vunpack.c.l.b16 %v3867
    %v4534 = vunpack.c.l.b16 %v3868
    %v4535 = vunpack.c.h.b16 %v3868
    %v4536 = vunpack.c.l.b16 %v3869
    %v4537 = vunpack.c.h.b16 %v3869
    %v4538 = vunpack.c.l.b16 %v3870
    %v4539 = vunpack.c.h.b16 %v3870
    %v4540 = vunpack.c.l.b16 %v3871
    %v4541 = vunpack.c.l.b16 %v3872
    %v4542 = vunpack.c.h.b16 %v3872
    %v4543 = vunpack.c.l.b16 %v3873
    %v4544 = vunpack.c.h.b16 %v3873
    %v4545 = vunpack.c.l.b16 %v3874
    %v4546 = vunpack.c.h.b16 %v3874
    %v4547 = vunpack.c.l.b16 %v3875
    %v4548 = vunpack.c.l.b16 %v3876
    %v4549 = vunpack.c.h.b16 %v3876
    %v4550 = vunpack.c.l.b16 %v3877
    %v4551 = vunpack.c.h.b16 %v3877
    %v4552 = vunpack.c.l.b16 %v3878
    %v4553 = vunpack.c.h.b16 %v3878
    %v4554 = vunpack.c.l.b16 %v3879
    %v4555 = vunpack.c.l.b16 %v3880
    %v4556 = vunpack.c.h.b16 %v3880
    %v4557 = vunpack.c.l.b16 %v3881
    %v4558 = vunpack.c.h.b16 %v3881
    %v4559 = vunpack.c.l.b16 %v3882
    %v4560 = vunpack.c.h.b16 %v3882
    %v4561 = vunpack.c.l.b16 %v3883
    %v4562 = vunpack.c.l.b16 %v3884
    %v4563 = vunpack.c.h.b16 %v3884
    %v4564 = vunpack.c.l.b16 %v3885
    %v4565 = vunpack.c.h.b16 %v3885
    %v4566 = vunpack.c.l.b16 %v3886
    %v4567 = vunpack.c.h.b16 %v3886
    %v4568 = vunpack.c.l.b16 %v3887
    %v4569 = vunpack.c.l.b16 %v3888
    %v4570 = vunpack.c.h.b16 %v3888
    %v4571 = vunpack.c.l.b16 %v3889
    %v4572 = vunpack.c.h.b16 %v3889
    %v4573 = vunpack.c.l.b16 %v3890
    %v4574 = vunpack.c.h.b16 %v3890
    %v4575 = vunpack.c.l.b16 %v3891
    %v4576 = vunpack.c.l.b16 %v3892
    %v4577 = vunpack.c.h.b16 %v3892
    %v4578 = vunpack.c.l.b16 %v3893
    %v4579 = vunpack.c.h.b16 %v3893
    %v4580 = vunpack.c.l.b16 %v3894
    %v4581 = vunpack.c.h.b16 %v3894
    %v4582 = vunpack.c.l.b16 %v3895
    %v4583 = vunpack.c.l.b16 %v3896
    %v4584 = vunpack.c.h.b16 %v3896
    %v4585 = vunpack.c.l.b16 %v3897
    %v4586 = vunpack.c.h.b16 %v3897
    %v4587 = vunpack.c.l.b16 %v3898
    %v4588 = vunpack.c.h.b16 %v3898
    %v4589 = vunpack.c.l.b16 %v3899
    %v4590 = vunpack.c.l.b16 %v3900
    %v4591 = vunpack.c.h.b16 %v3900
    %v4592 = vunpack.c.l.b16 %v3901
    %v4593 = vunpack.c.h.b16 %v3901
    %v4594 = vunpack.c.l.b16 %v3902
    %v4595 = vunpack.c.h.b16 %v3902
    %v4596 = vunpack.c.l.b16 %v3903
    %v4597 = vunpack.c.l.b16 %v3904
    %v4598 = vunpack.c.h.b16 %v3904
    %v4599 = vunpack.c.l.b16 %v3905
    %v4600 = vunpack.c.h.b16 %v3905
    %v4601 = vunpack.c.l.b16 %v3906
    %v4602 = vunpack.c.h.b16 %v3906
    %v4603 = vunpack.c.l.b16 %v3907
    %v4604 = vunpack.c.l.b16 %v3908
    %v4605 = vunpack.c.h.b16 %v3908
    %v4606 = vunpack.c.l.b16 %v3909
    %v4607 = vunpack.c.h.b16 %v3909
    %v4608 = vunpack.c.l.b16 %v3910
    %v4609 = vunpack.c.h.b16 %v3910
    %v4610 = vunpack.c.l.b16 %v3911
    %v4611 = vunpack.c.l.b16 %v3912
    %v4612 = vunpack.c.h.b16 %v3912
    %v4613 = vunpack.c.l.b16 %v3913
    %v4614 = vunpack.c.h.b16 %v3913
    %v4615 = vunpack.c.l.b16 %v3914
    %v4616 = vunpack.c.h.b16 %v3914
    %v4617 = vunpack.c.l.b16 %v3915
    %v4618 = vunpack.c.l.b16 %v3916
    %v4619 = vunpack.c.h.b16 %v3916
    %v4620 = vunpack.c.l.b16 %v3917
    %v4621 = vunpack.c.h.b16 %v3917
    %v4622 = vunpack.c.l.b16 %v3918
    %v4623 = vunpack.c.h.b16 %v3918
    %v4624 = vunpack.c.l.b16 %v3919
    %v4625 = vunpack.c.l.b16 %v3920
    %v4626 = vunpack.c.h.b16 %v3920
    %v4627 = vunpack.c.l.b16 %v3921
    %v4628 = vunpack.c.h.b16 %v3921
    %v4629 = vunpack.c.l.b16 %v3922
    %v4630 = vunpack.c.h.b16 %v3922
    %v4631 = vunpack.c.l.b16 %v3923
    %v4632 = vunpack.c.l.b16 %v3924
    %v4633 = vunpack.c.h.b16 %v3924
    %v4634 = vunpack.c.l.b16 %v3925
    %v4635 = vunpack.c.h.b16 %v3925
    %v4636 = vunpack.c.l.b16 %v3926
    %v4637 = vunpack.c.h.b16 %v3926
    %v4638 = vunpack.c.l.b16 %v3927
    %v4639 = vunpack.c.l.b16 %v3928
    %v4640 = vunpack.c.h.b16 %v3928
    %v4641 = vunpack.c.l.b16 %v3929
    %v4642 = vunpack.c.h.b16 %v3929
    %v4643 = vunpack.c.l.b16 %v3930
    %v4644 = vunpack.c.h.b16 %v3930
    %v4645 = vunpack.c.l.b16 %v3931
    %v4646 = vunpack.c.l.b16 %v3932
    %v4647 = vunpack.c.h.b16 %v3932
    %v4648 = vunpack.c.l.b16 %v3933
    %v4649 = vunpack.c.h.b16 %v3933
    %v4650 = vunpack.c.l.b16 %v3934
    %v4651 = vunpack.c.h.b16 %v3934
    %v4652 = vunpack.c.l.b16 %v3935
    %v4653 = vunpack.c.l.b16 %v3936
    %v4654 = vunpack.c.h.b16 %v3936
    %v4655 = vunpack.c.l.b16 %v3937
    %v4656 = vunpack.c.h.b16 %v3937
    %v4657 = vunpack.c.l.b16 %v3938
    %v4658 = vunpack.c.h.b16 %v3938
    %v4659 = vunpack.c.l.b16 %v3939
    %v4660 = vunpack.c.l.b16 %v3940
    %v4661 = vunpack.c.h.b16 %v3940
    %v4662 = vunpack.c.l.b16 %v3941
    %v4663 = vunpack.c.h.b16 %v3941
    %v4664 = vunpack.c.l.b16 %v3942
    %v4665 = vunpack.c.h.b16 %v3942
    %v4666 = vunpack.c.l.b16 %v3943
    %v4667 = vunpack.c.l.b16 %v3944
    %v4668 = vunpack.c.h.b16 %v3944
    %v4669 = vunpack.c.l.b16 %v3945
    %v4670 = vunpack.c.h.b16 %v3945
    %v4671 = vunpack.c.l.b16 %v3946
    %v4672 = vunpack.c.h.b16 %v3946
    %v4673 = vunpack.c.l.b16 %v3947
    %v4674 = vunpack.c.l.b16 %v3948
    %v4675 = vunpack.c.h.b16 %v3948
    %v4676 = vunpack.c.l.b16 %v3949
    %v4677 = vunpack.c.h.b16 %v3949
    %v4678 = vunpack.c.l.b16 %v3950
    %v4679 = vunpack.c.h.b16 %v3950
    %v4680 = vunpack.c.l.b16 %v3951
    %v4681 = vunpack.c.l.b16 %v3952
    %v4682 = vunpack.c.h.b16 %v3952
    %v4683 = vunpack.c.l.b16 %v3953
    %v4684 = vunpack.c.h.b16 %v3953
    %v4685 = vunpack.c.l.b16 %v3954
    %v4686 = vunpack.c.h.b16 %v3954
    %v4687 = vunpack.c.l.b16 %v3955
    %v4688 = vunpack.c.l.b16 %v3956
    %v4689 = vunpack.c.h.b16 %v3956
    %v4690 = vunpack.c.l.b16 %v3957
    %v4691 = vunpack.c.h.b16 %v3957
    %v4692 = vunpack.c.l.b16 %v3958
    %v4693 = vunpack.c.h.b16 %v3958
    %v4694 = vunpack.c.l.b16 %v3959
    %v4695 = vunpack.c.l.b16 %v3960
    %v4696 = vunpack.c.h.b16 %v3960
    %v4697 = vunpack.c.l.b16 %v3961
    %v4698 = vunpack.c.h.b16 %v3961
    %v4699 = vunpack.c.l.b16 %v3962
    %v4700 = vunpack.c.h.b16 %v3962
    %v4701 = vunpack.c.l.b16 %v3963
    %v4702 = vunpack.c.l.b16 %v3964
    %v4703 = vunpack.c.h.b16 %v3964
    %v4704 = vunpack.c.l.b16 %v3965
    %v4705 = vunpack.c.h.b16 %v3965
    %v4706 = vunpack.c.l.b16 %v3966
    %v4707 = vunpack.c.h.b16 %v3966
    %v4708 = vunpack.c.l.b16 %v3967
    %v4709 = vpack.c.b16 %v4268, %v4261
    %v4710 = vpack.c.b16 %v4269, %v4262
    %v4711 = vpack.c.b16 %v4270, %v4263
    %v4712 = vpack.c.b16 %v4271, %v4264
    %v4713 = vpack.c.b16 %v4272, %v4265
    %v4714 = vpack.c.b16 %v4273, %v4266
    %v4715 = vpack.c.b16 %v4274, %v4267
    %v4716 = vpack.c.b16 %v4282, %v4275
    %v4717 = vpack.c.b16 %v4283, %v4276
    %v4718 = vpack.c.b16 %v4284, %v4277
    %v4719 = vpack.c.b16 %v4285, %v4278
    %v4720 = vpack.c.b16 %v4286, %v4279
    %v4721 = vpack.c.b16 %v4287, %v4280
    %v4722 = vpack.c.b16 %v4288, %v4281
    %v4723 = vpack.c.b16 %v4296, %v4289
    %v4724 = vpack.c.b16 %v4297, %v4290
    %v4725 = vpack.c.b16 %v4298, %v4291
    %v4726 = vpack.c.b16 %v4299, %v4292
    %v4727 = vpack.c.b16 %v4300, %v4293
    %v4728 = vpack.c.b16 %v4301, %v4294
    %v4729 = vpack.c.b16 %v4302, %v4295
    %v4730 = vpack.c.b16 %v4310, %v4303
    %v4731 = vpack.c.b16 %v4311, %v4304
    %v4732 = vpack.c.b16 %v4312, %v4305
    %v4733 = vpack.c.b16 %v4313, %v4306
    %v4734 = vpack.c.b16 %v4314, %v4307
    %v4735 = vpack.c.b16 %v4315, %v4308
    %v4736 = vpack.c.b16 %v4316, %v4309
    %v4737 = vpack.c.b16 %v4324, %v4317
    %v4738 = vpack.c.b16 %v4325, %v4318
    %v4739 = vpack.c.b16 %v4326, %v4319
    %v4740 = vpack.c.b16 %v4327, %v4320
    %v4741 = vpack.c.b16 %v4328, %v4321
    %v4742 = vpack.c.b16 %v4329, %v4322
    %v4743 = vpack.c.b16 %v4330, %v4323
    %v4744 = vpack.c.b16 %v4338, %v4331
    %v4745 = vpack.c.b16 %v4339, %v4332
    %v4746 = vpack.c.b16 %v4340, %v4333
    %v4747 = vpack.c.b16 %v4341, %v4334
    %v4748 = vpack.c.b16 %v4342, %v4335
    %v4749 = vpack.c.b16 %v4343, %v4336
    %v4750 = vpack.c.b16 %v4344, %v4337
    %v4751 = vpack.c.b16 %v4352, %v4345
    %v4752 = vpack.c.b16 %v4353, %v4346
    %v4753 = vpack.c.b16 %v4354, %v4347
    %v4754 = vpack.c.b16 %v4355, %v4348
    %v4755 = vpack.c.b16 %v4356, %v4349
    %v4756 = vpack.c.b16 %v4357, %v4350
    %v4757 = vpack.c.b16 %v4358, %v4351
    %v4758 = vpack.c.b16 %v4366, %v4359
    %v4759 = vpack.c.b16 %v4367, %v4360
    %v4760 = vpack.c.b16 %v4368, %v4361
    %v4761 = vpack.c.b16 %v4369, %v4362
    %v4762 = vpack.c.b16 %v4370, %v4363
    %v4763 = vpack.c.b16 %v4371, %v4364
    %v4764 = vpack.c.b16 %v4372, %v4365
    %v4765 = vpack.c.b16 %v4380, %v4373
    %v4766 = vpack.c.b16 %v4381, %v4374
    %v4767 = vpack.c.b16 %v4382, %v4375
    %v4768 = vpack.c.b16 %v4383, %v4376
    %v4769 = vpack.c.b16 %v4384, %v4377
    %v4770 = vpack.c.b16 %v4385, %v4378
    %v4771 = vpack.c.b16 %v4386, %v4379
    %v4772 = vpack.c.b16 %v4394, %v4387
    %v4773 = vpack.c.b16 %v4395, %v4388
    %v4774 = vpack.c.b16 %v4396, %v4389
    %v4775 = vpack.c.b16 %v4397, %v4390
    %v4776 = vpack.c.b16 %v4398, %v4391
    %v4777 = vpack.c.b16 %v4399, %v4392
    %v4778 = vpack.c.b16 %v4400, %v4393
    %v4779 = vpack.c.b16 %v4408, %v4401
    %v4780 = vpack.c.b16 %v4409, %v4402
    %v4781 = vpack.c.b16 %v4410, %v4403
    %v4782 = vpack.c.b16 %v4411, %v4404
    %v4783 = vpack.c.b16 %v4412, %v4405
    %v4784 = vpack.c.b16 %v4413, %v4406
    %v4785 = vpack.c.b16 %v4414, %v4407
    %v4786 = vpack.c.b16 %v4422, %v4415
    %v4787 = vpack.c.b16 %v4423, %v4416
    %v4788 = vpack.c.b16 %v4424, %v4417
    %v4789 = vpack.c.b16 %v4425, %v4418
    %v4790 = vpack.c.b16 %v4426, %v4419
    %v4791 = vpack.c.b16 %v4427, %v4420
    %v4792 = vpack.c.b16 %v4428, %v4421
    %v4793 = vpack.c.b16 %v4436, %v4429
    %v4794 = vpack.c.b16 %v4437, %v4430
    %v4795 = vpack.c.b16 %v4438, %v4431
    %v4796 = vpack.c.b16 %v4439, %v4432
    %v4797 = vpack.c.b16 %v4440, %v4433
    %v4798 = vpack.c.b16 %v4441, %v4434
    %v4799 = vpack.c.b16 %v4442, %v4435
    %v4800 = vpack.c.b16 %v4450, %v4443
    %v4801 = vpack.c.b16 %v4451, %v4444
    %v4802 = vpack.c.b16 %v4452, %v4445
    %v4803 = vpack.c.b16 %v4453, %v4446
    %v4804 = vpack.c.b16 %v4454, %v4447
    %v4805 = vpack.c.b16 %v4455, %v4448
    %v4806 = vpack.c.b16 %v4456, %v4449
    %v4807 = vpack.c.b16 %v4464, %v4457
    %v4808 = vpack.c.b16 %v4465, %v4458
    %v4809 = vpack.c.b16 %v4466, %v4459
    %v4810 = vpack.c.b16 %v4467, %v4460
    %v4811 = vpack.c.b16 %v4468, %v4461
    %v4812 = vpack.c.b16 %v4469, %v4462
    %v4813 = vpack.c.b16 %v4470, %v4463
    %v4814 = vpack.c.b16 %v4478, %v4471
    %v4815 = vpack.c.b16 %v4479, %v4472
    %v4816 = vpack.c.b16 %v4480, %v4473
    %v4817 = vpack.c.b16 %v4481, %v4474
    %v4818 = vpack.c.b16 %v4482, %v4475
    %v4819 = vpack.c.b16 %v4483, %v4476
    %v4820 = vpack.c.b16 %v4484, %v4477
    %v4821 = vpack.c.b16 %v4492, %v4485
    %v4822 = vpack.c.b16 %v4493, %v4486
    %v4823 = vpack.c.b16 %v4494, %v4487
    %v4824 = vpack.c.b16 %v4495, %v4488
    %v4825 = vpack.c.b16 %v4496, %v4489
    %v4826 = vpack.c.b16 %v4497, %v4490
    %v4827 = vpack.c.b16 %v4498, %v4491
    %v4828 = vpack.c.b16 %v4506, %v4499
    %v4829 = vpack.c.b16 %v4507, %v4500
    %v4830 = vpack.c.b16 %v4508, %v4501
    %v4831 = vpack.c.b16 %v4509, %v4502
    %v4832 = vpack.c.b16 %v4510, %v4503
    %v4833 = vpack.c.b16 %v4511, %v4504
    %v4834 = vpack.c.b16 %v4512, %v4505
    %v4835 = vpack.c.b16 %v4520, %v4513
    %v4836 = vpack.c.b16 %v4521, %v4514
    %v4837 = vpack.c.b16 %v4522, %v4515
    %v4838 = vpack.c.b16 %v4523, %v4516
    %v4839 = vpack.c.b16 %v4524, %v4517
    %v4840 = vpack.c.b16 %v4525, %v4518
    %v4841 = vpack.c.b16 %v4526, %v4519
    %v4842 = vpack.c.b16 %v4534, %v4527
    %v4843 = vpack.c.b16 %v4535, %v4528
    %v4844 = vpack.c.b16 %v4536, %v4529
    %v4845 = vpack.c.b16 %v4537, %v4530
    %v4846 = vpack.c.b16 %v4538, %v4531
    %v4847 = vpack.c.b16 %v4539, %v4532
    %v4848 = vpack.c.b16 %v4540, %v4533
    %v4849 = vpack.c.b16 %v4548, %v4541
    %v4850 = vpack.c.b16 %v4549, %v4542
    %v4851 = vpack.c.b16 %v4550, %v4543
    %v4852 = vpack.c.b16 %v4551, %v4544
    %v4853 = vpack.c.b16 %v4552, %v4545
    %v4854 = vpack.c.b16 %v4553, %v4546
    %v4855 = vpack.c.b16 %v4554, %v4547
    %v4856 = vpack.c.b16 %v4562, %v4555
    %v4857 = vpack.c.b16 %v4563, %v4556
    %v4858 = vpack.c.b16 %v4564, %v4557
    %v4859 = vpack.c.b16 %v4565, %v4558
    %v4860 = vpack.c.b16 %v4566, %v4559
    %v4861 = vpack.c.b16 %v4567, %v4560
    %v4862 = vpack.c.b16 %v4568, %v4561
    %v4863 = vpack.c.b16 %v4576, %v4569
    %v4864 = vpack.c.b16 %v4577, %v4570
    %v4865 = vpack.c.b16 %v4578, %v4571
    %v4866 = vpack.c.b16 %v4579, %v4572
    %v4867 = vpack.c.b16 %v4580, %v4573
    %v4868 = vpack.c.b16 %v4581, %v4574
    %v4869 = vpack.c.b16 %v4582, %v4575
    %v4870 = vpack.c.b16 %v4590, %v4583
    %v4871 = vpack.c.b16 %v4591, %v4584
    %v4872 = vpack.c.b16 %v4592, %v4585
    %v4873 = vpack.c.b16 %v4593, %v4586
    %v4874 = vpack.c.b16 %v4594, %v4587
    %v4875 = vpack.c.b16 %v4595, %v4588
    %v4876 = vpack.c.b16 %v4596, %v4589
    %v4877 = vpack.c.b16 %v4604, %v4597
    %v4878 = vpack.c.b16 %v4605, %v4598
    %v4879 = vpack.c.b16 %v4606, %v4599
    %v4880 = vpack.c.b16 %v4607, %v4600
    %v4881 = vpack.c.b16 %v4608, %v4601
    %v4882 = vpack.c.b16 %v4609, %v4602
    %v4883 = vpack.c.b16 %v4610, %v4603
    %v4884 = vpack.c.b16 %v4618, %v4611
    %v4885 = vpack.c.b16 %v4619, %v4612
    %v4886 = vpack.c.b16 %v4620, %v4613
    %v4887 = vpack.c.b16 %v4621, %v4614
    %v4888 = vpack.c.b16 %v4622, %v4615
    %v4889 = vpack.c.b16 %v4623, %v4616
    %v4890 = vpack.c.b16 %v4624, %v4617
    %v4891 = vpack.c.b16 %v4632, %v4625
    %v4892 = vpack.c.b16 %v4633, %v4626
    %v4893 = vpack.c.b16 %v4634, %v4627
    %v4894 = vpack.c.b16 %v4635, %v4628
    %v4895 = vpack.c.b16 %v4636, %v4629
    %v4896 = vpack.c.b16 %v4637, %v4630
    %v4897 = vpack.c.b16 %v4638, %v4631
    %v4898 = vpack.c.b16 %v4646, %v4639
    %v4899 = vpack.c.b16 %v4647, %v4640
    %v4900 = vpack.c.b16 %v4648, %v4641
    %v4901 = vpack.c.b16 %v4649, %v4642
    %v4902 = vpack.c.b16 %v4650, %v4643
    %v4903 = vpack.c.b16 %v4651, %v4644
    %v4904 = vpack.c.b16 %v4652, %v4645
    %v4905 = vpack.c.b16 %v4660, %v4653
    %v4906 = vpack.c.b16 %v4661, %v4654
    %v4907 = vpack.c.b16 %v4662, %v4655
    %v4908 = vpack.c.b16 %v4663, %v4656
    %v4909 = vpack.c.b16 %v4664, %v4657
    %v4910 = vpack.c.b16 %v4665, %v4658
    %v4911 = vpack.c.b16 %v4666, %v4659
    %v4912 = vpack.c.b16 %v4674, %v4667
    %v4913 = vpack.c.b16 %v4675, %v4668
    %v4914 = vpack.c.b16 %v4676, %v4669
    %v4915 = vpack.c.b16 %v4677, %v4670
    %v4916 = vpack.c.b16 %v4678, %v4671
    %v4917 = vpack.c.b16 %v4679, %v4672
    %v4918 = vpack.c.b16 %v4680, %v4673
    %v4919 = vpack.c.b16 %v4688, %v4681
    %v4920 = vpack.c.b16 %v4689, %v4682
    %v4921 = vpack.c.b16 %v4690, %v4683
    %v4922 = vpack.c.b16 %v4691, %v4684
    %v4923 = vpack.c.b16 %v4692, %v4685
    %v4924 = vpack.c.b16 %v4693, %v4686
    %v4925 = vpack.c.b16 %v4694, %v4687
    %v4926 = vpack.c.b16 %v4702, %v4695
    %v4927 = vpack.c.b16 %v4703, %v4696
    %v4928 = vpack.c.b16 %v4704, %v4697
    %v4929 = vpack.c.b16 %v4705, %v4698
    %v4930 = vpack.c.b16 %v4706, %v4699
    %v4931 = vpack.c.b16 %v4707, %v4700
    %v4932 = vpack.c.b16 %v4708, %v4701
    %5157 = vmatprep.subr.bf16.mxu0 %v4710
    %5158 = vmatpush1.bf16.msra.mxu0 %v4709
    %5159 = vmatprep.subr.bf16.mxu0 %v4717
    %5160 = vmatpush1.bf16.msra.mxu0 %v4716
    %5161 = vmatprep.subr.bf16.mxu0 %v4724
    %5162 = vmatpush1.bf16.msra.mxu0 %v4723
    %5163 = vmatprep.subr.bf16.mxu0 %v4731
    %5164 = vmatpush1.bf16.msra.mxu0 %v4730
    %5165 = vmatprep.subr.bf16.mxu0 %v4738
    %5166 = vmatpush1.bf16.msra.mxu0 %v4737
    %5167 = vmatprep.subr.bf16.mxu0 %v4745
    %5168 = vmatpush1.bf16.msra.mxu0 %v4744
    %5169 = vmatprep.subr.bf16.mxu0 %v4752
    %5170 = vmatpush1.bf16.msra.mxu0 %v4751
    %5171 = vmatprep.subr.bf16.mxu0 %v4759
    %5172 = vmatpush1.bf16.msra.mxu0 %v4758
    %5173 = vmatprep.subr.bf16.mxu0 %v4766
    %5174 = vmatpush1.bf16.msra.mxu0 %v4765
    %5175 = vmatprep.subr.bf16.mxu0 %v4773
    %5176 = vmatpush1.bf16.msra.mxu0 %v4772
    %5177 = vmatprep.subr.bf16.mxu0 %v4780
    %5178 = vmatpush1.bf16.msra.mxu0 %v4779
    %5179 = vmatprep.subr.bf16.mxu0 %v4787
    %5180 = vmatpush1.bf16.msra.mxu0 %v4786
    %5181 = vmatprep.subr.bf16.mxu0 %v4794
    %5182 = vmatpush1.bf16.msra.mxu0 %v4793
    %5183 = vmatprep.subr.bf16.mxu0 %v4801
    %5184 = vmatpush1.bf16.msra.mxu0 %v4800
    %5185 = vmatprep.subr.bf16.mxu0 %v4808
    %5186 = vmatpush1.bf16.msra.mxu0 %v4807
    %5187 = vmatprep.subr.bf16.mxu0 %v4815
    %5188 = vmatpush1.bf16.msra.mxu0 %v4814
    %5189 = vmatprep.mubr.bf16.mxu0 %v3709
    %5190 = vmatmul.mubr.bf16.gmra.mrb[0].mxu0 %v3708
    %v5191 = vpop.f32.mrb[0].mxu0
    %v5192 = vadd.f32 %v3973, %v5191
    %v5193 = vpop.f32.mrb[0].mxu0
    %v5194 = vadd.f32 %v3977, %v5193
    %v5195 = vpop.f32.mrb[0].mxu0
    %v5196 = vpop.f32.mrb[0].mxu0
    %5197 = vdwg.mxu0
    %5198 = vmatprep.subr.bf16.mxu0 %v4822
    %5199 = vmatpush1.bf16.msra.mxu0 %v4821
    %5200 = vmatprep.subr.bf16.mxu0 %v4829
    %5201 = vmatpush1.bf16.msra.mxu0 %v4828
    %5202 = vmatprep.subr.bf16.mxu0 %v4836
    %5203 = vmatpush1.bf16.msra.mxu0 %v4835
    %5204 = vmatprep.subr.bf16.mxu0 %v4843
    %5205 = vmatpush1.bf16.msra.mxu0 %v4842
    %5206 = vmatprep.subr.bf16.mxu0 %v4850
    %5207 = vmatpush1.bf16.msra.mxu0 %v4849
    %5208 = vmatprep.subr.bf16.mxu0 %v4857
    %5209 = vmatpush1.bf16.msra.mxu0 %v4856
    %5210 = vmatprep.subr.bf16.mxu0 %v4864
    %5211 = vmatpush1.bf16.msra.mxu0 %v4863
    %5212 = vmatprep.subr.bf16.mxu0 %v4871
    %5213 = vmatpush1.bf16.msra.mxu0 %v4870
    %5214 = vmatprep.subr.bf16.mxu0 %v4878
    %5215 = vmatpush1.bf16.msra.mxu0 %v4877
    %5216 = vmatprep.subr.bf16.mxu0 %v4885
    %5217 = vmatpush1.bf16.msra.mxu0 %v4884
    %5218 = vmatprep.subr.bf16.mxu0 %v4892
    %5219 = vmatpush1.bf16.msra.mxu0 %v4891
    %5220 = vmatprep.subr.bf16.mxu0 %v4899
    %5221 = vmatpush1.bf16.msra.mxu0 %v4898
    %5222 = vmatprep.subr.bf16.mxu0 %v4906
    %5223 = vmatpush1.bf16.msra.mxu0 %v4905
    %5224 = vmatprep.subr.bf16.mxu0 %v4913
    %5225 = vmatpush1.bf16.msra.mxu0 %v4912
    %5226 = vmatprep.subr.bf16.mxu0 %v4920
    %5227 = vmatpush1.bf16.msra.mxu0 %v4919
    %5228 = vmatprep.subr.bf16.mxu0 %v4927
    %5229 = vmatpush1.bf16.msra.mxu0 %v4926
    %5230 = vmatprep.mubr.bf16.mxu0 %v3711
    %5231 = vmatmul.mubr.bf16.gmra.mrb[0].mxu0 %v3710
    %v5232 = vpop.f32.mrb[0].mxu0
    %v5233 = vadd.f32 %v5192, %v5232
    %v5234 = vpop.f32.mrb[0].mxu0
    %v5235 = vadd.f32 %v5194, %v5234
    %v5236 = vpop.f32.mrb[0].mxu0
    %v5237 = vpop.f32.mrb[0].mxu0
    %5238 = vdwg.mxu0
    %5239 = vmatprep.subr.bf16.mxu0 %v4712
    %5240 = vmatpush1.bf16.msra.mxu0 %v4711
    %5241 = vmatprep.subr.bf16.mxu0 %v4719
    %5242 = vmatpush1.bf16.msra.mxu0 %v4718
    %5243 = vmatprep.subr.bf16.mxu0 %v4726
    %5244 = vmatpush1.bf16.msra.mxu0 %v4725
    %5245 = vmatprep.subr.bf16.mxu0 %v4733
    %5246 = vmatpush1.bf16.msra.mxu0 %v4732
    %5247 = vmatprep.subr.bf16.mxu0 %v4740
    %5248 = vmatpush1.bf16.msra.mxu0 %v4739
    %5249 = vmatprep.subr.bf16.mxu0 %v4747
    %5250 = vmatpush1.bf16.msra.mxu0 %v4746
    %5251 = vmatprep.subr.bf16.mxu0 %v4754
    %5252 = vmatpush1.bf16.msra.mxu0 %v4753
    %5253 = vmatprep.subr.bf16.mxu0 %v4761
    %5254 = vmatpush1.bf16.msra.mxu0 %v4760
    %5255 = vmatprep.subr.bf16.mxu0 %v4768
    %5256 = vmatpush1.bf16.msra.mxu0 %v4767
    %5257 = vmatprep.subr.bf16.mxu0 %v4775
    %5258 = vmatpush1.bf16.msra.mxu0 %v4774
    %5259 = vmatprep.subr.bf16.mxu0 %v4782
    %5260 = vmatpush1.bf16.msra.mxu0 %v4781
    %5261 = vmatprep.subr.bf16.mxu0 %v4789
    %5262 = vmatpush1.bf16.msra.mxu0 %v4788
    %5263 = vmatprep.subr.bf16.mxu0 %v4796
    %5264 = vmatpush1.bf16.msra.mxu0 %v4795
    %5265 = vmatprep.subr.bf16.mxu0 %v4803
    %5266 = vmatpush1.bf16.msra.mxu0 %v4802
    %5267 = vmatprep.subr.bf16.mxu0 %v4810
    %5268 = vmatpush1.bf16.msra.mxu0 %v4809
    %5269 = vmatprep.subr.bf16.mxu0 %v4817
    %5270 = vmatpush1.bf16.msra.mxu0 %v4816
    %5271 = vmatprep.mubr.bf16.mxu0 %v3709
    %5272 = vmatmul.mubr.bf16.gmra.mrb[0].mxu0 %v3708
    %v5273 = vpop.f32.mrb[0].mxu0
    %v5274 = vadd.f32 %v3981, %v5273
    %v5275 = vpop.f32.mrb[0].mxu0
    %v5276 = vadd.f32 %v3985, %v5275
    %v5277 = vpop.f32.mrb[0].mxu0
    %v5278 = vpop.f32.mrb[0].mxu0
    %5279 = vdwg.mxu0
    %5280 = vmatprep.subr.bf16.mxu0 %v4824
    %5281 = vmatpush1.bf16.msra.mxu0 %v4823
    %5282 = vmatprep.subr.bf16.mxu0 %v4831
    %5283 = vmatpush1.bf16.msra.mxu0 %v4830
    %5284 = vmatprep.subr.bf16.mxu0 %v4838
    %5285 = vmatpush1.bf16.msra.mxu0 %v4837
    %5286 = vmatprep.subr.bf16.mxu0 %v4845
    %5287 = vmatpush1.bf16.msra.mxu0 %v4844
    %5288 = vmatprep.subr.bf16.mxu0 %v4852
    %5289 = vmatpush1.bf16.msra.mxu0 %v4851
    %5290 = vmatprep.subr.bf16.mxu0 %v4859
    %5291 = vmatpush1.bf16.msra.mxu0 %v4858
    %5292 = vmatprep.subr.bf16.mxu0 %v4866
    %5293 = vmatpush1.bf16.msra.mxu0 %v4865
    %5294 = vmatprep.subr.bf16.mxu0 %v4873
    %5295 = vmatpush1.bf16.msra.mxu0 %v4872
    %5296 = vmatprep.subr.bf16.mxu0 %v4880
    %5297 = vmatpush1.bf16.msra.mxu0 %v4879
    %5298 = vmatprep.subr.bf16.mxu0 %v4887
    %5299 = vmatpush1.bf16.msra.mxu0 %v4886
    %5300 = vmatprep.subr.bf16.mxu0 %v4894
    %5301 = vmatpush1.bf16.msra.mxu0 %v4893
    %5302 = vmatprep.subr.bf16.mxu0 %v4901
    %5303 = vmatpush1.bf16.msra.mxu0 %v4900
    %5304 = vmatprep.subr.bf16.mxu0 %v4908
    %5305 = vmatpush1.bf16.msra.mxu0 %v4907
    %5306 = vmatprep.subr.bf16.mxu0 %v4915
    %5307 = vmatpush1.bf16.msra.mxu0 %v4914
    %5308 = vmatprep.subr.bf16.mxu0 %v4922
    %5309 = vmatpush1.bf16.msra.mxu0 %v4921
    %5310 = vmatprep.subr.bf16.mxu0 %v4929
    %5311 = vmatpush1.bf16.msra.mxu0 %v4928
    %5312 = vmatprep.mubr.bf16.mxu0 %v3711
    %5313 = vmatmul.mubr.bf16.gmra.mrb[0].mxu0 %v3710
    %v5314 = vpop.f32.mrb[0].mxu0
    %v5315 = vadd.f32 %v5274, %v5314
    %v5316 = vpop.f32.mrb[0].mxu0
    %v5317 = vadd.f32 %v5276, %v5316
    %v5318 = vpop.f32.mrb[0].mxu0
    %v5319 = vpop.f32.mrb[0].mxu0
    %5320 = vdwg.mxu0
    %5321 = vmatprep.subr.bf16.mxu0 %v4714
    %5322 = vmatpush1.bf16.msra.mxu0 %v4713
    %5323 = vmatprep.subr.bf16.mxu0 %v4721
    %5324 = vmatpush1.bf16.msra.mxu0 %v4720
    %5325 = vmatprep.subr.bf16.mxu0 %v4728
    %5326 = vmatpush1.bf16.msra.mxu0 %v4727
    %5327 = vmatprep.subr.bf16.mxu0 %v4735
    %5328 = vmatpush1.bf16.msra.mxu0 %v4734
    %5329 = vmatprep.subr.bf16.mxu0 %v4742
    %5330 = vmatpush1.bf16.msra.mxu0 %v4741
    %5331 = vmatprep.subr.bf16.mxu0 %v4749
    %5332 = vmatpush1.bf16.msra.mxu0 %v4748
    %5333 = vmatprep.subr.bf16.mxu0 %v4756
    %5334 = vmatpush1.bf16.msra.mxu0 %v4755
    %5335 = vmatprep.subr.bf16.mxu0 %v4763
    %5336 = vmatpush1.bf16.msra.mxu0 %v4762
    %5337 = vmatprep.subr.bf16.mxu0 %v4770
    %5338 = vmatpush1.bf16.msra.mxu0 %v4769
    %5339 = vmatprep.subr.bf16.mxu0 %v4777
    %5340 = vmatpush1.bf16.msra.mxu0 %v4776
    %5341 = vmatprep.subr.bf16.mxu0 %v4784
    %5342 = vmatpush1.bf16.msra.mxu0 %v4783
    %5343 = vmatprep.subr.bf16.mxu0 %v4791
    %5344 = vmatpush1.bf16.msra.mxu0 %v4790
    %5345 = vmatprep.subr.bf16.mxu0 %v4798
    %5346 = vmatpush1.bf16.msra.mxu0 %v4797
    %5347 = vmatprep.subr.bf16.mxu0 %v4805
    %5348 = vmatpush1.bf16.msra.mxu0 %v4804
    %5349 = vmatprep.subr.bf16.mxu0 %v4812
    %5350 = vmatpush1.bf16.msra.mxu0 %v4811
    %5351 = vmatprep.subr.bf16.mxu0 %v4819
    %5352 = vmatpush1.bf16.msra.mxu0 %v4818
    %5353 = vmatprep.mubr.bf16.mxu0 %v3709
    %5354 = vmatmul.mubr.bf16.gmra.mrb[0].mxu0 %v3708
    %v5355 = vpop.f32.mrb[0].mxu0
    %v5356 = vadd.f32 %v3989, %v5355
    %v5357 = vpop.f32.mrb[0].mxu0
    %v5358 = vadd.f32 %v3993, %v5357
    %v5359 = vpop.f32.mrb[0].mxu0
    %v5360 = vpop.f32.mrb[0].mxu0
    %5361 = vdwg.mxu0
    %5362 = vmatprep.subr.bf16.mxu0 %v4826
    %5363 = vmatpush1.bf16.msra.mxu0 %v4825
    %5364 = vmatprep.subr.bf16.mxu0 %v4833
    %5365 = vmatpush1.bf16.msra.mxu0 %v4832
    %5366 = vmatprep.subr.bf16.mxu0 %v4840
    %5367 = vmatpush1.bf16.msra.mxu0 %v4839
    %5368 = vmatprep.subr.bf16.mxu0 %v4847
    %5369 = vmatpush1.bf16.msra.mxu0 %v4846
    %5370 = vmatprep.subr.bf16.mxu0 %v4854
    %5371 = vmatpush1.bf16.msra.mxu0 %v4853
    %5372 = vmatprep.subr.bf16.mxu0 %v4861
    %5373 = vmatpush1.bf16.msra.mxu0 %v4860
    %5374 = vmatprep.subr.bf16.mxu0 %v4868
    %5375 = vmatpush1.bf16.msra.mxu0 %v4867
    %5376 = vmatprep.subr.bf16.mxu0 %v4875
    %5377 = vmatpush1.bf16.msra.mxu0 %v4874
    %5378 = vmatprep.subr.bf16.mxu0 %v4882
    %5379 = vmatpush1.bf16.msra.mxu0 %v4881
    %5380 = vmatprep.subr.bf16.mxu0 %v4889
    %5381 = vmatpush1.bf16.msra.mxu0 %v4888
    %5382 = vmatprep.subr.bf16.mxu0 %v4896
    %5383 = vmatpush1.bf16.msra.mxu0 %v4895
    %5384 = vmatprep.subr.bf16.mxu0 %v4903
    %5385 = vmatpush1.bf16.msra.mxu0 %v4902
    %5386 = vmatprep.subr.bf16.mxu0 %v4910
    %5387 = vmatpush1.bf16.msra.mxu0 %v4909
    %5388 = vmatprep.subr.bf16.mxu0 %v4917
    %5389 = vmatpush1.bf16.msra.mxu0 %v4916
    %5390 = vmatprep.subr.bf16.mxu0 %v4924
    %5391 = vmatpush1.bf16.msra.mxu0 %v4923
    %5392 = vmatprep.subr.bf16.mxu0 %v4931
    %5393 = vmatpush1.bf16.msra.mxu0 %v4930
    %5394 = vmatprep.mubr.bf16.mxu0 %v3711
    %5395 = vmatmul.mubr.bf16.gmra.mrb[0].mxu0 %v3710
    %v5396 = vpop.f32.mrb[0].mxu0
    %v5397 = vadd.f32 %v5356, %v5396
    %v5398 = vpop.f32.mrb[0].mxu0
    %v5399 = vadd.f32 %v5358, %v5398
    %v5400 = vpop.f32.mrb[0].mxu0
    %v5401 = vpop.f32.mrb[0].mxu0
    %5402 = vdwg.mxu0
    %5403 = vmatprep.subr.bf16.mxu0 0
    %5404 = vmatpush1.bf16.msra.mxu0 %v4715
    %5405 = vmatprep.subr.bf16.mxu0 0
    %5406 = vmatpush1.bf16.msra.mxu0 %v4722
    %5407 = vmatprep.subr.bf16.mxu0 0
    %5408 = vmatpush1.bf16.msra.mxu0 %v4729
    %5409 = vmatprep.subr.bf16.mxu0 0
    %5410 = vmatpush1.bf16.msra.mxu0 %v4736
    %5411 = vmatprep.subr.bf16.mxu0 0
    %5412 = vmatpush1.bf16.msra.mxu0 %v4743
    %5413 = vmatprep.subr.bf16.mxu0 0
    %5414 = vmatpush1.bf16.msra.mxu0 %v4750
    %5415 = vmatprep.subr.bf16.mxu0 0
    %5416 = vmatpush1.bf16.msra.mxu0 %v4757
    %5417 = vmatprep.subr.bf16.mxu0 0
    %5418 = vmatpush1.bf16.msra.mxu0 %v4764
    %5419 = vmatprep.subr.bf16.mxu0 0
    %5420 = vmatpush1.bf16.msra.mxu0 %v4771
    %5421 = vmatprep.subr.bf16.mxu0 0
    %5422 = vmatpush1.bf16.msra.mxu0 %v4778
    %5423 = vmatprep.subr.bf16.mxu0 0
    %5424 = vmatpush1.bf16.msra.mxu0 %v4785
    %5425 = vmatprep.subr.bf16.mxu0 0
    %5426 = vmatpush1.bf16.msra.mxu0 %v4792
    %5427 = vmatprep.subr.bf16.mxu0 0
    %5428 = vmatpush1.bf16.msra.mxu0 %v4799
    %5429 = vmatprep.subr.bf16.mxu0 0
    %5430 = vmatpush1.bf16.msra.mxu0 %v4806
    %5431 = vmatprep.subr.bf16.mxu0 0
    %5432 = vmatpush1.bf16.msra.mxu0 %v4813
    %5433 = vmatprep.subr.bf16.mxu0 0
    %5434 = vmatpush1.bf16.msra.mxu0 %v4820
    %5435 = vmatprep.mubr.bf16.mxu0 %v3709
    %5436 = vmatmul.mubr.bf16.gmra.mrb[0].mxu0 %v3708
    %v5437 = vpop.f32.mrb[0].mxu0
    %v5438 = vadd.f32 %v3997, %v5437
    %v5439 = vpop.f32.mrb[0].mxu0
    %v5440 = vpop.f32.mrb[0].mxu0
    %v5441 = vpop.f32.mrb[0].mxu0
    %5442 = vdwg.mxu0
    %5443 = vmatprep.subr.bf16.mxu0 0
    %5444 = vmatpush1.bf16.msra.mxu0 %v4827
    %5445 = vmatprep.subr.bf16.mxu0 0
    %5446 = vmatpush1.bf16.msra.mxu0 %v4834
    %5447 = vmatprep.subr.bf16.mxu0 0
    %5448 = vmatpush1.bf16.msra.mxu0 %v4841
    %5449 = vmatprep.subr.bf16.mxu0 0
    %5450 = vmatpush1.bf16.msra.mxu0 %v4848
    %5451 = vmatprep.subr.bf16.mxu0 0
    %5452 = vmatpush1.bf16.msra.mxu0 %v4855
    %5453 = vmatprep.subr.bf16.mxu0 0
    %5454 = vmatpush1.bf16.msra.mxu0 %v4862
    %5455 = vmatprep.subr.bf16.mxu0 0
    %5456 = vmatpush1.bf16.msra.mxu0 %v4869
    %5457 = vmatprep.subr.bf16.mxu0 0
    %5458 = vmatpush1.bf16.msra.mxu0 %v4876
    %5459 = vmatprep.subr.bf16.mxu0 0
    %5460 = vmatpush1.bf16.msra.mxu0 %v4883
    %5461 = vmatprep.subr.bf16.mxu0 0
    %5462 = vmatpush1.bf16.msra.mxu0 %v4890
    %5463 = vmatprep.subr.bf16.mxu0 0
    %5464 = vmatpush1.bf16.msra.mxu0 %v4897
    %5465 = vmatprep.subr.bf16.mxu0 0
    %5466 = vmatpush1.bf16.msra.mxu0 %v4904
    %5467 = vmatprep.subr.bf16.mxu0 0
    %5468 = vmatpush1.bf16.msra.mxu0 %v4911
    %5469 = vmatprep.subr.bf16.mxu0 0
    %5470 = vmatpush1.bf16.msra.mxu0 %v4918
    %5471 = vmatprep.subr.bf16.mxu0 0
    %5472 = vmatpush1.bf16.msra.mxu0 %v4925
    %5473 = vmatprep.subr.bf16.mxu0 0
    %5474 = vmatpush1.bf16.msra.mxu0 %v4932
    %5475 = vmatprep.mubr.bf16.mxu0 %v3711
    %5476 = vmatmul.mubr.bf16.gmra.mrb[0].mxu0 %v3710
    %v5477 = vpop.f32.mrb[0].mxu0
    %v5478 = vadd.f32 %v5438, %v5477
    %v5479 = vpop.f32.mrb[0].mxu0
    %v5480 = vpop.f32.mrb[0].mxu0
    %v5481 = vpop.f32.mrb[0].mxu0
    %5482 = vdwg.mxu0
    %v5483 = vmax.f32 %v5233, 0.0
    %v5484 = vmax.f32 %v5235, 0.0
    %v5485 = vmax.f32 %v5315, 0.0
    %v5486 = vmax.f32 %v5317, 0.0
    %v5487 = vmax.f32 %v5397, 0.0
    %v5488 = vmax.f32 %v5399, 0.0
    %v5489 = vmax.f32 %v5478, 0.0
    %5490 = vst [vmem:[%s21] sm:$0xff] %v5483
    %5491 = vst [vmem:[%s21 + $0x8] sm:$0xff] %v5484
    %5492 = vst [vmem:[%s21 + $0x10] sm:$0xff] %v5485
    %5493 = vst [vmem:[%s21 + $0x18] sm:$0xff] %v5486
    %5494 = vst [vmem:[%s21 + $0x20] sm:$0xff] %v5487
    %5495 = vst [vmem:[%s21 + $0x28] sm:$0xff] %v5488
    %5496 = vst [vmem:[%s21 + $0x30] sm:$0xff] %v5489
    // Predicated region
    $region138: #{ae_forward.1} parent=1 // pred_check
      _
    $region139: #{ae_forward.1} parent=1 // pred_check_branch
      %5498 = sbr.rel (0) target = $region141
    $region140: #{ae_forward.1} parent=1 // pred_region
      _
    $region141: #{ae_forward.1} parent=1 // pred_fallthru
      _
    // Predicated region
    $region142: #{ae_forward.1} parent=1 // pred_check
      _
    $region143: #{ae_forward.1} parent=1 // pred_check_branch
      %5500 = sbr.rel (0) target = $region145
    $region144: #{ae_forward.1} parent=1 // pred_region
      _
    $region145: #{ae_forward.1} parent=1 // pred_fallthru
      _
    // Predicated region
    $region146: #{ae_forward.1} parent=1 // pred_check
      _
    $region147: #{ae_forward.1} parent=1 // pred_check_branch
      %5502 = sbr.rel (0) target = $region149
    $region148: #{ae_forward.1} parent=1 // pred_region
      _
    $region149: #{ae_forward.1} parent=1 // pred_fallthru
      _
    // Predicated region
    $region150: #{ae_forward.1} parent=1 // pred_check
      _
    $region151: #{ae_forward.1} parent=1 // pred_check_branch
      %5504 = sbr.rel (0) target = $region153
    $region152: #{ae_forward.1} parent=1 // pred_region
      _
    $region153: #{ae_forward.1} parent=1 // pred_fallthru
      _
    %5505 = vsyncpa [#allocation3], 1
    %5506 = vsyncpa [#allocation5], 1
    %5507 = vsyncpa [#allocation8], 1
    %5508 = vsyncpa [#allocation11], 1
    %5509 = vsyncpa [#allocation14], 1
    %5510 = vsyncpa [#allocation17], 1
    %5511 = vsyncpa [#allocation20], 1

</llo_original>
